<compile_context>
chip_gen: v7x
topology: tpu7x:2x2x1
jax: 0.10.0
libtpu: 0.0.40
codegen_flags: <defaults>
</compile_context>

<pallas_src>
import numpy as np
import jax
import jax.numpy as jnp
from jax.experimental import pallas as pl
from jax.experimental.pallas import tpu as pltpu

# ---- static network geometry (28x28x1 input, implied by fc1 = Linear(320, 50)) ----
H = 28                 # input height / width
KS = 5                 # conv kernel size
C1, C2 = 15, 20        # conv1 / conv2 output channels
O1, P1 = 24, 12        # conv1 output size / pooled size
O2, P2 = 8, 4          # conv2 output size / pooled size
K1 = KS * H            # conv1 row-window width   (140)
L1 = P1 * C1           # a1 lane width (col, ch)  (180)
K2 = KS * L1           # conv2 row-window width   (900)
L2 = P2 * C2           # a2 lane width (col, ch)  (80)
FEAT = P2 * L2         # fc1 input features       (320)
LANES = 128
NEG = -1e30


def _round_up(x, m):
    return ((x + m - 1) // m) * m


# ---------------- fully fused Pallas kernel ----------------

def _net2_kernel(x_ref, w1e_ref, w1o_ref, b1_ref, w2e_ref, w2o_ref, b2_ref,
                 wfc1_ref, bfc1_ref, wfc2_ref, bfc2_ref, out_ref):
    f32 = jnp.float32
    bt = x_ref.shape[1]                                   # batch tile (mult. of 16)
    x = x_ref[...].astype(jnp.bfloat16)                   # (28, BT, 28): rows outer

    # ---- conv1 (5x5, 1->15) + bias + 2x2 max-pool + ReLU ----
    # Row-window LHS: for output row oh, lanes = (di, input col).
    lhs1 = jnp.concatenate([x[d:d + O1] for d in range(KS)], axis=-1)   # (24, BT, 140)
    lhs1 = lhs1.reshape(O1 * bt, K1)                                    # tile-aligned
    y1e = jnp.dot(lhs1, w1e_ref[...], preferred_element_type=f32)       # even out-cols
    y1o = jnp.dot(lhs1, w1o_ref[...], preferred_element_type=f32)       # odd  out-cols
    y1 = jnp.maximum(y1e, y1o).reshape(P1, 2, bt, L1)                   # pool cols
    a1 = jnp.maximum(jnp.maximum(y1[:, 0], y1[:, 1]) + b1_ref[...], 0.0)  # pool rows
    a1 = a1.astype(jnp.bfloat16)                                        # (12, BT, 180)

    # ---- conv2 (5x5, 15->20) + bias + 2x2 max-pool + ReLU ----
    # TODO(synk): nn.Dropout2d on conv2's output implemented as identity (eval mode).
    lhs2 = jnp.concatenate([a1[d:d + O2] for d in range(KS)], axis=-1)  # (8, BT, 900)
    lhs2 = lhs2.reshape(O2 * bt, K2)
    y2e = jnp.dot(lhs2, w2e_ref[...], preferred_element_type=f32)
    y2o = jnp.dot(lhs2, w2o_ref[...], preferred_element_type=f32)
    y2 = jnp.maximum(y2e, y2o).reshape(P2, 2, bt, L2)
    a2 = jnp.maximum(jnp.maximum(y2[:, 0], y2[:, 1]) + b2_ref[...], 0.0)  # (4, BT, 80)

    # ---- flatten (row, col, channel) into lanes; fc1 + ReLU; fc2; log_softmax ----
    flat = jnp.concatenate([a2[t] for t in range(P2)], axis=-1)         # (BT, 320)
    h = jnp.dot(flat.astype(jnp.bfloat16), wfc1_ref[...],
                preferred_element_type=f32) + bfc1_ref[...]
    h = jnp.maximum(h, 0.0)
    # TODO(synk): F.dropout after fc1 implemented as identity (eval-mode semantics).
    logits = jnp.dot(h.astype(jnp.bfloat16), wfc2_ref[...],
                     preferred_element_type=f32) + bfc2_ref[...]        # (BT, 128)
    # Padded logit lanes carry a -1e30 bias, so they vanish in the softmax.
    m = jnp.max(logits, axis=-1, keepdims=True)
    z = logits - m
    lse = jnp.log(jnp.sum(jnp.exp(z), axis=-1, keepdims=True))
    out_ref[...] = z - lse


# ---------------- wrapper ----------------

def _pick_bt(n_pad):
    # n_pad is a multiple of 16.  Prefer larger tiles but keep >=2 grid steps
    # so the grid can shard across v7x's two TensorCores.
    for bt in (64, 32, 16):
        if n_pad % bt == 0 and n_pad // bt >= 2:
            return bt
    return min(n_pad, 64)


def net2_forward(x_nchw, prep):
    n = x_nchw.shape[0]
    assert x_nchw.shape[1:] == (1, H, H), "Net2 expects (N, 1, 28, 28) inputs"
    x = x_nchw.reshape(n, H, H)                     # C=1 -> pure reshape
    n_pad = _round_up(n, 16)                        # bf16 sublane tile = 16
    if n_pad != n:
        x = jnp.pad(x, ((0, n_pad - n), (0, 0), (0, 0)))
    xt = jnp.transpose(x, (1, 0, 2))                # (28, N_pad, 28): tiny relayout
    bt = _pick_bt(n_pad)

    out = pl.pallas_call(
        _net2_kernel,
        out_shape=jax.ShapeDtypeStruct((n_pad, LANES), jnp.float32),
        grid=(n_pad // bt,),
        in_specs=[
            pl.BlockSpec((H, bt, H), lambda i: (0, i, 0)),     # input rows
            pl.BlockSpec((K1, L1), lambda i: (0, 0)),          # conv1 even-col RHS
            pl.BlockSpec((K1, L1), lambda i: (0, 0)),          # conv1 odd-col  RHS
            pl.BlockSpec((1, L1), lambda i: (0, 0)),           # conv1 bias (tiled)
            pl.BlockSpec((K2, L2), lambda i: (0, 0)),          # conv2 even-col RHS
            pl.BlockSpec((K2, L2), lambda i: (0, 0)),          # conv2 odd-col  RHS
            pl.BlockSpec((1, L2), lambda i: (0, 0)),           # conv2 bias (tiled)
            pl.BlockSpec((FEAT, LANES), lambda i: (0, 0)),     # fc1 weight (320 rows)
            pl.BlockSpec((1, LANES), lambda i: (0, 0)),        # fc1 bias
            pl.BlockSpec((LANES, LANES), lambda i: (0, 0)),    # fc2 weight
            pl.BlockSpec((1, LANES), lambda i: (0, 0)),        # fc2 bias (+ -1e30 pad)
        ],
        out_specs=pl.BlockSpec((bt, LANES), lambda i: (i, 0)),
        compiler_params=pltpu.CompilerParams(
            dimension_semantics=("parallel",),
            vmem_limit_bytes=32 * 1024 * 1024),
    )(xt, prep["w1e"], prep["w1o"], prep["b1t"],
      prep["w2e"], prep["w2o"], prep["b2t"],
      prep["wfc1"], prep["bfc1"], prep["wfc2"], prep["bfc2"])
    return out[:n, :10]


# ---------------- parameter preparation (done once, on host) ----------------

def prepare_params(params):
    w1 = np.asarray(params["w1"], np.float32)      # (15, 1, 5, 5)
    b1 = np.asarray(params["b1"], np.float32)
    w2 = np.asarray(params["w2"], np.float32)      # (20, 15, 5, 5)
    b2 = np.asarray(params["b2"], np.float32)
    wfc1 = np.asarray(params["wfc1"], np.float32)  # (320, 50) stored as (in, out)
    bfc1 = np.asarray(params["bfc1"], np.float32)
    wfc2 = np.asarray(params["wfc2"], np.float32)  # (50, 10)
    bfc2 = np.asarray(params["bfc2"], np.float32)

    # conv1 banded RHS: rows = (di, input col), cols = (pooled out col j, channel c);
    # parity q in {0,1} selects even/odd output columns of the 2x2 pool pair.
    W1 = np.zeros((2, K1, L1), np.float32)
    for q in range(2):
        for di in range(KS):
            for dj in range(KS):
                for j in range(P1):
                    w_in = 2 * j + q + dj
                    W1[q, di * H + w_in, j * C1:(j + 1) * C1] = w1[:, 0, di, dj]
    b1t = np.tile(b1, P1).reshape(1, L1)

    # conv2 banded RHS: rows = (di, a1 col j, channel c), cols = (pooled out col u, c2).
    W2 = np.zeros((2, K2, L2), np.float32)
    for q in range(2):
        for di in range(KS):
            for dj in range(KS):
                for u in range(P2):
                    j = 2 * u + q + dj
                    W2[q, di * L1 + j * C1: di * L1 + (j + 1) * C1,
                       u * C2:(u + 1) * C2] = w2[:, :, di, dj].T
    b2t = np.tile(b2, P2).reshape(1, L2)

    # fc1: permute rows from torch's (c, h, w) flatten to our (h, w, c) lane order.
    wfc1p = wfc1.reshape(C2, P2, P2, 50).transpose(1, 2, 0, 3).reshape(FEAT, 50)
    wfc1p = np.pad(wfc1p, ((0, 0), (0, LANES - 50)))
    bfc1p = np.pad(bfc1, (0, LANES - 50)).reshape(1, LANES)
    wfc2p = np.pad(wfc2, ((0, LANES - 50), (0, LANES - 10)))
    bfc2m = np.full((1, LANES), NEG, np.float32)       # mask padded logit lanes
    bfc2m[0, :10] = bfc2

    return dict(
        w1e=jnp.asarray(W1[0], jnp.bfloat16),
        w1o=jnp.asarray(W1[1], jnp.bfloat16),
        b1t=jnp.asarray(b1t),
        w2e=jnp.asarray(W2[0], jnp.bfloat16),
        w2o=jnp.asarray(W2[1], jnp.bfloat16),
        b2t=jnp.asarray(b2t),
        wfc1=jnp.asarray(wfc1p, jnp.bfloat16),
        bfc1=jnp.asarray(bfc1p),
        wfc2=jnp.asarray(wfc2p, jnp.bfloat16),
        bfc2=jnp.asarray(bfc2m),
    )


# ---------------- pure-JAX f32 reference (for correctness check) ----------------

def net2_reference(x_nchw, params):
    dn = ("NCHW", "OIHW", "NCHW")
    y = jax.lax.conv_general_dilated(x_nchw, params["w1"], (1, 1), "VALID",
                                     dimension_numbers=dn)
    y = y + params["b1"].reshape(1, -1, 1, 1)
    y = jax.lax.reduce_window(y, -jnp.inf, jax.lax.max,
                              (1, 1, 2, 2), (1, 1, 2, 2), "VALID")
    y = jnp.maximum(y, 0.0)
    y = jax.lax.conv_general_dilated(y, params["w2"], (1, 1), "VALID",
                                     dimension_numbers=dn)
    y = y + params["b2"].reshape(1, -1, 1, 1)
    y = jax.lax.reduce_window(y, -jnp.inf, jax.lax.max,
                              (1, 1, 2, 2), (1, 1, 2, 2), "VALID")
    y = jnp.maximum(y, 0.0)
    y = y.reshape(y.shape[0], 320)
    y = jnp.maximum(y @ params["wfc1"] + params["bfc1"], 0.0)
    y = y @ params["wfc2"] + params["bfc2"]
    return jax.nn.log_softmax(y, axis=-1)


def init_params(key):
    ks = jax.random.split(key, 8)

    def u(k, shape, fan_in):
        bound = 1.0 / (fan_in ** 0.5)
        return jax.random.uniform(k, shape, jnp.float32, -bound, bound)

    return dict(
        w1=u(ks[0], (15, 1, 5, 5), 1 * 5 * 5),     # conv1 weight (Cout, Cin, kh, kw)
        b1=u(ks[1], (15,), 1 * 5 * 5),
        w2=u(ks[2], (20, 15, 5, 5), 15 * 5 * 5),   # conv2 weight
        b2=u(ks[3], (20,), 15 * 5 * 5),
        wfc1=u(ks[4], (320, 50), 320),             # stored as (in, out)
        bfc1=u(ks[5], (50,), 320),
        wfc2=u(ks[6], (50, 10), 50),
        bfc2=u(ks[7], (10,), 50),
    )


if __name__ == "__main__":
    key = jax.random.PRNGKey(0)
    k_x, k_p = jax.random.split(key)
    x = jax.random.normal(k_x, (2, 1, 28, 28), dtype=jnp.float32)  # NCHW like PyTorch
    params = init_params(k_p)
    prep = prepare_params(params)

    fwd = jax.jit(net2_forward)
    out = fwd(x, prep)
    jax.block_until_ready(out)

    assert out.shape == (2, 10)
    # log_softmax rows must exponentiate-sum to ~1
    assert bool(jnp.allclose(jnp.sum(jnp.exp(out), axis=-1), 1.0, atol=1e-3))
    # match the pure-JAX f32 reference (bf16 MXU inputs => loose tolerance)
    ref = net2_reference(x, params)
    assert bool(jnp.allclose(out, ref, atol=2e-1))

    # also exercise the multi-step grid path (>=2 grid steps / megacore sharding)
    x_big = jax.random.normal(k_x, (32, 1, 28, 28), dtype=jnp.float32)
    out_big = jax.block_until_ready(fwd(x_big, prep))
    ref_big = net2_reference(x_big, params)
    assert out_big.shape == (32, 10)
    assert bool(jnp.allclose(out_big, ref_big, atol=2e-1))

    print("KERNEL_OK")
</pallas_src>

<mosaic_0001>
module attributes {stable_mosaic.version = 11 : i64} {
  func.func @_net2_kernel(%arg0: i32, %arg1: memref<28x16x28xf32, #tpu.memory_space<vmem>>, %arg2: memref<140x180xbf16, #tpu.memory_space<vmem>>, %arg3: memref<140x180xbf16, #tpu.memory_space<vmem>>, %arg4: memref<1x180xf32, #tpu.memory_space<vmem>>, %arg5: memref<900x80xbf16, #tpu.memory_space<vmem>>, %arg6: memref<900x80xbf16, #tpu.memory_space<vmem>>, %arg7: memref<1x80xf32, #tpu.memory_space<vmem>>, %arg8: memref<320x128xbf16, #tpu.memory_space<vmem>>, %arg9: memref<1x128xf32, #tpu.memory_space<vmem>>, %arg10: memref<128x128xbf16, #tpu.memory_space<vmem>>, %arg11: memref<1x128xf32, #tpu.memory_space<vmem>>, %arg12: memref<16x128xf32, #tpu.memory_space<vmem>>) attributes {dimension_semantics = [#tpu.dimension_semantics<parallel>], iteration_bounds = array<i64: 1>, scalar_prefetch = 0 : i64, scratch_operands = 0 : i64, tpu.core_type = #tpu.core_type<tc>, window_params = [{transform_indices = @transform_0, window_bounds = array<i64: 28, 16, 28>}, {pipeline_mode = #tpu.pipeline_mode<synchronous>, transform_indices = @transform_1, window_bounds = array<i64: 140, 180>}, {pipeline_mode = #tpu.pipeline_mode<synchronous>, transform_indices = @transform_2, window_bounds = array<i64: 140, 180>}, {pipeline_mode = #tpu.pipeline_mode<synchronous>, transform_indices = @transform_3, window_bounds = array<i64: 1, 180>}, {pipeline_mode = #tpu.pipeline_mode<synchronous>, transform_indices = @transform_4, window_bounds = array<i64: 900, 80>}, {pipeline_mode = #tpu.pipeline_mode<synchronous>, transform_indices = @transform_5, window_bounds = array<i64: 900, 80>}, {pipeline_mode = #tpu.pipeline_mode<synchronous>, transform_indices = @transform_6, window_bounds = array<i64: 1, 80>}, {pipeline_mode = #tpu.pipeline_mode<synchronous>, transform_indices = @transform_7, window_bounds = array<i64: 320, 128>}, {pipeline_mode = #tpu.pipeline_mode<synchronous>, transform_indices = @transform_8, window_bounds = array<i64: 1, 128>}, {pipeline_mode = #tpu.pipeline_mode<synchronous>, transform_indices = @transform_9, window_bounds = array<i64: 128, 128>}, {pipeline_mode = #tpu.pipeline_mode<synchronous>, transform_indices = @transform_10, window_bounds = array<i64: 1, 128>}, {transform_indices = @transform_11, window_bounds = array<i64: 16, 128>}]} {
    %c0 = arith.constant 0 : index
    %c0_0 = arith.constant 0 : index
    %c0_1 = arith.constant 0 : index
    %0 = vector.load %arg1[%c0, %c0_0, %c0_1] : memref<28x16x28xf32, #tpu.memory_space<vmem>>, vector<28x16x28xf32>
    %1 = arith.truncf %0 : vector<28x16x28xf32> to vector<28x16x28xbf16>
    %2 = vector.extract_strided_slice %1 {offsets = [0, 0, 0], sizes = [24, 16, 28], strides = [1, 1, 1]} : vector<28x16x28xbf16> to vector<24x16x28xbf16>
    %3 = vector.extract_strided_slice %1 {offsets = [1, 0, 0], sizes = [24, 16, 28], strides = [1, 1, 1]} : vector<28x16x28xbf16> to vector<24x16x28xbf16>
    %4 = vector.extract_strided_slice %1 {offsets = [2, 0, 0], sizes = [24, 16, 28], strides = [1, 1, 1]} : vector<28x16x28xbf16> to vector<24x16x28xbf16>
    %5 = vector.extract_strided_slice %1 {offsets = [3, 0, 0], sizes = [24, 16, 28], strides = [1, 1, 1]} : vector<28x16x28xbf16> to vector<24x16x28xbf16>
    %6 = vector.extract_strided_slice %1 {offsets = [4, 0, 0], sizes = [24, 16, 28], strides = [1, 1, 1]} : vector<28x16x28xbf16> to vector<24x16x28xbf16>
    %7 = tpu.concatenate %2, %3, %4, %5, %6 in 2 : vector<24x16x28xbf16>, vector<24x16x28xbf16>, vector<24x16x28xbf16>, vector<24x16x28xbf16>, vector<24x16x28xbf16> -> vector<24x16x140xbf16>
    %8 = vector.shape_cast %7 : vector<24x16x140xbf16> to vector<384x140xbf16>
    %c0_2 = arith.constant 0 : index
    %c0_3 = arith.constant 0 : index
    %9 = vector.load %arg2[%c0_2, %c0_3] : memref<140x180xbf16, #tpu.memory_space<vmem>>, vector<140x180xbf16>
    %cst = arith.constant dense<0.000000e+00> : vector<384x180xf32>
    %10 = tpu.matmul %8, %9, %cst {dimension_numbers = #tpu.dot_dimension_numbers<[1], [0], [0], [1], [0, 0, 1, 1], [], []>} : vector<384x140xbf16>, vector<140x180xbf16>, vector<384x180xf32> -> vector<384x180xf32>
    %c0_4 = arith.constant 0 : index
    %c0_5 = arith.constant 0 : index
    %11 = vector.load %arg3[%c0_4, %c0_5] : memref<140x180xbf16, #tpu.memory_space<vmem>>, vector<140x180xbf16>
    %cst_6 = arith.constant dense<0.000000e+00> : vector<384x180xf32>
    %12 = tpu.matmul %8, %11, %cst_6 {dimension_numbers = #tpu.dot_dimension_numbers<[1], [0], [0], [1], [0, 0, 1, 1], [], []>} : vector<384x140xbf16>, vector<140x180xbf16>, vector<384x180xf32> -> vector<384x180xf32>
    %13 = arith.maximumf %10, %12 : vector<384x180xf32>
    %14 = vector.shape_cast %13 : vector<384x180xf32> to vector<12x2x16x180xf32>
    %15 = vector.extract_strided_slice %14 {offsets = [0, 0, 0, 0], sizes = [12, 1, 16, 180], strides = [1, 1, 1, 1]} : vector<12x2x16x180xf32> to vector<12x1x16x180xf32>
    %16 = vector.shape_cast %15 : vector<12x1x16x180xf32> to vector<12x16x180xf32>
    %17 = vector.extract_strided_slice %14 {offsets = [0, 1, 0, 0], sizes = [12, 1, 16, 180], strides = [1, 1, 1, 1]} : vector<12x2x16x180xf32> to vector<12x1x16x180xf32>
    %18 = vector.shape_cast %17 : vector<12x1x16x180xf32> to vector<12x16x180xf32>
    %19 = arith.maximumf %16, %18 : vector<12x16x180xf32>
    %c0_7 = arith.constant 0 : index
    %c0_8 = arith.constant 0 : index
    %20 = vector.load %arg4[%c0_7, %c0_8] : memref<1x180xf32, #tpu.memory_space<vmem>>, vector<1x180xf32>
    %21 = vector.shape_cast %20 : vector<1x180xf32> to vector<1x1x180xf32>
    %22 = vector.broadcast %21 : vector<1x1x180xf32> to vector<12x16x180xf32>
    %23 = arith.addf %19, %22 : vector<12x16x180xf32>
    %cst_9 = arith.constant 0.000000e+00 : f32
    %24 = vector.broadcast %cst_9 : f32 to vector<12x16x180xf32>
    %25 = arith.maximumf %23, %24 : vector<12x16x180xf32>
    %26 = arith.truncf %25 : vector<12x16x180xf32> to vector<12x16x180xbf16>
    %27 = vector.extract_strided_slice %26 {offsets = [0, 0, 0], sizes = [8, 16, 180], strides = [1, 1, 1]} : vector<12x16x180xbf16> to vector<8x16x180xbf16>
    %28 = vector.extract_strided_slice %26 {offsets = [1, 0, 0], sizes = [8, 16, 180], strides = [1, 1, 1]} : vector<12x16x180xbf16> to vector<8x16x180xbf16>
    %29 = vector.extract_strided_slice %26 {offsets = [2, 0, 0], sizes = [8, 16, 180], strides = [1, 1, 1]} : vector<12x16x180xbf16> to vector<8x16x180xbf16>
    %30 = vector.extract_strided_slice %26 {offsets = [3, 0, 0], sizes = [8, 16, 180], strides = [1, 1, 1]} : vector<12x16x180xbf16> to vector<8x16x180xbf16>
    %31 = vector.extract_strided_slice %26 {offsets = [4, 0, 0], sizes = [8, 16, 180], strides = [1, 1, 1]} : vector<12x16x180xbf16> to vector<8x16x180xbf16>
    %32 = tpu.concatenate %27, %28, %29, %30, %31 in 2 : vector<8x16x180xbf16>, vector<8x16x180xbf16>, vector<8x16x180xbf16>, vector<8x16x180xbf16>, vector<8x16x180xbf16> -> vector<8x16x900xbf16>
    %33 = vector.shape_cast %32 : vector<8x16x900xbf16> to vector<128x900xbf16>
    %c0_10 = arith.constant 0 : index
    %c0_11 = arith.constant 0 : index
    %34 = vector.load %arg5[%c0_10, %c0_11] : memref<900x80xbf16, #tpu.memory_space<vmem>>, vector<900x80xbf16>
    %cst_12 = arith.constant dense<0.000000e+00> : vector<128x80xf32>
    %35 = tpu.matmul %33, %34, %cst_12 {dimension_numbers = #tpu.dot_dimension_numbers<[1], [0], [0], [1], [0, 0, 1, 1], [], []>} : vector<128x900xbf16>, vector<900x80xbf16>, vector<128x80xf32> -> vector<128x80xf32>
    %c0_13 = arith.constant 0 : index
    %c0_14 = arith.constant 0 : index
    %36 = vector.load %arg6[%c0_13, %c0_14] : memref<900x80xbf16, #tpu.memory_space<vmem>>, vector<900x80xbf16>
    %cst_15 = arith.constant dense<0.000000e+00> : vector<128x80xf32>
    %37 = tpu.matmul %33, %36, %cst_15 {dimension_numbers = #tpu.dot_dimension_numbers<[1], [0], [0], [1], [0, 0, 1, 1], [], []>} : vector<128x900xbf16>, vector<900x80xbf16>, vector<128x80xf32> -> vector<128x80xf32>
    %38 = arith.maximumf %35, %37 : vector<128x80xf32>
    %39 = vector.shape_cast %38 : vector<128x80xf32> to vector<4x2x16x80xf32>
    %40 = vector.extract_strided_slice %39 {offsets = [0, 0, 0, 0], sizes = [4, 1, 16, 80], strides = [1, 1, 1, 1]} : vector<4x2x16x80xf32> to vector<4x1x16x80xf32>
    %41 = vector.shape_cast %40 : vector<4x1x16x80xf32> to vector<4x16x80xf32>
    %42 = vector.extract_strided_slice %39 {offsets = [0, 1, 0, 0], sizes = [4, 1, 16, 80], strides = [1, 1, 1, 1]} : vector<4x2x16x80xf32> to vector<4x1x16x80xf32>
    %43 = vector.shape_cast %42 : vector<4x1x16x80xf32> to vector<4x16x80xf32>
    %44 = arith.maximumf %41, %43 : vector<4x16x80xf32>
    %c0_16 = arith.constant 0 : index
    %c0_17 = arith.constant 0 : index
    %45 = vector.load %arg7[%c0_16, %c0_17] : memref<1x80xf32, #tpu.memory_space<vmem>>, vector<1x80xf32>
    %46 = vector.shape_cast %45 : vector<1x80xf32> to vector<1x1x80xf32>
    %47 = vector.broadcast %46 : vector<1x1x80xf32> to vector<4x16x80xf32>
    %48 = arith.addf %44, %47 : vector<4x16x80xf32>
    %cst_18 = arith.constant 0.000000e+00 : f32
    %49 = vector.broadcast %cst_18 : f32 to vector<4x16x80xf32>
    %50 = arith.maximumf %48, %49 : vector<4x16x80xf32>
    %51 = vector.extract_strided_slice %50 {offsets = [0, 0, 0], sizes = [1, 16, 80], strides = [1, 1, 1]} : vector<4x16x80xf32> to vector<1x16x80xf32>
    %52 = vector.shape_cast %51 : vector<1x16x80xf32> to vector<16x80xf32>
    %53 = vector.extract_strided_slice %50 {offsets = [1, 0, 0], sizes = [1, 16, 80], strides = [1, 1, 1]} : vector<4x16x80xf32> to vector<1x16x80xf32>
    %54 = vector.shape_cast %53 : vector<1x16x80xf32> to vector<16x80xf32>
    %55 = vector.extract_strided_slice %50 {offsets = [2, 0, 0], sizes = [1, 16, 80], strides = [1, 1, 1]} : vector<4x16x80xf32> to vector<1x16x80xf32>
    %56 = vector.shape_cast %55 : vector<1x16x80xf32> to vector<16x80xf32>
    %57 = vector.extract_strided_slice %50 {offsets = [3, 0, 0], sizes = [1, 16, 80], strides = [1, 1, 1]} : vector<4x16x80xf32> to vector<1x16x80xf32>
    %58 = vector.shape_cast %57 : vector<1x16x80xf32> to vector<16x80xf32>
    %59 = tpu.concatenate %52, %54, %56, %58 in 1 : vector<16x80xf32>, vector<16x80xf32>, vector<16x80xf32>, vector<16x80xf32> -> vector<16x320xf32>
    %60 = arith.truncf %59 : vector<16x320xf32> to vector<16x320xbf16>
    %c0_19 = arith.constant 0 : index
    %c0_20 = arith.constant 0 : index
    %61 = vector.load %arg8[%c0_19, %c0_20] : memref<320x128xbf16, #tpu.memory_space<vmem>>, vector<320x128xbf16>
    %cst_21 = arith.constant dense<0.000000e+00> : vector<16x128xf32>
    %62 = tpu.matmul %60, %61, %cst_21 {dimension_numbers = #tpu.dot_dimension_numbers<[1], [0], [0], [1], [0, 0, 1, 1], [], []>} : vector<16x320xbf16>, vector<320x128xbf16>, vector<16x128xf32> -> vector<16x128xf32>
    %c0_22 = arith.constant 0 : index
    %c0_23 = arith.constant 0 : index
    %63 = vector.load %arg9[%c0_22, %c0_23] : memref<1x128xf32, #tpu.memory_space<vmem>>, vector<1x128xf32>
    %64 = vector.broadcast %63 : vector<1x128xf32> to vector<16x128xf32>
    %65 = arith.addf %62, %64 : vector<16x128xf32>
    %cst_24 = arith.constant 0.000000e+00 : f32
    %66 = vector.broadcast %cst_24 : f32 to vector<16x128xf32>
    %67 = arith.maximumf %65, %66 : vector<16x128xf32>
    %68 = arith.truncf %67 : vector<16x128xf32> to vector<16x128xbf16>
    %c0_25 = arith.constant 0 : index
    %c0_26 = arith.constant 0 : index
    %69 = vector.load %arg10[%c0_25, %c0_26] : memref<128x128xbf16, #tpu.memory_space<vmem>>, vector<128x128xbf16>
    %cst_27 = arith.constant dense<0.000000e+00> : vector<16x128xf32>
    %70 = tpu.matmul %68, %69, %cst_27 {dimension_numbers = #tpu.dot_dimension_numbers<[1], [0], [0], [1], [0, 0, 1, 1], [], []>} : vector<16x128xbf16>, vector<128x128xbf16>, vector<16x128xf32> -> vector<16x128xf32>
    %c0_28 = arith.constant 0 : index
    %c0_29 = arith.constant 0 : index
    %71 = vector.load %arg11[%c0_28, %c0_29] : memref<1x128xf32, #tpu.memory_space<vmem>>, vector<1x128xf32>
    %72 = vector.broadcast %71 : vector<1x128xf32> to vector<16x128xf32>
    %73 = arith.addf %70, %72 : vector<16x128xf32>
    %cst_30 = arith.constant dense<0xFF800000> : vector<16xf32>
    %74 = vector.multi_reduction <maximumf>, %73, %cst_30 [1] : vector<16x128xf32> to vector<16xf32>
    %75 = vector.shape_cast %74 : vector<16xf32> to vector<16x1xf32>
    %76 = vector.broadcast %75 : vector<16x1xf32> to vector<16x128xf32>
    %77 = arith.subf %73, %76 : vector<16x128xf32>
    %78 = math.exp %77 : vector<16x128xf32>
    %cst_31 = arith.constant dense<0.000000e+00> : vector<16xf32>
    %79 = vector.multi_reduction <add>, %78, %cst_31 [1] : vector<16x128xf32> to vector<16xf32>
    %80 = vector.shape_cast %79 : vector<16xf32> to vector<16x1xf32>
    %81 = math.log %80 : vector<16x1xf32>
    %82 = vector.broadcast %81 : vector<16x1xf32> to vector<16x128xf32>
    %83 = arith.subf %77, %82 : vector<16x128xf32>
    %c0_32 = arith.constant 0 : index
    %c0_33 = arith.constant 0 : index
    %84 = vector.load %arg12[%c0_32, %c0_33] : memref<16x128xf32, #tpu.memory_space<vmem>>, vector<16x128xf32>
    tpu.vector_store %arg12[%c0_32, %c0_33], %83 {strides = array<i32>} : memref<16x128xf32, #tpu.memory_space<vmem>>, vector<16x128xf32>,
    return
  }
  func.func @transform_0(%arg0: i32) -> (i32, i32, i32) {
    %c0_i32 = arith.constant 0 : i32
    %c0_i32_0 = arith.constant 0 : i32
    %c0_i32_1 = arith.constant 0 : i32
    return %c0_i32, %arg0, %c0_i32_0 : i32, i32, i32
  }
  func.func @transform_1(%arg0: i32) -> (i32, i32) {
    %c0_i32 = arith.constant 0 : i32
    %c0_i32_0 = arith.constant 0 : i32
    %c0_i32_1 = arith.constant 0 : i32
    return %c0_i32, %c0_i32_0 : i32, i32
  }
  func.func @transform_2(%arg0: i32) -> (i32, i32) {
    %c0_i32 = arith.constant 0 : i32
    %c0_i32_0 = arith.constant 0 : i32
    %c0_i32_1 = arith.constant 0 : i32
    return %c0_i32, %c0_i32_0 : i32, i32
  }
  func.func @transform_3(%arg0: i32) -> (i32, i32) {
    %c0_i32 = arith.constant 0 : i32
    %c0_i32_0 = arith.constant 0 : i32
    %c0_i32_1 = arith.constant 0 : i32
    return %c0_i32, %c0_i32_0 : i32, i32
  }
  func.func @transform_4(%arg0: i32) -> (i32, i32) {
    %c0_i32 = arith.constant 0 : i32
    %c0_i32_0 = arith.constant 0 : i32
    %c0_i32_1 = arith.constant 0 : i32
    return %c0_i32, %c0_i32_0 : i32, i32
  }
  func.func @transform_5(%arg0: i32) -> (i32, i32) {
    %c0_i32 = arith.constant 0 : i32
    %c0_i32_0 = arith.constant 0 : i32
    %c0_i32_1 = arith.constant 0 : i32
    return %c0_i32, %c0_i32_0 : i32, i32
  }
  func.func @transform_6(%arg0: i32) -> (i32, i32) {
    %c0_i32 = arith.constant 0 : i32
    %c0_i32_0 = arith.constant 0 : i32
    %c0_i32_1 = arith.constant 0 : i32
    return %c0_i32, %c0_i32_0 : i32, i32
  }
  func.func @transform_7(%arg0: i32) -> (i32, i32) {
    %c0_i32 = arith.constant 0 : i32
    %c0_i32_0 = arith.constant 0 : i32
    %c0_i32_1 = arith.constant 0 : i32
    return %c0_i32, %c0_i32_0 : i32, i32
  }
  func.func @transform_8(%arg0: i32) -> (i32, i32) {
    %c0_i32 = arith.constant 0 : i32
    %c0_i32_0 = arith.constant 0 : i32
    %c0_i32_1 = arith.constant 0 : i32
    return %c0_i32, %c0_i32_0 : i32, i32
  }
  func.func @transform_9(%arg0: i32) -> (i32, i32) {
    %c0_i32 = arith.constant 0 : i32
    %c0_i32_0 = arith.constant 0 : i32
    %c0_i32_1 = arith.constant 0 : i32
    return %c0_i32, %c0_i32_0 : i32, i32
  }
  func.func @transform_10(%arg0: i32) -> (i32, i32) {
    %c0_i32 = arith.constant 0 : i32
    %c0_i32_0 = arith.constant 0 : i32
    %c0_i32_1 = arith.constant 0 : i32
    return %c0_i32, %c0_i32_0 : i32, i32
  }
  func.func @transform_11(%arg0: i32) -> (i32, i32) {
    %c0_i32 = arith.constant 0 : i32
    %c0_i32_0 = arith.constant 0 : i32
    return %arg0, %c0_i32 : i32, i32
  }
}

</mosaic_0001>

<llo_original>
// kernel: net2_forward.1
$region0: #{net2_forward.1}
  #allocation0 [shape = 'u32[]', space=smem, size = 0x4, offset = 0x4, fixed_abs, tag = 'smem constant byte address 0x4 - core index']
  #allocation1 [shape = 'u32[144,128]{1,0:T(1,128)}', space=vmem, size = 0x12000, scoped, tag = 'internal scratch']
  %s0 = inlined_call_operand.vmem [shape: f32[28,16,28], index: 0, kind: input, shape index: {}]
  %s1 = inlined_call_operand.vmem [shape: bf16[140,180], index: 1, kind: input, shape index: {}]
  %s2 = inlined_call_operand.vmem [shape: bf16[140,180], index: 2, kind: input, shape index: {}]
  %s3 = inlined_call_operand.vmem [shape: f32[1,180], index: 3, kind: input, shape index: {}]
  %s4 = inlined_call_operand.vmem [shape: bf16[900,80], index: 4, kind: input, shape index: {}]
  %s5 = inlined_call_operand.vmem [shape: bf16[900,80], index: 5, kind: input, shape index: {}]
  %s6 = inlined_call_operand.vmem [shape: f32[1,80], index: 6, kind: input, shape index: {}]
  %s7 = inlined_call_operand.vmem [shape: bf16[320,128], index: 7, kind: input, shape index: {}]
  %s8 = inlined_call_operand.vmem [shape: f32[1,128], index: 8, kind: input, shape index: {}]
  %s9 = inlined_call_operand.vmem [shape: bf16[128,128], index: 9, kind: input, shape index: {}]
  %s10 = inlined_call_operand.vmem [shape: f32[1,128], index: 10, kind: input, shape index: {}]
  %s11 = inlined_call_operand.vmem [shape: f32[16,128], index: 11, kind: output, shape index: {}]
  %s12 = sld [smem:[#allocation0]]
  $region54: #{net2_forward.1} parent=0
    _
  %s14 = ssub.s32 1, %s12
  %s15 = scalar_select 0, %s14, %s12
  // Predicated region
  $region2: #{net2_forward.1} parent=0 // pred_check
    _
  $region3: #{net2_forward.1} parent=0 // pred_check_branch
    %17 = sbr.rel (0) target = $region5
  $region4: #{net2_forward.1} parent=0 // pred_region
    _
  $region5: #{net2_forward.1} parent=0 // pred_fallthru
    _
  // Predicated region
  $region6: #{net2_forward.1} parent=0 // pred_check
    _
  $region7: #{net2_forward.1} parent=0 // pred_check_branch
    %19 = sbr.rel (0) target = $region9
  $region8: #{net2_forward.1} parent=0 // pred_region
    _
  $region9: #{net2_forward.1} parent=0 // pred_fallthru
    _
  // Predicated region
  $region10: #{net2_forward.1} parent=0 // pred_check
    _
  $region11: #{net2_forward.1} parent=0 // pred_check_branch
    %21 = sbr.rel (0) target = $region13
  $region12: #{net2_forward.1} parent=0 // pred_region
    _
  $region13: #{net2_forward.1} parent=0 // pred_fallthru
    _
  // Predicated region
  $region14: #{net2_forward.1} parent=0 // pred_check
    _
  $region15: #{net2_forward.1} parent=0 // pred_check_branch
    %23 = sbr.rel (0) target = $region17
  $region16: #{net2_forward.1} parent=0 // pred_region
    _
  $region17: #{net2_forward.1} parent=0 // pred_fallthru
    _
  // Predicated region
  $region18: #{net2_forward.1} parent=0 // pred_check
    _
  $region19: #{net2_forward.1} parent=0 // pred_check_branch
    %25 = sbr.rel (0) target = $region21
  $region20: #{net2_forward.1} parent=0 // pred_region
    _
  $region21: #{net2_forward.1} parent=0 // pred_fallthru
    _
  // Predicated region
  $region22: #{net2_forward.1} parent=0 // pred_check
    _
  $region23: #{net2_forward.1} parent=0 // pred_check_branch
    %27 = sbr.rel (0) target = $region25
  $region24: #{net2_forward.1} parent=0 // pred_region
    _
  $region25: #{net2_forward.1} parent=0 // pred_fallthru
    _
  // Predicated region
  $region26: #{net2_forward.1} parent=0 // pred_check
    _
  $region27: #{net2_forward.1} parent=0 // pred_check_branch
    %29 = sbr.rel (0) target = $region29
  $region28: #{net2_forward.1} parent=0 // pred_region
    _
  $region29: #{net2_forward.1} parent=0 // pred_fallthru
    _
  // Predicated region
  $region30: #{net2_forward.1} parent=0 // pred_check
    _
  $region31: #{net2_forward.1} parent=0 // pred_check_branch
    %31 = sbr.rel (0) target = $region33
  $region32: #{net2_forward.1} parent=0 // pred_region
    _
  $region33: #{net2_forward.1} parent=0 // pred_fallthru
    _
  // Predicated region
  $region34: #{net2_forward.1} parent=0 // pred_check
    _
  $region35: #{net2_forward.1} parent=0 // pred_check_branch
    %33 = sbr.rel (0) target = $region37
  $region36: #{net2_forward.1} parent=0 // pred_region
    _
  $region37: #{net2_forward.1} parent=0 // pred_fallthru
    _
  // Predicated region
  $region38: #{net2_forward.1} parent=0 // pred_check
    _
  $region39: #{net2_forward.1} parent=0 // pred_check_branch
    %35 = sbr.rel (0) target = $region41
  $region40: #{net2_forward.1} parent=0 // pred_region
    _
  $region41: #{net2_forward.1} parent=0 // pred_fallthru
    _
  // Predicated region
  $region42: #{net2_forward.1} parent=0 // pred_check
    _
  $region43: #{net2_forward.1} parent=0 // pred_check_branch
    %37 = sbr.rel (0) target = $region45
  $region44: #{net2_forward.1} parent=0 // pred_region
    _
  $region45: #{net2_forward.1} parent=0 // pred_fallthru
    _
  %v39 = vld [vmem:[%s0] sm:$0xff]
  %v40 = vld [vmem:[%s0 + $0x8] sm:$0xff]
  %v41 = vld [vmem:[%s0 + $0x10] sm:$0xff]
  %v42 = vld [vmem:[%s0 + $0x18] sm:$0xff]
  %v43 = vld [vmem:[%s0 + $0x20] sm:$0xff]
  %v44 = vld [vmem:[%s0 + $0x28] sm:$0xff]
  %v45 = vld [vmem:[%s0 + $0x30] sm:$0xff]
  %v46 = vld [vmem:[%s0 + $0x38] sm:$0xff]
  %v47 = vld [vmem:[%s0 + $0x40] sm:$0xff]
  %v48 = vld [vmem:[%s0 + $0x48] sm:$0xff]
  %v49 = vld [vmem:[%s0 + $0x50] sm:$0xff]
  %v50 = vld [vmem:[%s0 + $0x58] sm:$0xff]
  %v51 = vld [vmem:[%s0 + $0x60] sm:$0xff]
  %v52 = vld [vmem:[%s0 + $0x68] sm:$0xff]
  %v53 = vld [vmem:[%s0 + $0x70] sm:$0xff]
  %v54 = vld [vmem:[%s0 + $0x78] sm:$0xff]
  %v55 = vld [vmem:[%s0 + $0x80] sm:$0xff]
  %v56 = vld [vmem:[%s0 + $0x88] sm:$0xff]
  %v57 = vld [vmem:[%s0 + $0x90] sm:$0xff]
  %v58 = vld [vmem:[%s0 + $0x98] sm:$0xff]
  %v59 = vld [vmem:[%s0 + $0xa0] sm:$0xff]
  %v60 = vld [vmem:[%s0 + $0xa8] sm:$0xff]
  %v61 = vld [vmem:[%s0 + $0xb0] sm:$0xff]
  %v62 = vld [vmem:[%s0 + $0xb8] sm:$0xff]
  %v63 = vld [vmem:[%s0 + $0xc0] sm:$0xff]
  %v64 = vld [vmem:[%s0 + $0xc8] sm:$0xff]
  %v65 = vld [vmem:[%s0 + $0xd0] sm:$0xff]
  %v66 = vld [vmem:[%s0 + $0xd8] sm:$0xff]
  %v67 = vld [vmem:[%s0 + $0xe0] sm:$0xff]
  %v68 = vld [vmem:[%s0 + $0xe8] sm:$0xff]
  %v69 = vld [vmem:[%s0 + $0xf0] sm:$0xff]
  %v70 = vld [vmem:[%s0 + $0xf8] sm:$0xff]
  %v71 = vld [vmem:[%s0 + $0x100] sm:$0xff]
  %v72 = vld [vmem:[%s0 + $0x108] sm:$0xff]
  %v73 = vld [vmem:[%s0 + $0x110] sm:$0xff]
  %v74 = vld [vmem:[%s0 + $0x118] sm:$0xff]
  %v75 = vld [vmem:[%s0 + $0x120] sm:$0xff]
  %v76 = vld [vmem:[%s0 + $0x128] sm:$0xff]
  %v77 = vld [vmem:[%s0 + $0x130] sm:$0xff]
  %v78 = vld [vmem:[%s0 + $0x138] sm:$0xff]
  %v79 = vld [vmem:[%s0 + $0x140] sm:$0xff]
  %v80 = vld [vmem:[%s0 + $0x148] sm:$0xff]
  %v81 = vld [vmem:[%s0 + $0x150] sm:$0xff]
  %v82 = vld [vmem:[%s0 + $0x158] sm:$0xff]
  %v83 = vld [vmem:[%s0 + $0x160] sm:$0xff]
  %v84 = vld [vmem:[%s0 + $0x168] sm:$0xff]
  %v85 = vld [vmem:[%s0 + $0x170] sm:$0xff]
  %v86 = vld [vmem:[%s0 + $0x178] sm:$0xff]
  %v87 = vld [vmem:[%s0 + $0x180] sm:$0xff]
  %v88 = vld [vmem:[%s0 + $0x188] sm:$0xff]
  %v89 = vld [vmem:[%s0 + $0x190] sm:$0xff]
  %v90 = vld [vmem:[%s0 + $0x198] sm:$0xff]
  %v91 = vld [vmem:[%s0 + $0x1a0] sm:$0xff]
  %v92 = vld [vmem:[%s0 + $0x1a8] sm:$0xff]
  %v93 = vld [vmem:[%s0 + $0x1b0] sm:$0xff]
  %v94 = vld [vmem:[%s0 + $0x1b8] sm:$0xff]
  %v95 = vpack.c.bf16 %v40, %v39
  %v96 = vpack.c.bf16 %v42, %v41
  %v97 = vpack.c.bf16 %v44, %v43
  %v98 = vpack.c.bf16 %v46, %v45
  %v99 = vpack.c.bf16 %v48, %v47
  %v100 = vpack.c.bf16 %v50, %v49
  %v101 = vpack.c.bf16 %v52, %v51
  %v102 = vpack.c.bf16 %v54, %v53
  %v103 = vpack.c.bf16 %v56, %v55
  %v104 = vpack.c.bf16 %v58, %v57
  %v105 = vpack.c.bf16 %v60, %v59
  %v106 = vpack.c.bf16 %v62, %v61
  %v107 = vpack.c.bf16 %v64, %v63
  %v108 = vpack.c.bf16 %v66, %v65
  %v109 = vpack.c.bf16 %v68, %v67
  %v110 = vpack.c.bf16 %v70, %v69
  %v111 = vpack.c.bf16 %v72, %v71
  %v112 = vpack.c.bf16 %v74, %v73
  %v113 = vpack.c.bf16 %v76, %v75
  %v114 = vpack.c.bf16 %v78, %v77
  %v115 = vpack.c.bf16 %v80, %v79
  %v116 = vpack.c.bf16 %v82, %v81
  %v117 = vpack.c.bf16 %v84, %v83
  %v118 = vpack.c.bf16 %v86, %v85
  %v119 = vpack.c.bf16 %v88, %v87
  %v120 = vpack.c.bf16 %v90, %v89
  %v121 = vpack.c.bf16 %v92, %v91
  %v122 = vpack.c.bf16 %v94, %v93
  %147 = vrot.lane.b32.xlu0 %v96, 28
  %v148 = vpop.permute.xlu0 %147
  %149 = vrot.lane.b32.xlu0 %v97, 28
  %v150 = vpop.permute.xlu0 %149
  %151 = vrot.lane.b32.xlu0 %v98, 28
  %v152 = vpop.permute.xlu0 %151
  %153 = vrot.lane.b32.xlu0 %v99, 28
  %v154 = vpop.permute.xlu0 %153
  %155 = vrot.lane.b32.xlu0 %v100, 28
  %v156 = vpop.permute.xlu0 %155
  %157 = vrot.lane.b32.xlu0 %v101, 28
  %v158 = vpop.permute.xlu0 %157
  %159 = vrot.lane.b32.xlu0 %v102, 28
  %v160 = vpop.permute.xlu0 %159
  %161 = vrot.lane.b32.xlu0 %v103, 28
  %v162 = vpop.permute.xlu0 %161
  %163 = vrot.lane.b32.xlu0 %v104, 28
  %v164 = vpop.permute.xlu0 %163
  %165 = vrot.lane.b32.xlu0 %v105, 28
  %v166 = vpop.permute.xlu0 %165
  %167 = vrot.lane.b32.xlu0 %v106, 28
  %v168 = vpop.permute.xlu0 %167
  %169 = vrot.lane.b32.xlu0 %v107, 28
  %v170 = vpop.permute.xlu0 %169
  %171 = vrot.lane.b32.xlu0 %v108, 28
  %v172 = vpop.permute.xlu0 %171
  %173 = vrot.lane.b32.xlu0 %v109, 28
  %v174 = vpop.permute.xlu0 %173
  %175 = vrot.lane.b32.xlu0 %v110, 28
  %v176 = vpop.permute.xlu0 %175
  %177 = vrot.lane.b32.xlu0 %v111, 28
  %v178 = vpop.permute.xlu0 %177
  %179 = vrot.lane.b32.xlu0 %v112, 28
  %v180 = vpop.permute.xlu0 %179
  %181 = vrot.lane.b32.xlu0 %v113, 28
  %v182 = vpop.permute.xlu0 %181
  %183 = vrot.lane.b32.xlu0 %v114, 28
  %v184 = vpop.permute.xlu0 %183
  %185 = vrot.lane.b32.xlu0 %v115, 28
  %v186 = vpop.permute.xlu0 %185
  %187 = vrot.lane.b32.xlu0 %v116, 28
  %v188 = vpop.permute.xlu0 %187
  %189 = vrot.lane.b32.xlu0 %v117, 28
  %v190 = vpop.permute.xlu0 %189
  %191 = vrot.lane.b32.xlu0 %v118, 28
  %v192 = vpop.permute.xlu0 %191
  %193 = vrot.lane.b32.xlu0 %v119, 28
  %v194 = vpop.permute.xlu0 %193
  %196 = vrot.lane.b32.xlu0 %v97, 56
  %v197 = vpop.permute.xlu0 %196
  %198 = vrot.lane.b32.xlu0 %v98, 56
  %v199 = vpop.permute.xlu0 %198
  %200 = vrot.lane.b32.xlu0 %v99, 56
  %v201 = vpop.permute.xlu0 %200
  %202 = vrot.lane.b32.xlu0 %v100, 56
  %v203 = vpop.permute.xlu0 %202
  %204 = vrot.lane.b32.xlu0 %v101, 56
  %v205 = vpop.permute.xlu0 %204
  %206 = vrot.lane.b32.xlu0 %v102, 56
  %v207 = vpop.permute.xlu0 %206
  %208 = vrot.lane.b32.xlu0 %v103, 56
  %v209 = vpop.permute.xlu0 %208
  %210 = vrot.lane.b32.xlu0 %v104, 56
  %v211 = vpop.permute.xlu0 %210
  %212 = vrot.lane.b32.xlu0 %v105, 56
  %v213 = vpop.permute.xlu0 %212
  %214 = vrot.lane.b32.xlu0 %v106, 56
  %v215 = vpop.permute.xlu0 %214
  %216 = vrot.lane.b32.xlu0 %v107, 56
  %v217 = vpop.permute.xlu0 %216
  %218 = vrot.lane.b32.xlu0 %v108, 56
  %v219 = vpop.permute.xlu0 %218
  %220 = vrot.lane.b32.xlu0 %v109, 56
  %v221 = vpop.permute.xlu0 %220
  %222 = vrot.lane.b32.xlu0 %v110, 56
  %v223 = vpop.permute.xlu0 %222
  %224 = vrot.lane.b32.xlu0 %v111, 56
  %v225 = vpop.permute.xlu0 %224
  %226 = vrot.lane.b32.xlu0 %v112, 56
  %v227 = vpop.permute.xlu0 %226
  %228 = vrot.lane.b32.xlu0 %v113, 56
  %v229 = vpop.permute.xlu0 %228
  %230 = vrot.lane.b32.xlu0 %v114, 56
  %v231 = vpop.permute.xlu0 %230
  %232 = vrot.lane.b32.xlu0 %v115, 56
  %v233 = vpop.permute.xlu0 %232
  %234 = vrot.lane.b32.xlu0 %v116, 56
  %v235 = vpop.permute.xlu0 %234
  %236 = vrot.lane.b32.xlu0 %v117, 56
  %v237 = vpop.permute.xlu0 %236
  %238 = vrot.lane.b32.xlu0 %v118, 56
  %v239 = vpop.permute.xlu0 %238
  %240 = vrot.lane.b32.xlu0 %v119, 56
  %v241 = vpop.permute.xlu0 %240
  %242 = vrot.lane.b32.xlu0 %v120, 56
  %v243 = vpop.permute.xlu0 %242
  %245 = vrot.lane.b32.xlu0 %v98, 84
  %v246 = vpop.permute.xlu0 %245
  %247 = vrot.lane.b32.xlu0 %v99, 84
  %v248 = vpop.permute.xlu0 %247
  %249 = vrot.lane.b32.xlu0 %v100, 84
  %v250 = vpop.permute.xlu0 %249
  %251 = vrot.lane.b32.xlu0 %v101, 84
  %v252 = vpop.permute.xlu0 %251
  %253 = vrot.lane.b32.xlu0 %v102, 84
  %v254 = vpop.permute.xlu0 %253
  %255 = vrot.lane.b32.xlu0 %v103, 84
  %v256 = vpop.permute.xlu0 %255
  %257 = vrot.lane.b32.xlu0 %v104, 84
  %v258 = vpop.permute.xlu0 %257
  %259 = vrot.lane.b32.xlu0 %v105, 84
  %v260 = vpop.permute.xlu0 %259
  %261 = vrot.lane.b32.xlu0 %v106, 84
  %v262 = vpop.permute.xlu0 %261
  %263 = vrot.lane.b32.xlu0 %v107, 84
  %v264 = vpop.permute.xlu0 %263
  %265 = vrot.lane.b32.xlu0 %v108, 84
  %v266 = vpop.permute.xlu0 %265
  %267 = vrot.lane.b32.xlu0 %v109, 84
  %v268 = vpop.permute.xlu0 %267
  %269 = vrot.lane.b32.xlu0 %v110, 84
  %v270 = vpop.permute.xlu0 %269
  %271 = vrot.lane.b32.xlu0 %v111, 84
  %v272 = vpop.permute.xlu0 %271
  %273 = vrot.lane.b32.xlu0 %v112, 84
  %v274 = vpop.permute.xlu0 %273
  %275 = vrot.lane.b32.xlu0 %v113, 84
  %v276 = vpop.permute.xlu0 %275
  %277 = vrot.lane.b32.xlu0 %v114, 84
  %v278 = vpop.permute.xlu0 %277
  %279 = vrot.lane.b32.xlu0 %v115, 84
  %v280 = vpop.permute.xlu0 %279
  %281 = vrot.lane.b32.xlu0 %v116, 84
  %v282 = vpop.permute.xlu0 %281
  %283 = vrot.lane.b32.xlu0 %v117, 84
  %v284 = vpop.permute.xlu0 %283
  %285 = vrot.lane.b32.xlu0 %v118, 84
  %v286 = vpop.permute.xlu0 %285
  %287 = vrot.lane.b32.xlu0 %v119, 84
  %v288 = vpop.permute.xlu0 %287
  %289 = vrot.lane.b32.xlu0 %v120, 84
  %v290 = vpop.permute.xlu0 %289
  %291 = vrot.lane.b32.xlu0 %v121, 84
  %v292 = vpop.permute.xlu0 %291
  %294 = vrot.lane.b32.xlu0 %v99, 112
  %v295 = vpop.permute.xlu0 %294
  %296 = vrot.lane.b32.xlu0 %v100, 112
  %v297 = vpop.permute.xlu0 %296
  %298 = vrot.lane.b32.xlu0 %v101, 112
  %v299 = vpop.permute.xlu0 %298
  %300 = vrot.lane.b32.xlu0 %v102, 112
  %v301 = vpop.permute.xlu0 %300
  %302 = vrot.lane.b32.xlu0 %v103, 112
  %v303 = vpop.permute.xlu0 %302
  %304 = vrot.lane.b32.xlu0 %v104, 112
  %v305 = vpop.permute.xlu0 %304
  %306 = vrot.lane.b32.xlu0 %v105, 112
  %v307 = vpop.permute.xlu0 %306
  %308 = vrot.lane.b32.xlu0 %v106, 112
  %v309 = vpop.permute.xlu0 %308
  %310 = vrot.lane.b32.xlu0 %v107, 112
  %v311 = vpop.permute.xlu0 %310
  %312 = vrot.lane.b32.xlu0 %v108, 112
  %v313 = vpop.permute.xlu0 %312
  %314 = vrot.lane.b32.xlu0 %v109, 112
  %v315 = vpop.permute.xlu0 %314
  %316 = vrot.lane.b32.xlu0 %v110, 112
  %v317 = vpop.permute.xlu0 %316
  %318 = vrot.lane.b32.xlu0 %v111, 112
  %v319 = vpop.permute.xlu0 %318
  %320 = vrot.lane.b32.xlu0 %v112, 112
  %v321 = vpop.permute.xlu0 %320
  %322 = vrot.lane.b32.xlu0 %v113, 112
  %v323 = vpop.permute.xlu0 %322
  %324 = vrot.lane.b32.xlu0 %v114, 112
  %v325 = vpop.permute.xlu0 %324
  %326 = vrot.lane.b32.xlu0 %v115, 112
  %v327 = vpop.permute.xlu0 %326
  %328 = vrot.lane.b32.xlu0 %v116, 112
  %v329 = vpop.permute.xlu0 %328
  %330 = vrot.lane.b32.xlu0 %v117, 112
  %v331 = vpop.permute.xlu0 %330
  %332 = vrot.lane.b32.xlu0 %v118, 112
  %v333 = vpop.permute.xlu0 %332
  %334 = vrot.lane.b32.xlu0 %v119, 112
  %v335 = vpop.permute.xlu0 %334
  %336 = vrot.lane.b32.xlu0 %v120, 112
  %v337 = vpop.permute.xlu0 %336
  %338 = vrot.lane.b32.xlu0 %v121, 112
  %v339 = vpop.permute.xlu0 %338
  %340 = vrot.lane.b32.xlu0 %v122, 112
  %v341 = vpop.permute.xlu0 %340
  %vm342 = vcmask 228352
  %v345 = vsel %vm342, %v95, %v148
  %v348 = vsel %vm342, %v96, %v150
  %v351 = vsel %vm342, %v97, %v152
  %v354 = vsel %vm342, %v98, %v154
  %v357 = vsel %vm342, %v99, %v156
  %v360 = vsel %vm342, %v100, %v158
  %v363 = vsel %vm342, %v101, %v160
  %v366 = vsel %vm342, %v102, %v162
  %v369 = vsel %vm342, %v103, %v164
  %v372 = vsel %vm342, %v104, %v166
  %v375 = vsel %vm342, %v105, %v168
  %v378 = vsel %vm342, %v106, %v170
  %v381 = vsel %vm342, %v107, %v172
  %v384 = vsel %vm342, %v108, %v174
  %v387 = vsel %vm342, %v109, %v176
  %v390 = vsel %vm342, %v110, %v178
  %v393 = vsel %vm342, %v111, %v180
  %v396 = vsel %vm342, %v112, %v182
  %v399 = vsel %vm342, %v113, %v184
  %v402 = vsel %vm342, %v114, %v186
  %v405 = vsel %vm342, %v115, %v188
  %v408 = vsel %vm342, %v116, %v190
  %v411 = vsel %vm342, %v117, %v192
  %v414 = vsel %vm342, %v118, %v194
  %vm415 = vcmask 457728
  %v417 = vsel %vm415, %v345, %v197
  %v419 = vsel %vm415, %v348, %v199
  %v421 = vsel %vm415, %v351, %v201
  %v423 = vsel %vm415, %v354, %v203
  %v425 = vsel %vm415, %v357, %v205
  %v427 = vsel %vm415, %v360, %v207
  %v429 = vsel %vm415, %v363, %v209
  %v431 = vsel %vm415, %v366, %v211
  %v433 = vsel %vm415, %v369, %v213
  %v435 = vsel %vm415, %v372, %v215
  %v437 = vsel %vm415, %v375, %v217
  %v439 = vsel %vm415, %v378, %v219
  %v441 = vsel %vm415, %v381, %v221
  %v443 = vsel %vm415, %v384, %v223
  %v445 = vsel %vm415, %v387, %v225
  %v447 = vsel %vm415, %v390, %v227
  %v449 = vsel %vm415, %v393, %v229
  %v451 = vsel %vm415, %v396, %v231
  %v453 = vsel %vm415, %v399, %v233
  %v455 = vsel %vm415, %v402, %v235
  %v457 = vsel %vm415, %v405, %v237
  %v459 = vsel %vm415, %v408, %v239
  %v461 = vsel %vm415, %v411, %v241
  %v463 = vsel %vm415, %v414, %v243
  %vm464 = vcmask 687104
  %v466 = vsel %vm464, %v417, %v246
  %v468 = vsel %vm464, %v419, %v248
  %v470 = vsel %vm464, %v421, %v250
  %v472 = vsel %vm464, %v423, %v252
  %v474 = vsel %vm464, %v425, %v254
  %v476 = vsel %vm464, %v427, %v256
  %v478 = vsel %vm464, %v429, %v258
  %v480 = vsel %vm464, %v431, %v260
  %v482 = vsel %vm464, %v433, %v262
  %v484 = vsel %vm464, %v435, %v264
  %v486 = vsel %vm464, %v437, %v266
  %v488 = vsel %vm464, %v439, %v268
  %v490 = vsel %vm464, %v441, %v270
  %v492 = vsel %vm464, %v443, %v272
  %v494 = vsel %vm464, %v445, %v274
  %v496 = vsel %vm464, %v447, %v276
  %v498 = vsel %vm464, %v449, %v278
  %v500 = vsel %vm464, %v451, %v280
  %v502 = vsel %vm464, %v453, %v282
  %v504 = vsel %vm464, %v455, %v284
  %v506 = vsel %vm464, %v457, %v286
  %v508 = vsel %vm464, %v459, %v288
  %v510 = vsel %vm464, %v461, %v290
  %v512 = vsel %vm464, %v463, %v292
  %vm513 = vcmask 916480
  %v515 = vsel %vm513, %v466, %v295
  %v518 = vsel %vm513, %v468, %v297
  %v521 = vsel %vm513, %v470, %v299
  %v524 = vsel %vm513, %v472, %v301
  %v527 = vsel %vm513, %v474, %v303
  %v530 = vsel %vm513, %v476, %v305
  %v533 = vsel %vm513, %v478, %v307
  %v536 = vsel %vm513, %v480, %v309
  %v539 = vsel %vm513, %v482, %v311
  %v542 = vsel %vm513, %v484, %v313
  %v545 = vsel %vm513, %v486, %v315
  %v548 = vsel %vm513, %v488, %v317
  %v551 = vsel %vm513, %v490, %v319
  %v554 = vsel %vm513, %v492, %v321
  %v557 = vsel %vm513, %v494, %v323
  %v560 = vsel %vm513, %v496, %v325
  %v563 = vsel %vm513, %v498, %v327
  %v566 = vsel %vm513, %v500, %v329
  %v569 = vsel %vm513, %v502, %v331
  %v572 = vsel %vm513, %v504, %v333
  %v575 = vsel %vm513, %v506, %v335
  %v578 = vsel %vm513, %v508, %v337
  %v581 = vsel %vm513, %v510, %v339
  %v584 = vsel %vm513, %v512, %v341
  %v586 = vld [vmem:[%s1] sm:$0xff]
  %v587 = vld [vmem:[%s1 + $0x8] sm:$0xff]
  %v588 = vld [vmem:[%s1 + $0x10] sm:$0xff]
  %v589 = vld [vmem:[%s1 + $0x18] sm:$0xff]
  %v590 = vld [vmem:[%s1 + $0x20] sm:$0xff]
  %v591 = vld [vmem:[%s1 + $0x28] sm:$0xff]
  %v592 = vld [vmem:[%s1 + $0x30] sm:$0xff]
  %v593 = vld [vmem:[%s1 + $0x38] sm:$0xff]
  %v594 = vld [vmem:[%s1 + $0x40] sm:$0xff]
  %v595 = vld [vmem:[%s1 + $0x48] sm:$0xff]
  %v596 = vld [vmem:[%s1 + $0x50] sm:$0xff]
  %v597 = vld [vmem:[%s1 + $0x58] sm:$0xff]
  %v598 = vld [vmem:[%s1 + $0x60] sm:$0xff]
  %v599 = vld [vmem:[%s1 + $0x68] sm:$0xff]
  %v600 = vld [vmem:[%s1 + $0x70] sm:$0xff]
  %v601 = vld [vmem:[%s1 + $0x78] sm:$0xff]
  %v602 = vld [vmem:[%s1 + $0x80] sm:$0xff]
  %v603 = vld [vmem:[%s1 + $0x88] sm:$0x33]
  %v622 = vunpack.c.l.b16 %v586
  %v623 = vunpack.c.h.b16 %v586
  %v624 = vunpack.c.l.b16 %v587
  %v625 = vunpack.c.h.b16 %v587
  %v626 = vunpack.c.l.b16 %v588
  %v627 = vunpack.c.h.b16 %v588
  %v628 = vunpack.c.l.b16 %v589
  %v629 = vunpack.c.h.b16 %v589
  %v630 = vunpack.c.l.b16 %v590
  %v631 = vunpack.c.h.b16 %v590
  %v632 = vunpack.c.l.b16 %v591
  %v633 = vunpack.c.h.b16 %v591
  %v634 = vunpack.c.l.b16 %v592
  %v635 = vunpack.c.h.b16 %v592
  %v636 = vunpack.c.l.b16 %v593
  %v637 = vunpack.c.h.b16 %v593
  %v638 = vunpack.c.l.b16 %v594
  %v639 = vunpack.c.h.b16 %v594
  %v640 = vunpack.c.l.b16 %v595
  %v641 = vunpack.c.h.b16 %v595
  %v642 = vunpack.c.l.b16 %v596
  %v643 = vunpack.c.h.b16 %v596
  %v644 = vunpack.c.l.b16 %v597
  %v645 = vunpack.c.h.b16 %v597
  %v646 = vunpack.c.l.b16 %v598
  %v647 = vunpack.c.h.b16 %v598
  %v648 = vunpack.c.l.b16 %v599
  %v649 = vunpack.c.h.b16 %v599
  %v650 = vunpack.c.l.b16 %v600
  %v651 = vunpack.c.h.b16 %v600
  %v652 = vunpack.c.l.b16 %v601
  %v653 = vunpack.c.h.b16 %v601
  %v654 = vunpack.c.l.b16 %v602
  %v655 = vunpack.c.h.b16 %v602
  %v656 = vunpack.c.l.b16 %v603
  %v657 = vunpack.c.h.b16 %v603
  %v658 = vpack.c.b16 %v624, %v622
  %v659 = vpack.c.b16 %v625, %v623
  %v660 = vpack.c.b16 %v628, %v626
  %v661 = vpack.c.b16 %v629, %v627
  %v662 = vpack.c.b16 %v632, %v630
  %v663 = vpack.c.b16 %v633, %v631
  %v664 = vpack.c.b16 %v636, %v634
  %v665 = vpack.c.b16 %v637, %v635
  %v666 = vpack.c.b16 %v640, %v638
  %v667 = vpack.c.b16 %v641, %v639
  %v668 = vpack.c.b16 %v644, %v642
  %v669 = vpack.c.b16 %v645, %v643
  %v670 = vpack.c.b16 %v648, %v646
  %v671 = vpack.c.b16 %v649, %v647
  %v672 = vpack.c.b16 %v652, %v650
  %v673 = vpack.c.b16 %v653, %v651
  %v674 = vpack.c.b16 %v656, %v654
  %v675 = vpack.c.b16 %v657, %v655
  %vm692 = vcmask 97280
  %v693 = vsel %vm692, %v295, 0
  %v695 = vsel %vm692, %v297, 0
  %v697 = vsel %vm692, %v299, 0
  %v699 = vsel %vm692, %v301, 0
  %v701 = vsel %vm692, %v303, 0
  %v703 = vsel %vm692, %v305, 0
  %v705 = vsel %vm692, %v307, 0
  %v707 = vsel %vm692, %v309, 0
  %v709 = vsel %vm692, %v311, 0
  %v711 = vsel %vm692, %v313, 0
  %v713 = vsel %vm692, %v315, 0
  %v715 = vsel %vm692, %v317, 0
  %v717 = vsel %vm692, %v319, 0
  %v719 = vsel %vm692, %v321, 0
  %v721 = vsel %vm692, %v323, 0
  %v723 = vsel %vm692, %v325, 0
  %v725 = vsel %vm692, %v327, 0
  %v727 = vsel %vm692, %v329, 0
  %v729 = vsel %vm692, %v331, 0
  %v731 = vsel %vm692, %v333, 0
  %v733 = vsel %vm692, %v335, 0
  %v735 = vsel %vm692, %v337, 0
  %v737 = vsel %vm692, %v339, 0
  %v739 = vsel %vm692, %v341, 0
  %vm741 = vcmask 1045504
  %v743 = vsel %vm741, %v674, 0
  %v746 = vsel %vm741, %v675, 0
  %748 = vmatprep.subr.bf16.mxu0 %v659
  %749 = vmatpush1.bf16.msra.mxu0 %v658
  %750 = vmatprep.subr.bf16.mxu0 %v661
  %751 = vmatpush1.bf16.msra.mxu0 %v660
  %752 = vmatprep.subr.bf16.mxu0 %v663
  %753 = vmatpush1.bf16.msra.mxu0 %v662
  %754 = vmatprep.subr.bf16.mxu0 %v665
  %755 = vmatpush1.bf16.msra.mxu0 %v664
  %756 = vmatprep.subr.bf16.mxu0 %v667
  %757 = vmatpush1.bf16.msra.mxu0 %v666
  %758 = vmatprep.subr.bf16.mxu0 %v669
  %759 = vmatpush1.bf16.msra.mxu0 %v668
  %760 = vmatprep.subr.bf16.mxu0 %v671
  %761 = vmatpush1.bf16.msra.mxu0 %v670
  %762 = vmatprep.subr.bf16.mxu0 %v673
  %763 = vmatpush1.bf16.msra.mxu0 %v672
  %764 = vmatprep.subr.bf16.mxu0 %v746
  %765 = vmatpush1.bf16.msra.mxu0 %v743
  %766 = vmatprep.subr.bf16.mxu0 0
  %767 = vmatpush1.bf16.msra.mxu0 0
  %768 = vmatprep.subr.bf16.mxu0 0
  %769 = vmatpush1.bf16.msra.mxu0 0
  %770 = vmatprep.subr.bf16.mxu0 0
  %771 = vmatpush1.bf16.msra.mxu0 0
  %772 = vmatprep.subr.bf16.mxu0 0
  %773 = vmatpush1.bf16.msra.mxu0 0
  %774 = vmatprep.subr.bf16.mxu0 0
  %775 = vmatpush1.bf16.msra.mxu0 0
  %776 = vmatprep.subr.bf16.mxu0 0
  %777 = vmatpush1.bf16.msra.mxu0 0
  %778 = vmatprep.subr.bf16.mxu0 0
  %779 = vmatpush1.bf16.msra.mxu0 0
  %780 = vmatprep.mubr.bf16.mxu0 %v693
  %781 = vmatmul.mubr.bf16.gmra.mrb[0].mxu0 %v515
  %v782 = vpop.f32.mrb[0].mxu0
  %v783 = vadd.f32 0.0, %v782
  %v784 = vpop.f32.mrb[0].mxu0
  %v785 = vadd.f32 0.0, %v784
  %v786 = vpop.f32.mrb[0].mxu0
  %v787 = vadd.f32 0.0, %v786
  %v788 = vpop.f32.mrb[0].mxu0
  %v789 = vadd.f32 0.0, %v788
  %790 = vmatprep.mubr.bf16.mxu0 %v695
  %791 = vmatmul.mubr.bf16.gmra.mrb[0].mxu0 %v518
  %v792 = vpop.f32.mrb[0].mxu0
  %v793 = vadd.f32 0.0, %v792
  %v794 = vpop.f32.mrb[0].mxu0
  %v795 = vadd.f32 0.0, %v794
  %v796 = vpop.f32.mrb[0].mxu0
  %v797 = vadd.f32 0.0, %v796
  %v798 = vpop.f32.mrb[0].mxu0
  %v799 = vadd.f32 0.0, %v798
  %800 = vmatprep.mubr.bf16.mxu0 %v697
  %801 = vmatmul.mubr.bf16.gmra.mrb[0].mxu0 %v521
  %v802 = vpop.f32.mrb[0].mxu0
  %v803 = vadd.f32 0.0, %v802
  %v804 = vpop.f32.mrb[0].mxu0
  %v805 = vadd.f32 0.0, %v804
  %v806 = vpop.f32.mrb[0].mxu0
  %v807 = vadd.f32 0.0, %v806
  %v808 = vpop.f32.mrb[0].mxu0
  %v809 = vadd.f32 0.0, %v808
  %810 = vmatprep.mubr.bf16.mxu0 %v699
  %811 = vmatmul.mubr.bf16.gmra.mrb[0].mxu0 %v524
  %v812 = vpop.f32.mrb[0].mxu0
  %v813 = vadd.f32 0.0, %v812
  %v814 = vpop.f32.mrb[0].mxu0
  %v815 = vadd.f32 0.0, %v814
  %v816 = vpop.f32.mrb[0].mxu0
  %v817 = vadd.f32 0.0, %v816
  %v818 = vpop.f32.mrb[0].mxu0
  %v819 = vadd.f32 0.0, %v818
  %820 = vmatprep.mubr.bf16.mxu0 %v701
  %821 = vmatmul.mubr.bf16.gmra.mrb[0].mxu0 %v527
  %v822 = vpop.f32.mrb[0].mxu0
  %v823 = vadd.f32 0.0, %v822
  %v824 = vpop.f32.mrb[0].mxu0
  %v825 = vadd.f32 0.0, %v824
  %v826 = vpop.f32.mrb[0].mxu0
  %v827 = vadd.f32 0.0, %v826
  %v828 = vpop.f32.mrb[0].mxu0
  %v829 = vadd.f32 0.0, %v828
  %830 = vmatprep.mubr.bf16.mxu0 %v703
  %831 = vmatmul.mubr.bf16.gmra.mrb[0].mxu0 %v530
  %v832 = vpop.f32.mrb[0].mxu0
  %v833 = vadd.f32 0.0, %v832
  %v834 = vpop.f32.mrb[0].mxu0
  %v835 = vadd.f32 0.0, %v834
  %v836 = vpop.f32.mrb[0].mxu0
  %v837 = vadd.f32 0.0, %v836
  %v838 = vpop.f32.mrb[0].mxu0
  %v839 = vadd.f32 0.0, %v838
  %840 = vmatprep.mubr.bf16.mxu0 %v705
  %841 = vmatmul.mubr.bf16.gmra.mrb[0].mxu0 %v533
  %v842 = vpop.f32.mrb[0].mxu0
  %v843 = vadd.f32 0.0, %v842
  %v844 = vpop.f32.mrb[0].mxu0
  %v845 = vadd.f32 0.0, %v844
  %v846 = vpop.f32.mrb[0].mxu0
  %v847 = vadd.f32 0.0, %v846
  %v848 = vpop.f32.mrb[0].mxu0
  %v849 = vadd.f32 0.0, %v848
  %850 = vmatprep.mubr.bf16.mxu0 %v707
  %851 = vmatmul.mubr.bf16.gmra.mrb[0].mxu0 %v536
  %v852 = vpop.f32.mrb[0].mxu0
  %v853 = vadd.f32 0.0, %v852
  %v854 = vpop.f32.mrb[0].mxu0
  %v855 = vadd.f32 0.0, %v854
  %v856 = vpop.f32.mrb[0].mxu0
  %v857 = vadd.f32 0.0, %v856
  %v858 = vpop.f32.mrb[0].mxu0
  %v859 = vadd.f32 0.0, %v858
  %860 = vmatprep.mubr.bf16.mxu0 %v709
  %861 = vmatmul.mubr.bf16.gmra.mrb[0].mxu0 %v539
  %v862 = vpop.f32.mrb[0].mxu0
  %v863 = vadd.f32 0.0, %v862
  %v864 = vpop.f32.mrb[0].mxu0
  %v865 = vadd.f32 0.0, %v864
  %v866 = vpop.f32.mrb[0].mxu0
  %v867 = vadd.f32 0.0, %v866
  %v868 = vpop.f32.mrb[0].mxu0
  %v869 = vadd.f32 0.0, %v868
  %870 = vmatprep.mubr.bf16.mxu0 %v711
  %871 = vmatmul.mubr.bf16.gmra.mrb[0].mxu0 %v542
  %v872 = vpop.f32.mrb[0].mxu0
  %v873 = vadd.f32 0.0, %v872
  %v874 = vpop.f32.mrb[0].mxu0
  %v875 = vadd.f32 0.0, %v874
  %v876 = vpop.f32.mrb[0].mxu0
  %v877 = vadd.f32 0.0, %v876
  %v878 = vpop.f32.mrb[0].mxu0
  %v879 = vadd.f32 0.0, %v878
  %880 = vmatprep.mubr.bf16.mxu0 %v713
  %881 = vmatmul.mubr.bf16.gmra.mrb[0].mxu0 %v545
  %v882 = vpop.f32.mrb[0].mxu0
  %v883 = vadd.f32 0.0, %v882
  %v884 = vpop.f32.mrb[0].mxu0
  %v885 = vadd.f32 0.0, %v884
  %v886 = vpop.f32.mrb[0].mxu0
  %v887 = vadd.f32 0.0, %v886
  %v888 = vpop.f32.mrb[0].mxu0
  %v889 = vadd.f32 0.0, %v888
  %890 = vmatprep.mubr.bf16.mxu0 %v715
  %891 = vmatmul.mubr.bf16.gmra.mrb[0].mxu0 %v548
  %v892 = vpop.f32.mrb[0].mxu0
  %v893 = vadd.f32 0.0, %v892
  %v894 = vpop.f32.mrb[0].mxu0
  %v895 = vadd.f32 0.0, %v894
  %v896 = vpop.f32.mrb[0].mxu0
  %v897 = vadd.f32 0.0, %v896
  %v898 = vpop.f32.mrb[0].mxu0
  %v899 = vadd.f32 0.0, %v898
  %900 = vmatprep.mubr.bf16.mxu0 %v717
  %901 = vmatmul.mubr.bf16.gmra.mrb[0].mxu0 %v551
  %v902 = vpop.f32.mrb[0].mxu0
  %v903 = vadd.f32 0.0, %v902
  %v904 = vpop.f32.mrb[0].mxu0
  %v905 = vadd.f32 0.0, %v904
  %v906 = vpop.f32.mrb[0].mxu0
  %v907 = vadd.f32 0.0, %v906
  %v908 = vpop.f32.mrb[0].mxu0
  %v909 = vadd.f32 0.0, %v908
  %910 = vmatprep.mubr.bf16.mxu0 %v719
  %911 = vmatmul.mubr.bf16.gmra.mrb[0].mxu0 %v554
  %v912 = vpop.f32.mrb[0].mxu0
  %v913 = vadd.f32 0.0, %v912
  %v914 = vpop.f32.mrb[0].mxu0
  %v915 = vadd.f32 0.0, %v914
  %v916 = vpop.f32.mrb[0].mxu0
  %v917 = vadd.f32 0.0, %v916
  %v918 = vpop.f32.mrb[0].mxu0
  %v919 = vadd.f32 0.0, %v918
  %920 = vmatprep.mubr.bf16.mxu0 %v721
  %921 = vmatmul.mubr.bf16.gmra.mrb[0].mxu0 %v557
  %v922 = vpop.f32.mrb[0].mxu0
  %v923 = vadd.f32 0.0, %v922
  %v924 = vpop.f32.mrb[0].mxu0
  %v925 = vadd.f32 0.0, %v924
  %v926 = vpop.f32.mrb[0].mxu0
  %v927 = vadd.f32 0.0, %v926
  %v928 = vpop.f32.mrb[0].mxu0
  %v929 = vadd.f32 0.0, %v928
  %930 = vmatprep.mubr.bf16.mxu0 %v723
  %931 = vmatmul.mubr.bf16.gmra.mrb[0].mxu0 %v560
  %v932 = vpop.f32.mrb[0].mxu0
  %v933 = vadd.f32 0.0, %v932
  %v934 = vpop.f32.mrb[0].mxu0
  %v935 = vadd.f32 0.0, %v934
  %v936 = vpop.f32.mrb[0].mxu0
  %v937 = vadd.f32 0.0, %v936
  %v938 = vpop.f32.mrb[0].mxu0
  %v939 = vadd.f32 0.0, %v938
  %940 = vmatprep.mubr.bf16.mxu0 %v725
  %941 = vmatmul.mubr.bf16.gmra.mrb[0].mxu0 %v563
  %v942 = vpop.f32.mrb[0].mxu0
  %v943 = vadd.f32 0.0, %v942
  %v944 = vpop.f32.mrb[0].mxu0
  %v945 = vadd.f32 0.0, %v944
  %v946 = vpop.f32.mrb[0].mxu0
  %v947 = vadd.f32 0.0, %v946
  %v948 = vpop.f32.mrb[0].mxu0
  %v949 = vadd.f32 0.0, %v948
  %950 = vmatprep.mubr.bf16.mxu0 %v727
  %951 = vmatmul.mubr.bf16.gmra.mrb[0].mxu0 %v566
  %v952 = vpop.f32.mrb[0].mxu0
  %v953 = vadd.f32 0.0, %v952
  %v954 = vpop.f32.mrb[0].mxu0
  %v955 = vadd.f32 0.0, %v954
  %v956 = vpop.f32.mrb[0].mxu0
  %v957 = vadd.f32 0.0, %v956
  %v958 = vpop.f32.mrb[0].mxu0
  %v959 = vadd.f32 0.0, %v958
  %960 = vmatprep.mubr.bf16.mxu0 %v729
  %961 = vmatmul.mubr.bf16.gmra.mrb[0].mxu0 %v569
  %v962 = vpop.f32.mrb[0].mxu0
  %v963 = vadd.f32 0.0, %v962
  %v964 = vpop.f32.mrb[0].mxu0
  %v965 = vadd.f32 0.0, %v964
  %v966 = vpop.f32.mrb[0].mxu0
  %v967 = vadd.f32 0.0, %v966
  %v968 = vpop.f32.mrb[0].mxu0
  %v969 = vadd.f32 0.0, %v968
  %970 = vmatprep.mubr.bf16.mxu0 %v731
  %971 = vmatmul.mubr.bf16.gmra.mrb[0].mxu0 %v572
  %v972 = vpop.f32.mrb[0].mxu0
  %v973 = vadd.f32 0.0, %v972
  %v974 = vpop.f32.mrb[0].mxu0
  %v975 = vadd.f32 0.0, %v974
  %v976 = vpop.f32.mrb[0].mxu0
  %v977 = vadd.f32 0.0, %v976
  %v978 = vpop.f32.mrb[0].mxu0
  %v979 = vadd.f32 0.0, %v978
  %980 = vmatprep.mubr.bf16.mxu0 %v733
  %981 = vmatmul.mubr.bf16.gmra.mrb[0].mxu0 %v575
  %v982 = vpop.f32.mrb[0].mxu0
  %v983 = vadd.f32 0.0, %v982
  %v984 = vpop.f32.mrb[0].mxu0
  %v985 = vadd.f32 0.0, %v984
  %v986 = vpop.f32.mrb[0].mxu0
  %v987 = vadd.f32 0.0, %v986
  %v988 = vpop.f32.mrb[0].mxu0
  %v989 = vadd.f32 0.0, %v988
  %990 = vmatprep.mubr.bf16.mxu0 %v735
  %991 = vmatmul.mubr.bf16.gmra.mrb[0].mxu0 %v578
  %v992 = vpop.f32.mrb[0].mxu0
  %v993 = vadd.f32 0.0, %v992
  %v994 = vpop.f32.mrb[0].mxu0
  %v995 = vadd.f32 0.0, %v994
  %v996 = vpop.f32.mrb[0].mxu0
  %v997 = vadd.f32 0.0, %v996
  %v998 = vpop.f32.mrb[0].mxu0
  %v999 = vadd.f32 0.0, %v998
  %1000 = vmatprep.mubr.bf16.mxu0 %v737
  %1001 = vmatmul.mubr.bf16.gmra.mrb[0].mxu0 %v581
  %v1002 = vpop.f32.mrb[0].mxu0
  %v1003 = vadd.f32 0.0, %v1002
  %v1004 = vpop.f32.mrb[0].mxu0
  %v1005 = vadd.f32 0.0, %v1004
  %v1006 = vpop.f32.mrb[0].mxu0
  %v1007 = vadd.f32 0.0, %v1006
  %v1008 = vpop.f32.mrb[0].mxu0
  %v1009 = vadd.f32 0.0, %v1008
  %1010 = vmatprep.mubr.bf16.mxu0 %v739
  %1011 = vmatmul.mubr.bf16.gmra.mrb[0].mxu0 %v584
  %v1012 = vpop.f32.mrb[0].mxu0
  %v1013 = vadd.f32 0.0, %v1012
  %v1014 = vpop.f32.mrb[0].mxu0
  %v1015 = vadd.f32 0.0, %v1014
  %v1016 = vpop.f32.mrb[0].mxu0
  %v1017 = vadd.f32 0.0, %v1016
  %v1018 = vpop.f32.mrb[0].mxu0
  %v1019 = vadd.f32 0.0, %v1018
  %1020 = vdwg.mxu0
  %v1021 = vld [vmem:[%s2] sm:$0xff]
  %v1022 = vld [vmem:[%s2 + $0x8] sm:$0xff]
  %v1023 = vld [vmem:[%s2 + $0x10] sm:$0xff]
  %v1024 = vld [vmem:[%s2 + $0x18] sm:$0xff]
  %v1025 = vld [vmem:[%s2 + $0x20] sm:$0xff]
  %v1026 = vld [vmem:[%s2 + $0x28] sm:$0xff]
  %v1027 = vld [vmem:[%s2 + $0x30] sm:$0xff]
  %v1028 = vld [vmem:[%s2 + $0x38] sm:$0xff]
  %v1029 = vld [vmem:[%s2 + $0x40] sm:$0xff]
  %v1030 = vld [vmem:[%s2 + $0x48] sm:$0xff]
  %v1031 = vld [vmem:[%s2 + $0x50] sm:$0xff]
  %v1032 = vld [vmem:[%s2 + $0x58] sm:$0xff]
  %v1033 = vld [vmem:[%s2 + $0x60] sm:$0xff]
  %v1034 = vld [vmem:[%s2 + $0x68] sm:$0xff]
  %v1035 = vld [vmem:[%s2 + $0x70] sm:$0xff]
  %v1036 = vld [vmem:[%s2 + $0x78] sm:$0xff]
  %v1037 = vld [vmem:[%s2 + $0x80] sm:$0xff]
  %v1038 = vld [vmem:[%s2 + $0x88] sm:$0x33]
  %v1057 = vunpack.c.l.b16 %v1021
  %v1058 = vunpack.c.h.b16 %v1021
  %v1059 = vunpack.c.l.b16 %v1022
  %v1060 = vunpack.c.h.b16 %v1022
  %v1061 = vunpack.c.l.b16 %v1023
  %v1062 = vunpack.c.h.b16 %v1023
  %v1063 = vunpack.c.l.b16 %v1024
  %v1064 = vunpack.c.h.b16 %v1024
  %v1065 = vunpack.c.l.b16 %v1025
  %v1066 = vunpack.c.h.b16 %v1025
  %v1067 = vunpack.c.l.b16 %v1026
  %v1068 = vunpack.c.h.b16 %v1026
  %v1069 = vunpack.c.l.b16 %v1027
  %v1070 = vunpack.c.h.b16 %v1027
  %v1071 = vunpack.c.l.b16 %v1028
  %v1072 = vunpack.c.h.b16 %v1028
  %v1073 = vunpack.c.l.b16 %v1029
  %v1074 = vunpack.c.h.b16 %v1029
  %v1075 = vunpack.c.l.b16 %v1030
  %v1076 = vunpack.c.h.b16 %v1030
  %v1077 = vunpack.c.l.b16 %v1031
  %v1078 = vunpack.c.h.b16 %v1031
  %v1079 = vunpack.c.l.b16 %v1032
  %v1080 = vunpack.c.h.b16 %v1032
  %v1081 = vunpack.c.l.b16 %v1033
  %v1082 = vunpack.c.h.b16 %v1033
  %v1083 = vunpack.c.l.b16 %v1034
  %v1084 = vunpack.c.h.b16 %v1034
  %v1085 = vunpack.c.l.b16 %v1035
  %v1086 = vunpack.c.h.b16 %v1035
  %v1087 = vunpack.c.l.b16 %v1036
  %v1088 = vunpack.c.h.b16 %v1036
  %v1089 = vunpack.c.l.b16 %v1037
  %v1090 = vunpack.c.h.b16 %v1037
  %v1091 = vunpack.c.l.b16 %v1038
  %v1092 = vunpack.c.h.b16 %v1038
  %v1093 = vpack.c.b16 %v1059, %v1057
  %v1094 = vpack.c.b16 %v1060, %v1058
  %v1095 = vpack.c.b16 %v1063, %v1061
  %v1096 = vpack.c.b16 %v1064, %v1062
  %v1097 = vpack.c.b16 %v1067, %v1065
  %v1098 = vpack.c.b16 %v1068, %v1066
  %v1099 = vpack.c.b16 %v1071, %v1069
  %v1100 = vpack.c.b16 %v1072, %v1070
  %v1101 = vpack.c.b16 %v1075, %v1073
  %v1102 = vpack.c.b16 %v1076, %v1074
  %v1103 = vpack.c.b16 %v1079, %v1077
  %v1104 = vpack.c.b16 %v1080, %v1078
  %v1105 = vpack.c.b16 %v1083, %v1081
  %v1106 = vpack.c.b16 %v1084, %v1082
  %v1107 = vpack.c.b16 %v1087, %v1085
  %v1108 = vpack.c.b16 %v1088, %v1086
  %v1109 = vpack.c.b16 %v1091, %v1089
  %v1110 = vpack.c.b16 %v1092, %v1090
  %v1128 = vsel %vm741, %v1109, 0
  %v1131 = vsel %vm741, %v1110, 0
  %1133 = vmatprep.subr.bf16.mxu0 %v1094
  %1134 = vmatpush1.bf16.msra.mxu0 %v1093
  %1135 = vmatprep.subr.bf16.mxu0 %v1096
  %1136 = vmatpush1.bf16.msra.mxu0 %v1095
  %1137 = vmatprep.subr.bf16.mxu0 %v1098
  %1138 = vmatpush1.bf16.msra.mxu0 %v1097
  %1139 = vmatprep.subr.bf16.mxu0 %v1100
  %1140 = vmatpush1.bf16.msra.mxu0 %v1099
  %1141 = vmatprep.subr.bf16.mxu0 %v1102
  %1142 = vmatpush1.bf16.msra.mxu0 %v1101
  %1143 = vmatprep.subr.bf16.mxu0 %v1104
  %1144 = vmatpush1.bf16.msra.mxu0 %v1103
  %1145 = vmatprep.subr.bf16.mxu0 %v1106
  %1146 = vmatpush1.bf16.msra.mxu0 %v1105
  %1147 = vmatprep.subr.bf16.mxu0 %v1108
  %1148 = vmatpush1.bf16.msra.mxu0 %v1107
  %1149 = vmatprep.subr.bf16.mxu0 %v1131
  %1150 = vmatpush1.bf16.msra.mxu0 %v1128
  %1151 = vmatprep.subr.bf16.mxu0 0
  %1152 = vmatpush1.bf16.msra.mxu0 0
  %1153 = vmatprep.subr.bf16.mxu0 0
  %1154 = vmatpush1.bf16.msra.mxu0 0
  %1155 = vmatprep.subr.bf16.mxu0 0
  %1156 = vmatpush1.bf16.msra.mxu0 0
  %1157 = vmatprep.subr.bf16.mxu0 0
  %1158 = vmatpush1.bf16.msra.mxu0 0
  %1159 = vmatprep.subr.bf16.mxu0 0
  %1160 = vmatpush1.bf16.msra.mxu0 0
  %1161 = vmatprep.subr.bf16.mxu0 0
  %1162 = vmatpush1.bf16.msra.mxu0 0
  %1163 = vmatprep.subr.bf16.mxu0 0
  %1164 = vmatpush1.bf16.msra.mxu0 0
  %1165 = vmatprep.mubr.bf16.mxu0 %v693
  %1166 = vmatmul.mubr.bf16.gmra.mrb[0].mxu0 %v515
  %v1167 = vpop.f32.mrb[0].mxu0
  %v1168 = vadd.f32 0.0, %v1167
  %v1169 = vpop.f32.mrb[0].mxu0
  %v1170 = vadd.f32 0.0, %v1169
  %v1171 = vpop.f32.mrb[0].mxu0
  %v1172 = vadd.f32 0.0, %v1171
  %v1173 = vpop.f32.mrb[0].mxu0
  %v1174 = vadd.f32 0.0, %v1173
  %1175 = vmatprep.mubr.bf16.mxu0 %v695
  %1176 = vmatmul.mubr.bf16.gmra.mrb[0].mxu0 %v518
  %v1177 = vpop.f32.mrb[0].mxu0
  %v1178 = vadd.f32 0.0, %v1177
  %v1179 = vpop.f32.mrb[0].mxu0
  %v1180 = vadd.f32 0.0, %v1179
  %v1181 = vpop.f32.mrb[0].mxu0
  %v1182 = vadd.f32 0.0, %v1181
  %v1183 = vpop.f32.mrb[0].mxu0
  %v1184 = vadd.f32 0.0, %v1183
  %1185 = vmatprep.mubr.bf16.mxu0 %v697
  %1186 = vmatmul.mubr.bf16.gmra.mrb[0].mxu0 %v521
  %v1187 = vpop.f32.mrb[0].mxu0
  %v1188 = vadd.f32 0.0, %v1187
  %v1189 = vpop.f32.mrb[0].mxu0
  %v1190 = vadd.f32 0.0, %v1189
  %v1191 = vpop.f32.mrb[0].mxu0
  %v1192 = vadd.f32 0.0, %v1191
  %v1193 = vpop.f32.mrb[0].mxu0
  %v1194 = vadd.f32 0.0, %v1193
  %1195 = vmatprep.mubr.bf16.mxu0 %v699
  %1196 = vmatmul.mubr.bf16.gmra.mrb[0].mxu0 %v524
  %v1197 = vpop.f32.mrb[0].mxu0
  %v1198 = vadd.f32 0.0, %v1197
  %v1199 = vpop.f32.mrb[0].mxu0
  %v1200 = vadd.f32 0.0, %v1199
  %v1201 = vpop.f32.mrb[0].mxu0
  %v1202 = vadd.f32 0.0, %v1201
  %v1203 = vpop.f32.mrb[0].mxu0
  %v1204 = vadd.f32 0.0, %v1203
  %1205 = vmatprep.mubr.bf16.mxu0 %v701
  %1206 = vmatmul.mubr.bf16.gmra.mrb[0].mxu0 %v527
  %v1207 = vpop.f32.mrb[0].mxu0
  %v1208 = vadd.f32 0.0, %v1207
  %v1209 = vpop.f32.mrb[0].mxu0
  %v1210 = vadd.f32 0.0, %v1209
  %v1211 = vpop.f32.mrb[0].mxu0
  %v1212 = vadd.f32 0.0, %v1211
  %v1213 = vpop.f32.mrb[0].mxu0
  %v1214 = vadd.f32 0.0, %v1213
  %1215 = vmatprep.mubr.bf16.mxu0 %v703
  %1216 = vmatmul.mubr.bf16.gmra.mrb[0].mxu0 %v530
  %v1217 = vpop.f32.mrb[0].mxu0
  %v1218 = vadd.f32 0.0, %v1217
  %v1219 = vpop.f32.mrb[0].mxu0
  %v1220 = vadd.f32 0.0, %v1219
  %v1221 = vpop.f32.mrb[0].mxu0
  %v1222 = vadd.f32 0.0, %v1221
  %v1223 = vpop.f32.mrb[0].mxu0
  %v1224 = vadd.f32 0.0, %v1223
  %1225 = vmatprep.mubr.bf16.mxu0 %v705
  %1226 = vmatmul.mubr.bf16.gmra.mrb[0].mxu0 %v533
  %v1227 = vpop.f32.mrb[0].mxu0
  %v1228 = vadd.f32 0.0, %v1227
  %v1229 = vpop.f32.mrb[0].mxu0
  %v1230 = vadd.f32 0.0, %v1229
  %v1231 = vpop.f32.mrb[0].mxu0
  %v1232 = vadd.f32 0.0, %v1231
  %v1233 = vpop.f32.mrb[0].mxu0
  %v1234 = vadd.f32 0.0, %v1233
  %1235 = vmatprep.mubr.bf16.mxu0 %v707
  %1236 = vmatmul.mubr.bf16.gmra.mrb[0].mxu0 %v536
  %v1237 = vpop.f32.mrb[0].mxu0
  %v1238 = vadd.f32 0.0, %v1237
  %v1239 = vpop.f32.mrb[0].mxu0
  %v1240 = vadd.f32 0.0, %v1239
  %v1241 = vpop.f32.mrb[0].mxu0
  %v1242 = vadd.f32 0.0, %v1241
  %v1243 = vpop.f32.mrb[0].mxu0
  %v1244 = vadd.f32 0.0, %v1243
  %1245 = vmatprep.mubr.bf16.mxu0 %v709
  %1246 = vmatmul.mubr.bf16.gmra.mrb[0].mxu0 %v539
  %v1247 = vpop.f32.mrb[0].mxu0
  %v1248 = vadd.f32 0.0, %v1247
  %v1249 = vpop.f32.mrb[0].mxu0
  %v1250 = vadd.f32 0.0, %v1249
  %v1251 = vpop.f32.mrb[0].mxu0
  %v1252 = vadd.f32 0.0, %v1251
  %v1253 = vpop.f32.mrb[0].mxu0
  %v1254 = vadd.f32 0.0, %v1253
  %1255 = vmatprep.mubr.bf16.mxu0 %v711
  %1256 = vmatmul.mubr.bf16.gmra.mrb[0].mxu0 %v542
  %v1257 = vpop.f32.mrb[0].mxu0
  %v1258 = vadd.f32 0.0, %v1257
  %v1259 = vpop.f32.mrb[0].mxu0
  %v1260 = vadd.f32 0.0, %v1259
  %v1261 = vpop.f32.mrb[0].mxu0
  %v1262 = vadd.f32 0.0, %v1261
  %v1263 = vpop.f32.mrb[0].mxu0
  %v1264 = vadd.f32 0.0, %v1263
  %1265 = vmatprep.mubr.bf16.mxu0 %v713
  %1266 = vmatmul.mubr.bf16.gmra.mrb[0].mxu0 %v545
  %v1267 = vpop.f32.mrb[0].mxu0
  %v1268 = vadd.f32 0.0, %v1267
  %v1269 = vpop.f32.mrb[0].mxu0
  %v1270 = vadd.f32 0.0, %v1269
  %v1271 = vpop.f32.mrb[0].mxu0
  %v1272 = vadd.f32 0.0, %v1271
  %v1273 = vpop.f32.mrb[0].mxu0
  %v1274 = vadd.f32 0.0, %v1273
  %1275 = vmatprep.mubr.bf16.mxu0 %v715
  %1276 = vmatmul.mubr.bf16.gmra.mrb[0].mxu0 %v548
  %v1277 = vpop.f32.mrb[0].mxu0
  %v1278 = vadd.f32 0.0, %v1277
  %v1279 = vpop.f32.mrb[0].mxu0
  %v1280 = vadd.f32 0.0, %v1279
  %v1281 = vpop.f32.mrb[0].mxu0
  %v1282 = vadd.f32 0.0, %v1281
  %v1283 = vpop.f32.mrb[0].mxu0
  %v1284 = vadd.f32 0.0, %v1283
  %1285 = vmatprep.mubr.bf16.mxu0 %v717
  %1286 = vmatmul.mubr.bf16.gmra.mrb[0].mxu0 %v551
  %v1287 = vpop.f32.mrb[0].mxu0
  %v1288 = vadd.f32 0.0, %v1287
  %v1289 = vpop.f32.mrb[0].mxu0
  %v1290 = vadd.f32 0.0, %v1289
  %v1291 = vpop.f32.mrb[0].mxu0
  %v1292 = vadd.f32 0.0, %v1291
  %v1293 = vpop.f32.mrb[0].mxu0
  %v1294 = vadd.f32 0.0, %v1293
  %1295 = vmatprep.mubr.bf16.mxu0 %v719
  %1296 = vmatmul.mubr.bf16.gmra.mrb[0].mxu0 %v554
  %v1297 = vpop.f32.mrb[0].mxu0
  %v1298 = vadd.f32 0.0, %v1297
  %v1299 = vpop.f32.mrb[0].mxu0
  %v1300 = vadd.f32 0.0, %v1299
  %v1301 = vpop.f32.mrb[0].mxu0
  %v1302 = vadd.f32 0.0, %v1301
  %v1303 = vpop.f32.mrb[0].mxu0
  %v1304 = vadd.f32 0.0, %v1303
  %1305 = vmatprep.mubr.bf16.mxu0 %v721
  %1306 = vmatmul.mubr.bf16.gmra.mrb[0].mxu0 %v557
  %v1307 = vpop.f32.mrb[0].mxu0
  %v1308 = vadd.f32 0.0, %v1307
  %v1309 = vpop.f32.mrb[0].mxu0
  %v1310 = vadd.f32 0.0, %v1309
  %v1311 = vpop.f32.mrb[0].mxu0
  %v1312 = vadd.f32 0.0, %v1311
  %v1313 = vpop.f32.mrb[0].mxu0
  %v1314 = vadd.f32 0.0, %v1313
  %1315 = vmatprep.mubr.bf16.mxu0 %v723
  %1316 = vmatmul.mubr.bf16.gmra.mrb[0].mxu0 %v560
  %v1317 = vpop.f32.mrb[0].mxu0
  %v1318 = vadd.f32 0.0, %v1317
  %v1319 = vpop.f32.mrb[0].mxu0
  %v1320 = vadd.f32 0.0, %v1319
  %v1321 = vpop.f32.mrb[0].mxu0
  %v1322 = vadd.f32 0.0, %v1321
  %v1323 = vpop.f32.mrb[0].mxu0
  %v1324 = vadd.f32 0.0, %v1323
  %1325 = vmatprep.mubr.bf16.mxu0 %v725
  %1326 = vmatmul.mubr.bf16.gmra.mrb[0].mxu0 %v563
  %v1327 = vpop.f32.mrb[0].mxu0
  %v1328 = vadd.f32 0.0, %v1327
  %v1329 = vpop.f32.mrb[0].mxu0
  %v1330 = vadd.f32 0.0, %v1329
  %v1331 = vpop.f32.mrb[0].mxu0
  %v1332 = vadd.f32 0.0, %v1331
  %v1333 = vpop.f32.mrb[0].mxu0
  %v1334 = vadd.f32 0.0, %v1333
  %1335 = vmatprep.mubr.bf16.mxu0 %v727
  %1336 = vmatmul.mubr.bf16.gmra.mrb[0].mxu0 %v566
  %v1337 = vpop.f32.mrb[0].mxu0
  %v1338 = vadd.f32 0.0, %v1337
  %v1339 = vpop.f32.mrb[0].mxu0
  %v1340 = vadd.f32 0.0, %v1339
  %v1341 = vpop.f32.mrb[0].mxu0
  %v1342 = vadd.f32 0.0, %v1341
  %v1343 = vpop.f32.mrb[0].mxu0
  %v1344 = vadd.f32 0.0, %v1343
  %1345 = vmatprep.mubr.bf16.mxu0 %v729
  %1346 = vmatmul.mubr.bf16.gmra.mrb[0].mxu0 %v569
  %v1347 = vpop.f32.mrb[0].mxu0
  %v1348 = vadd.f32 0.0, %v1347
  %v1349 = vpop.f32.mrb[0].mxu0
  %v1350 = vadd.f32 0.0, %v1349
  %v1351 = vpop.f32.mrb[0].mxu0
  %v1352 = vadd.f32 0.0, %v1351
  %v1353 = vpop.f32.mrb[0].mxu0
  %v1354 = vadd.f32 0.0, %v1353
  %1355 = vmatprep.mubr.bf16.mxu0 %v731
  %1356 = vmatmul.mubr.bf16.gmra.mrb[0].mxu0 %v572
  %v1357 = vpop.f32.mrb[0].mxu0
  %v1358 = vadd.f32 0.0, %v1357
  %v1359 = vpop.f32.mrb[0].mxu0
  %v1360 = vadd.f32 0.0, %v1359
  %v1361 = vpop.f32.mrb[0].mxu0
  %v1362 = vadd.f32 0.0, %v1361
  %v1363 = vpop.f32.mrb[0].mxu0
  %v1364 = vadd.f32 0.0, %v1363
  %1365 = vmatprep.mubr.bf16.mxu0 %v733
  %1366 = vmatmul.mubr.bf16.gmra.mrb[0].mxu0 %v575
  %v1367 = vpop.f32.mrb[0].mxu0
  %v1368 = vadd.f32 0.0, %v1367
  %v1369 = vpop.f32.mrb[0].mxu0
  %v1370 = vadd.f32 0.0, %v1369
  %v1371 = vpop.f32.mrb[0].mxu0
  %v1372 = vadd.f32 0.0, %v1371
  %v1373 = vpop.f32.mrb[0].mxu0
  %v1374 = vadd.f32 0.0, %v1373
  %1375 = vmatprep.mubr.bf16.mxu0 %v735
  %1376 = vmatmul.mubr.bf16.gmra.mrb[0].mxu0 %v578
  %v1377 = vpop.f32.mrb[0].mxu0
  %v1378 = vadd.f32 0.0, %v1377
  %v1379 = vpop.f32.mrb[0].mxu0
  %v1380 = vadd.f32 0.0, %v1379
  %v1381 = vpop.f32.mrb[0].mxu0
  %v1382 = vadd.f32 0.0, %v1381
  %v1383 = vpop.f32.mrb[0].mxu0
  %v1384 = vadd.f32 0.0, %v1383
  %1385 = vmatprep.mubr.bf16.mxu0 %v737
  %1386 = vmatmul.mubr.bf16.gmra.mrb[0].mxu0 %v581
  %v1387 = vpop.f32.mrb[0].mxu0
  %v1388 = vadd.f32 0.0, %v1387
  %v1389 = vpop.f32.mrb[0].mxu0
  %v1390 = vadd.f32 0.0, %v1389
  %v1391 = vpop.f32.mrb[0].mxu0
  %v1392 = vadd.f32 0.0, %v1391
  %v1393 = vpop.f32.mrb[0].mxu0
  %v1394 = vadd.f32 0.0, %v1393
  %1395 = vmatprep.mubr.bf16.mxu0 %v739
  %1396 = vmatmul.mubr.bf16.gmra.mrb[0].mxu0 %v584
  %v1397 = vpop.f32.mrb[0].mxu0
  %v1398 = vadd.f32 0.0, %v1397
  %v1399 = vpop.f32.mrb[0].mxu0
  %v1400 = vadd.f32 0.0, %v1399
  %v1401 = vpop.f32.mrb[0].mxu0
  %v1402 = vadd.f32 0.0, %v1401
  %v1403 = vpop.f32.mrb[0].mxu0
  %v1404 = vadd.f32 0.0, %v1403
  %1405 = vdwg.mxu0
  %v1406 = vmax.f32 %v783, %v1168
  %v1407 = vmax.f32 %v785, %v1170
  %v1408 = vmax.f32 %v787, %v1172
  %v1409 = vmax.f32 %v789, %v1174
  %v1410 = vmax.f32 %v793, %v1178
  %v1411 = vmax.f32 %v795, %v1180
  %v1412 = vmax.f32 %v797, %v1182
  %v1413 = vmax.f32 %v799, %v1184
  %v1414 = vmax.f32 %v803, %v1188
  %v1415 = vmax.f32 %v805, %v1190
  %v1416 = vmax.f32 %v807, %v1192
  %v1417 = vmax.f32 %v809, %v1194
  %v1418 = vmax.f32 %v813, %v1198
  %v1419 = vmax.f32 %v815, %v1200
  %v1420 = vmax.f32 %v817, %v1202
  %v1421 = vmax.f32 %v819, %v1204
  %v1422 = vmax.f32 %v823, %v1208
  %v1423 = vmax.f32 %v825, %v1210
  %v1424 = vmax.f32 %v827, %v1212
  %v1425 = vmax.f32 %v829, %v1214
  %v1426 = vmax.f32 %v833, %v1218
  %v1427 = vmax.f32 %v835, %v1220
  %v1428 = vmax.f32 %v837, %v1222
  %v1429 = vmax.f32 %v839, %v1224
  %v1430 = vmax.f32 %v843, %v1228
  %v1431 = vmax.f32 %v845, %v1230
  %v1432 = vmax.f32 %v847, %v1232
  %v1433 = vmax.f32 %v849, %v1234
  %v1434 = vmax.f32 %v853, %v1238
  %v1435 = vmax.f32 %v855, %v1240
  %v1436 = vmax.f32 %v857, %v1242
  %v1437 = vmax.f32 %v859, %v1244
  %v1438 = vmax.f32 %v863, %v1248
  %v1439 = vmax.f32 %v865, %v1250
  %v1440 = vmax.f32 %v867, %v1252
  %v1441 = vmax.f32 %v869, %v1254
  %v1442 = vmax.f32 %v873, %v1258
  %v1443 = vmax.f32 %v875, %v1260
  %v1444 = vmax.f32 %v877, %v1262
  %v1445 = vmax.f32 %v879, %v1264
  %v1446 = vmax.f32 %v883, %v1268
  %v1447 = vmax.f32 %v885, %v1270
  %v1448 = vmax.f32 %v887, %v1272
  %v1449 = vmax.f32 %v889, %v1274
  %v1450 = vmax.f32 %v893, %v1278
  %v1451 = vmax.f32 %v895, %v1280
  %v1452 = vmax.f32 %v897, %v1282
  %v1453 = vmax.f32 %v899, %v1284
  %v1454 = vmax.f32 %v903, %v1288
  %v1455 = vmax.f32 %v905, %v1290
  %v1456 = vmax.f32 %v907, %v1292
  %v1457 = vmax.f32 %v909, %v1294
  %v1458 = vmax.f32 %v913, %v1298
  %v1459 = vmax.f32 %v915, %v1300
  %v1460 = vmax.f32 %v917, %v1302
  %v1461 = vmax.f32 %v919, %v1304
  %v1462 = vmax.f32 %v923, %v1308
  %v1463 = vmax.f32 %v925, %v1310
  %v1464 = vmax.f32 %v927, %v1312
  %v1465 = vmax.f32 %v929, %v1314
  %v1466 = vmax.f32 %v933, %v1318
  %v1467 = vmax.f32 %v935, %v1320
  %v1468 = vmax.f32 %v937, %v1322
  %v1469 = vmax.f32 %v939, %v1324
  %v1470 = vmax.f32 %v943, %v1328
  %v1471 = vmax.f32 %v945, %v1330
  %v1472 = vmax.f32 %v947, %v1332
  %v1473 = vmax.f32 %v949, %v1334
  %v1474 = vmax.f32 %v953, %v1338
  %v1475 = vmax.f32 %v955, %v1340
  %v1476 = vmax.f32 %v957, %v1342
  %v1477 = vmax.f32 %v959, %v1344
  %v1478 = vmax.f32 %v963, %v1348
  %v1479 = vmax.f32 %v965, %v1350
  %v1480 = vmax.f32 %v967, %v1352
  %v1481 = vmax.f32 %v969, %v1354
  %v1482 = vmax.f32 %v973, %v1358
  %v1483 = vmax.f32 %v975, %v1360
  %v1484 = vmax.f32 %v977, %v1362
  %v1485 = vmax.f32 %v979, %v1364
  %v1486 = vmax.f32 %v983, %v1368
  %v1487 = vmax.f32 %v985, %v1370
  %v1488 = vmax.f32 %v987, %v1372
  %v1489 = vmax.f32 %v989, %v1374
  %v1490 = vmax.f32 %v993, %v1378
  %v1491 = vmax.f32 %v995, %v1380
  %v1492 = vmax.f32 %v997, %v1382
  %v1493 = vmax.f32 %v999, %v1384
  %v1494 = vmax.f32 %v1003, %v1388
  %v1495 = vmax.f32 %v1005, %v1390
  %v1496 = vmax.f32 %v1007, %v1392
  %v1497 = vmax.f32 %v1009, %v1394
  %v1498 = vmax.f32 %v1013, %v1398
  %v1499 = vmax.f32 %v1015, %v1400
  %v1500 = vmax.f32 %v1017, %v1402
  %v1501 = vmax.f32 %v1019, %v1404
  %v1502 = vmax.f32 %v1406, %v1410
  %v1503 = vmax.f32 %v1407, %v1411
  %v1504 = vmax.f32 %v1408, %v1412
  %v1505 = vmax.f32 %v1409, %v1413
  %v1506 = vmax.f32 %v1414, %v1418
  %v1507 = vmax.f32 %v1415, %v1419
  %v1508 = vmax.f32 %v1416, %v1420
  %v1509 = vmax.f32 %v1417, %v1421
  %v1510 = vmax.f32 %v1422, %v1426
  %v1511 = vmax.f32 %v1423, %v1427
  %v1512 = vmax.f32 %v1424, %v1428
  %v1513 = vmax.f32 %v1425, %v1429
  %v1514 = vmax.f32 %v1430, %v1434
  %v1515 = vmax.f32 %v1431, %v1435
  %v1516 = vmax.f32 %v1432, %v1436
  %v1517 = vmax.f32 %v1433, %v1437
  %v1518 = vmax.f32 %v1438, %v1442
  %v1519 = vmax.f32 %v1439, %v1443
  %v1520 = vmax.f32 %v1440, %v1444
  %v1521 = vmax.f32 %v1441, %v1445
  %v1522 = vmax.f32 %v1446, %v1450
  %v1523 = vmax.f32 %v1447, %v1451
  %v1524 = vmax.f32 %v1448, %v1452
  %v1525 = vmax.f32 %v1449, %v1453
  %v1526 = vmax.f32 %v1454, %v1458
  %v1527 = vmax.f32 %v1455, %v1459
  %v1528 = vmax.f32 %v1456, %v1460
  %v1529 = vmax.f32 %v1457, %v1461
  %v1530 = vmax.f32 %v1462, %v1466
  %v1531 = vmax.f32 %v1463, %v1467
  %v1532 = vmax.f32 %v1464, %v1468
  %v1533 = vmax.f32 %v1465, %v1469
  %v1534 = vmax.f32 %v1470, %v1474
  %v1535 = vmax.f32 %v1471, %v1475
  %v1536 = vmax.f32 %v1472, %v1476
  %v1537 = vmax.f32 %v1473, %v1477
  %v1538 = vmax.f32 %v1478, %v1482
  %v1539 = vmax.f32 %v1479, %v1483
  %v1540 = vmax.f32 %v1480, %v1484
  %v1541 = vmax.f32 %v1481, %v1485
  %v1542 = vmax.f32 %v1486, %v1490
  %v1543 = vmax.f32 %v1487, %v1491
  %v1544 = vmax.f32 %v1488, %v1492
  %v1545 = vmax.f32 %v1489, %v1493
  %v1546 = vmax.f32 %v1494, %v1498
  %v1547 = vmax.f32 %v1495, %v1499
  %v1548 = vmax.f32 %v1496, %v1500
  %v1549 = vmax.f32 %v1497, %v1501
  %v1550 = vld [vmem:[%s3] sm:$0x3]
  %v1552 = vlaneseq
  %v1553 = vshrl.u32 %v1552, 7
  %v1554 = vsub.s32 0, %v1553
  %v1555 = vrot.slane %v1550, %v1554
  %v1556 = vlaneseq
  %v1557 = vshrl.u32 %v1556, 7
  %v1558 = vsub.s32 1, %v1557
  %v1559 = vrot.slane %v1550, %v1558
  %v1562 = vadd.f32 %v1502, %v1555
  %v1563 = vadd.f32 %v1503, %v1559
  %v1564 = vadd.f32 %v1504, %v1555
  %v1565 = vadd.f32 %v1505, %v1559
  %v1566 = vadd.f32 %v1506, %v1555
  %v1567 = vadd.f32 %v1507, %v1559
  %v1568 = vadd.f32 %v1508, %v1555
  %v1569 = vadd.f32 %v1509, %v1559
  %v1570 = vadd.f32 %v1510, %v1555
  %v1571 = vadd.f32 %v1511, %v1559
  %v1572 = vadd.f32 %v1512, %v1555
  %v1573 = vadd.f32 %v1513, %v1559
  %v1574 = vadd.f32 %v1514, %v1555
  %v1575 = vadd.f32 %v1515, %v1559
  %v1576 = vadd.f32 %v1516, %v1555
  %v1577 = vadd.f32 %v1517, %v1559
  %v1578 = vadd.f32 %v1518, %v1555
  %v1579 = vadd.f32 %v1519, %v1559
  %v1580 = vadd.f32 %v1520, %v1555
  %v1581 = vadd.f32 %v1521, %v1559
  %v1582 = vadd.f32 %v1522, %v1555
  %v1583 = vadd.f32 %v1523, %v1559
  %v1584 = vadd.f32 %v1524, %v1555
  %v1585 = vadd.f32 %v1525, %v1559
  %v1586 = vadd.f32 %v1526, %v1555
  %v1587 = vadd.f32 %v1527, %v1559
  %v1588 = vadd.f32 %v1528, %v1555
  %v1589 = vadd.f32 %v1529, %v1559
  %v1590 = vadd.f32 %v1530, %v1555
  %v1591 = vadd.f32 %v1531, %v1559
  %v1592 = vadd.f32 %v1532, %v1555
  %v1593 = vadd.f32 %v1533, %v1559
  %v1594 = vadd.f32 %v1534, %v1555
  %v1595 = vadd.f32 %v1535, %v1559
  %v1596 = vadd.f32 %v1536, %v1555
  %v1597 = vadd.f32 %v1537, %v1559
  %v1598 = vadd.f32 %v1538, %v1555
  %v1599 = vadd.f32 %v1539, %v1559
  %v1600 = vadd.f32 %v1540, %v1555
  %v1601 = vadd.f32 %v1541, %v1559
  %v1602 = vadd.f32 %v1542, %v1555
  %v1603 = vadd.f32 %v1543, %v1559
  %v1604 = vadd.f32 %v1544, %v1555
  %v1605 = vadd.f32 %v1545, %v1559
  %v1606 = vadd.f32 %v1546, %v1555
  %v1607 = vadd.f32 %v1547, %v1559
  %v1608 = vadd.f32 %v1548, %v1555
  %v1609 = vadd.f32 %v1549, %v1559
  %v1610 = vmax.f32 %v1562, 0.0
  %v1611 = vmax.f32 %v1563, 0.0
  %v1612 = vmax.f32 %v1564, 0.0
  %v1613 = vmax.f32 %v1565, 0.0
  %v1614 = vmax.f32 %v1566, 0.0
  %v1615 = vmax.f32 %v1567, 0.0
  %v1616 = vmax.f32 %v1568, 0.0
  %v1617 = vmax.f32 %v1569, 0.0
  %v1618 = vmax.f32 %v1570, 0.0
  %v1619 = vmax.f32 %v1571, 0.0
  %v1620 = vmax.f32 %v1572, 0.0
  %v1621 = vmax.f32 %v1573, 0.0
  %v1622 = vmax.f32 %v1574, 0.0
  %v1623 = vmax.f32 %v1575, 0.0
  %v1624 = vmax.f32 %v1576, 0.0
  %v1625 = vmax.f32 %v1577, 0.0
  %v1626 = vmax.f32 %v1578, 0.0
  %v1627 = vmax.f32 %v1579, 0.0
  %v1628 = vmax.f32 %v1580, 0.0
  %v1629 = vmax.f32 %v1581, 0.0
  %v1630 = vmax.f32 %v1582, 0.0
  %v1631 = vmax.f32 %v1583, 0.0
  %v1632 = vmax.f32 %v1584, 0.0
  %v1633 = vmax.f32 %v1585, 0.0
  %v1634 = vmax.f32 %v1586, 0.0
  %v1635 = vmax.f32 %v1587, 0.0
  %v1636 = vmax.f32 %v1588, 0.0
  %v1637 = vmax.f32 %v1589, 0.0
  %v1638 = vmax.f32 %v1590, 0.0
  %v1639 = vmax.f32 %v1591, 0.0
  %v1640 = vmax.f32 %v1592, 0.0
  %v1641 = vmax.f32 %v1593, 0.0
  %v1642 = vmax.f32 %v1594, 0.0
  %v1643 = vmax.f32 %v1595, 0.0
  %v1644 = vmax.f32 %v1596, 0.0
  %v1645 = vmax.f32 %v1597, 0.0
  %v1646 = vmax.f32 %v1598, 0.0
  %v1647 = vmax.f32 %v1599, 0.0
  %v1648 = vmax.f32 %v1600, 0.0
  %v1649 = vmax.f32 %v1601, 0.0
  %v1650 = vmax.f32 %v1602, 0.0
  %v1651 = vmax.f32 %v1603, 0.0
  %v1652 = vmax.f32 %v1604, 0.0
  %v1653 = vmax.f32 %v1605, 0.0
  %v1654 = vmax.f32 %v1606, 0.0
  %v1655 = vmax.f32 %v1607, 0.0
  %v1656 = vmax.f32 %v1608, 0.0
  %v1657 = vmax.f32 %v1609, 0.0
  %v1658 = vpack.c.bf16 %v1612, %v1610
  %v1659 = vpack.c.bf16 %v1613, %v1611
  %v1660 = vpack.c.bf16 %v1616, %v1614
  %v1661 = vpack.c.bf16 %v1617, %v1615
  %v1662 = vpack.c.bf16 %v1620, %v1618
  %v1663 = vpack.c.bf16 %v1621, %v1619
  %v1664 = vpack.c.bf16 %v1624, %v1622
  %v1665 = vpack.c.bf16 %v1625, %v1623
  %v1666 = vpack.c.bf16 %v1628, %v1626
  %v1667 = vpack.c.bf16 %v1629, %v1627
  %v1668 = vpack.c.bf16 %v1632, %v1630
  %v1669 = vpack.c.bf16 %v1633, %v1631
  %v1670 = vpack.c.bf16 %v1636, %v1634
  %v1671 = vpack.c.bf16 %v1637, %v1635
  %v1672 = vpack.c.bf16 %v1640, %v1638
  %v1673 = vpack.c.bf16 %v1641, %v1639
  %v1674 = vpack.c.bf16 %v1644, %v1642
  %v1675 = vpack.c.bf16 %v1645, %v1643
  %v1676 = vpack.c.bf16 %v1648, %v1646
  %v1677 = vpack.c.bf16 %v1649, %v1647
  %v1678 = vpack.c.bf16 %v1652, %v1650
  %v1679 = vpack.c.bf16 %v1653, %v1651
  %v1680 = vpack.c.bf16 %v1656, %v1654
  %v1681 = vpack.c.bf16 %v1657, %v1655
  %1698 = vrot.lane.b32.xlu0 %v1660, 52
  %v1699 = vpop.permute.xlu0 %1698
  %1700 = vrot.lane.b32.xlu0 %v1661, 52
  %v1701 = vpop.permute.xlu0 %1700
  %1702 = vrot.lane.b32.xlu0 %v1662, 52
  %v1703 = vpop.permute.xlu0 %1702
  %1704 = vrot.lane.b32.xlu0 %v1663, 52
  %v1705 = vpop.permute.xlu0 %1704
  %1706 = vrot.lane.b32.xlu0 %v1664, 52
  %v1707 = vpop.permute.xlu0 %1706
  %1708 = vrot.lane.b32.xlu0 %v1665, 52
  %v1709 = vpop.permute.xlu0 %1708
  %1710 = vrot.lane.b32.xlu0 %v1666, 52
  %v1711 = vpop.permute.xlu0 %1710
  %1712 = vrot.lane.b32.xlu0 %v1667, 52
  %v1713 = vpop.permute.xlu0 %1712
  %1714 = vrot.lane.b32.xlu0 %v1668, 52
  %v1715 = vpop.permute.xlu0 %1714
  %1716 = vrot.lane.b32.xlu0 %v1669, 52
  %v1717 = vpop.permute.xlu0 %1716
  %1718 = vrot.lane.b32.xlu0 %v1670, 52
  %v1719 = vpop.permute.xlu0 %1718
  %1720 = vrot.lane.b32.xlu0 %v1671, 52
  %v1721 = vpop.permute.xlu0 %1720
  %1722 = vrot.lane.b32.xlu0 %v1672, 52
  %v1723 = vpop.permute.xlu0 %1722
  %1724 = vrot.lane.b32.xlu0 %v1673, 52
  %v1725 = vpop.permute.xlu0 %1724
  %1726 = vrot.lane.b32.xlu0 %v1674, 52
  %v1727 = vpop.permute.xlu0 %1726
  %1728 = vrot.lane.b32.xlu0 %v1675, 52
  %v1729 = vpop.permute.xlu0 %1728
  %vm1730 = vcmask 424960
  %v1731 = vsel %vm1730, %v1699, %v1701
  %v1732 = vsel %vm1730, %v1703, %v1705
  %v1733 = vsel %vm1730, %v1707, %v1709
  %v1734 = vsel %vm1730, %v1711, %v1713
  %v1735 = vsel %vm1730, %v1715, %v1717
  %v1736 = vsel %vm1730, %v1719, %v1721
  %v1737 = vsel %vm1730, %v1723, %v1725
  %v1738 = vsel %vm1730, %v1727, %v1729
  %1741 = vrot.lane.b32.xlu0 %v1662, 104
  %v1742 = vpop.permute.xlu0 %1741
  %1743 = vrot.lane.b32.xlu0 %v1663, 104
  %v1744 = vpop.permute.xlu0 %1743
  %1745 = vrot.lane.b32.xlu0 %v1664, 104
  %v1746 = vpop.permute.xlu0 %1745
  %1747 = vrot.lane.b32.xlu0 %v1665, 104
  %v1748 = vpop.permute.xlu0 %1747
  %1749 = vrot.lane.b32.xlu0 %v1666, 104
  %v1750 = vpop.permute.xlu0 %1749
  %1751 = vrot.lane.b32.xlu0 %v1667, 104
  %v1752 = vpop.permute.xlu0 %1751
  %1753 = vrot.lane.b32.xlu0 %v1668, 104
  %v1754 = vpop.permute.xlu0 %1753
  %1755 = vrot.lane.b32.xlu0 %v1669, 104
  %v1756 = vpop.permute.xlu0 %1755
  %1757 = vrot.lane.b32.xlu0 %v1670, 104
  %v1758 = vpop.permute.xlu0 %1757
  %1759 = vrot.lane.b32.xlu0 %v1671, 104
  %v1760 = vpop.permute.xlu0 %1759
  %1761 = vrot.lane.b32.xlu0 %v1672, 104
  %v1762 = vpop.permute.xlu0 %1761
  %1763 = vrot.lane.b32.xlu0 %v1673, 104
  %v1764 = vpop.permute.xlu0 %1763
  %1765 = vrot.lane.b32.xlu0 %v1674, 104
  %v1766 = vpop.permute.xlu0 %1765
  %1767 = vrot.lane.b32.xlu0 %v1675, 104
  %v1768 = vpop.permute.xlu0 %1767
  %1769 = vrot.lane.b32.xlu0 %v1676, 104
  %v1770 = vpop.permute.xlu0 %1769
  %1771 = vrot.lane.b32.xlu0 %v1677, 104
  %v1772 = vpop.permute.xlu0 %1771
  %vm1773 = vcmask 850944
  %v1774 = vsel %vm1773, %v1742, %v1744
  %v1775 = vsel %vm1773, %v1746, %v1748
  %v1776 = vsel %vm1773, %v1750, %v1752
  %v1777 = vsel %vm1773, %v1754, %v1756
  %v1778 = vsel %vm1773, %v1758, %v1760
  %v1779 = vsel %vm1773, %v1762, %v1764
  %v1780 = vsel %vm1773, %v1766, %v1768
  %v1781 = vsel %vm1773, %v1770, %v1772
  %1792 = vrot.lane.b32.xlu0 %v1664, 28
  %v1793 = vpop.permute.xlu0 %1792
  %1794 = vrot.lane.b32.xlu0 %v1665, 28
  %v1795 = vpop.permute.xlu0 %1794
  %1796 = vrot.lane.b32.xlu0 %v1666, 28
  %v1797 = vpop.permute.xlu0 %1796
  %1798 = vrot.lane.b32.xlu0 %v1667, 28
  %v1799 = vpop.permute.xlu0 %1798
  %1800 = vrot.lane.b32.xlu0 %v1668, 28
  %v1801 = vpop.permute.xlu0 %1800
  %1802 = vrot.lane.b32.xlu0 %v1669, 28
  %v1803 = vpop.permute.xlu0 %1802
  %1804 = vrot.lane.b32.xlu0 %v1670, 28
  %v1805 = vpop.permute.xlu0 %1804
  %1806 = vrot.lane.b32.xlu0 %v1671, 28
  %v1807 = vpop.permute.xlu0 %1806
  %1808 = vrot.lane.b32.xlu0 %v1672, 28
  %v1809 = vpop.permute.xlu0 %1808
  %1810 = vrot.lane.b32.xlu0 %v1673, 28
  %v1811 = vpop.permute.xlu0 %1810
  %1812 = vrot.lane.b32.xlu0 %v1674, 28
  %v1813 = vpop.permute.xlu0 %1812
  %1814 = vrot.lane.b32.xlu0 %v1675, 28
  %v1815 = vpop.permute.xlu0 %1814
  %1816 = vrot.lane.b32.xlu0 %v1676, 28
  %v1817 = vpop.permute.xlu0 %1816
  %1818 = vrot.lane.b32.xlu0 %v1677, 28
  %v1819 = vpop.permute.xlu0 %1818
  %1820 = vrot.lane.b32.xlu0 %v1678, 28
  %v1821 = vpop.permute.xlu0 %1820
  %1822 = vrot.lane.b32.xlu0 %v1679, 28
  %v1823 = vpop.permute.xlu0 %1822
  %vm1824 = vcmask 228352
  %v1825 = vsel %vm1824, %v1793, %v1795
  %v1826 = vsel %vm1824, %v1797, %v1799
  %v1827 = vsel %vm1824, %v1801, %v1803
  %v1828 = vsel %vm1824, %v1805, %v1807
  %v1829 = vsel %vm1824, %v1809, %v1811
  %v1830 = vsel %vm1824, %v1813, %v1815
  %v1831 = vsel %vm1824, %v1817, %v1819
  %v1832 = vsel %vm1824, %v1821, %v1823
  %1835 = vrot.lane.b32.xlu0 %v1666, 80
  %v1836 = vpop.permute.xlu0 %1835
  %1837 = vrot.lane.b32.xlu0 %v1667, 80
  %v1838 = vpop.permute.xlu0 %1837
  %1839 = vrot.lane.b32.xlu0 %v1668, 80
  %v1840 = vpop.permute.xlu0 %1839
  %1841 = vrot.lane.b32.xlu0 %v1669, 80
  %v1842 = vpop.permute.xlu0 %1841
  %1843 = vrot.lane.b32.xlu0 %v1670, 80
  %v1844 = vpop.permute.xlu0 %1843
  %1845 = vrot.lane.b32.xlu0 %v1671, 80
  %v1846 = vpop.permute.xlu0 %1845
  %1847 = vrot.lane.b32.xlu0 %v1672, 80
  %v1848 = vpop.permute.xlu0 %1847
  %1849 = vrot.lane.b32.xlu0 %v1673, 80
  %v1850 = vpop.permute.xlu0 %1849
  %1851 = vrot.lane.b32.xlu0 %v1674, 80
  %v1852 = vpop.permute.xlu0 %1851
  %1853 = vrot.lane.b32.xlu0 %v1675, 80
  %v1854 = vpop.permute.xlu0 %1853
  %1855 = vrot.lane.b32.xlu0 %v1676, 80
  %v1856 = vpop.permute.xlu0 %1855
  %1857 = vrot.lane.b32.xlu0 %v1677, 80
  %v1858 = vpop.permute.xlu0 %1857
  %1859 = vrot.lane.b32.xlu0 %v1678, 80
  %v1860 = vpop.permute.xlu0 %1859
  %1861 = vrot.lane.b32.xlu0 %v1679, 80
  %v1862 = vpop.permute.xlu0 %1861
  %1863 = vrot.lane.b32.xlu0 %v1680, 80
  %v1864 = vpop.permute.xlu0 %1863
  %1865 = vrot.lane.b32.xlu0 %v1681, 80
  %v1866 = vpop.permute.xlu0 %1865
  %vm1867 = vcmask 654336
  %v1868 = vsel %vm1867, %v1836, %v1838
  %v1869 = vsel %vm1867, %v1840, %v1842
  %v1870 = vsel %vm1867, %v1844, %v1846
  %v1871 = vsel %vm1867, %v1848, %v1850
  %v1872 = vsel %vm1867, %v1852, %v1854
  %v1873 = vsel %vm1867, %v1856, %v1858
  %v1874 = vsel %vm1867, %v1860, %v1862
  %v1875 = vsel %vm1867, %v1864, %v1866
  %vm1884 = vcmask 424960
  %v1887 = vsel %vm1884, %v1659, %v1699
  %v1891 = vsel %vm1884, %v1661, %v1703
  %v1895 = vsel %vm1884, %v1663, %v1707
  %v1899 = vsel %vm1884, %v1665, %v1711
  %v1903 = vsel %vm1884, %v1667, %v1715
  %v1907 = vsel %vm1884, %v1669, %v1719
  %v1911 = vsel %vm1884, %v1671, %v1723
  %v1915 = vsel %vm1884, %v1673, %v1727
  %vm1917 = vcmask 850944
  %v1920 = vsel %vm1917, %v1731, %v1742
  %v1924 = vsel %vm1917, %v1732, %v1746
  %v1928 = vsel %vm1917, %v1733, %v1750
  %v1932 = vsel %vm1917, %v1734, %v1754
  %v1936 = vsel %vm1917, %v1735, %v1758
  %v1940 = vsel %vm1917, %v1736, %v1762
  %v1944 = vsel %vm1917, %v1737, %v1766
  %v1948 = vsel %vm1917, %v1738, %v1770
  %v1952 = vsel %vm342, %v1744, %v1793
  %v1956 = vsel %vm342, %v1748, %v1797
  %v1960 = vsel %vm342, %v1752, %v1801
  %v1964 = vsel %vm342, %v1756, %v1805
  %v1968 = vsel %vm342, %v1760, %v1809
  %v1972 = vsel %vm342, %v1764, %v1813
  %v1976 = vsel %vm342, %v1768, %v1817
  %v1980 = vsel %vm342, %v1772, %v1821
  %vm1982 = vcmask 654336
  %v1985 = vsel %vm1982, %v1825, %v1836
  %v1989 = vsel %vm1982, %v1826, %v1840
  %v1993 = vsel %vm1982, %v1827, %v1844
  %v1997 = vsel %vm1982, %v1828, %v1848
  %v2001 = vsel %vm1982, %v1829, %v1852
  %v2005 = vsel %vm1982, %v1830, %v1856
  %v2009 = vsel %vm1982, %v1831, %v1860
  %v2013 = vsel %vm1982, %v1832, %v1864
  %v2015 = vld [vmem:[%s4] sm:$0xf]
  %v2016 = vld [vmem:[%s4 + $0x4] sm:$0xf]
  %v2017 = vld [vmem:[%s4 + $0x8] sm:$0xf]
  %v2018 = vld [vmem:[%s4 + $0xc] sm:$0xf]
  %v2019 = vld [vmem:[%s4 + $0x10] sm:$0xf]
  %v2020 = vld [vmem:[%s4 + $0x14] sm:$0xf]
  %v2021 = vld [vmem:[%s4 + $0x18] sm:$0xf]
  %v2022 = vld [vmem:[%s4 + $0x1c] sm:$0xf]
  %v2023 = vld [vmem:[%s4 + $0x20] sm:$0xf]
  %v2024 = vld [vmem:[%s4 + $0x24] sm:$0xf]
  %v2025 = vld [vmem:[%s4 + $0x28] sm:$0xf]
  %v2026 = vld [vmem:[%s4 + $0x2c] sm:$0xf]
  %v2027 = vld [vmem:[%s4 + $0x30] sm:$0xf]
  %v2028 = vld [vmem:[%s4 + $0x34] sm:$0xf]
  %v2029 = vld [vmem:[%s4 + $0x38] sm:$0xf]
  %v2030 = vld [vmem:[%s4 + $0x3c] sm:$0xf]
  %v2031 = vld [vmem:[%s4 + $0x40] sm:$0xf]
  %v2032 = vld [vmem:[%s4 + $0x44] sm:$0xf]
  %v2033 = vld [vmem:[%s4 + $0x48] sm:$0xf]
  %v2034 = vld [vmem:[%s4 + $0x4c] sm:$0xf]
  %v2035 = vld [vmem:[%s4 + $0x50] sm:$0xf]
  %v2036 = vld [vmem:[%s4 + $0x54] sm:$0xf]
  %v2037 = vld [vmem:[%s4 + $0x58] sm:$0xf]
  %v2038 = vld [vmem:[%s4 + $0x5c] sm:$0xf]
  %v2039 = vld [vmem:[%s4 + $0x60] sm:$0xf]
  %v2040 = vld [vmem:[%s4 + $0x64] sm:$0xf]
  %v2041 = vld [vmem:[%s4 + $0x68] sm:$0xf]
  %v2042 = vld [vmem:[%s4 + $0x6c] sm:$0xf]
  %v2043 = vld [vmem:[%s4 + $0x70] sm:$0xf]
  %v2044 = vld [vmem:[%s4 + $0x74] sm:$0xf]
  %v2045 = vld [vmem:[%s4 + $0x78] sm:$0xf]
  %v2046 = vld [vmem:[%s4 + $0x7c] sm:$0xf]
  %v2047 = vld [vmem:[%s4 + $0x80] sm:$0xf]
  %v2048 = vld [vmem:[%s4 + $0x84] sm:$0xf]
  %v2049 = vld [vmem:[%s4 + $0x88] sm:$0xf]
  %v2050 = vld [vmem:[%s4 + $0x8c] sm:$0xf]
  %v2051 = vld [vmem:[%s4 + $0x90] sm:$0xf]
  %v2052 = vld [vmem:[%s4 + $0x94] sm:$0xf]
  %v2053 = vld [vmem:[%s4 + $0x98] sm:$0xf]
  %v2054 = vld [vmem:[%s4 + $0x9c] sm:$0xf]
  %v2055 = vld [vmem:[%s4 + $0xa0] sm:$0xf]
  %v2056 = vld [vmem:[%s4 + $0xa4] sm:$0xf]
  %v2057 = vld [vmem:[%s4 + $0xa8] sm:$0xf]
  %v2058 = vld [vmem:[%s4 + $0xac] sm:$0xf]
  %v2059 = vld [vmem:[%s4 + $0xb0] sm:$0xf]
  %v2060 = vld [vmem:[%s4 + $0xb4] sm:$0xf]
  %v2061 = vld [vmem:[%s4 + $0xb8] sm:$0xf]
  %v2062 = vld [vmem:[%s4 + $0xbc] sm:$0xf]
  %v2063 = vld [vmem:[%s4 + $0xc0] sm:$0xf]
  %v2064 = vld [vmem:[%s4 + $0xc4] sm:$0xf]
  %v2065 = vld [vmem:[%s4 + $0xc8] sm:$0xf]
  %v2066 = vld [vmem:[%s4 + $0xcc] sm:$0xf]
  %v2067 = vld [vmem:[%s4 + $0xd0] sm:$0xf]
  %v2068 = vld [vmem:[%s4 + $0xd4] sm:$0xf]
  %v2069 = vld [vmem:[%s4 + $0xd8] sm:$0xf]
  %v2070 = vld [vmem:[%s4 + $0xdc] sm:$0xf]
  %v2071 = vld [vmem:[%s4 + $0xe0] sm:$0xf]
  %v2072 = vld [vmem:[%s4 + $0xe4] sm:$0xf]
  %v2073 = vld [vmem:[%s4 + $0xe8] sm:$0xf]
  %v2074 = vld [vmem:[%s4 + $0xec] sm:$0xf]
  %v2075 = vld [vmem:[%s4 + $0xf0] sm:$0xf]
  %v2076 = vld [vmem:[%s4 + $0xf4] sm:$0xf]
  %v2077 = vld [vmem:[%s4 + $0xf8] sm:$0xf]
  %v2078 = vld [vmem:[%s4 + $0xfc] sm:$0xf]
  %v2079 = vld [vmem:[%s4 + $0x100] sm:$0xf]
  %v2080 = vld [vmem:[%s4 + $0x104] sm:$0xf]
  %v2081 = vld [vmem:[%s4 + $0x108] sm:$0xf]
  %v2082 = vld [vmem:[%s4 + $0x10c] sm:$0xf]
  %v2083 = vld [vmem:[%s4 + $0x110] sm:$0xf]
  %v2084 = vld [vmem:[%s4 + $0x114] sm:$0xf]
  %v2085 = vld [vmem:[%s4 + $0x118] sm:$0xf]
  %v2086 = vld [vmem:[%s4 + $0x11c] sm:$0xf]
  %v2087 = vld [vmem:[%s4 + $0x120] sm:$0xf]
  %v2088 = vld [vmem:[%s4 + $0x124] sm:$0xf]
  %v2089 = vld [vmem:[%s4 + $0x128] sm:$0xf]
  %v2090 = vld [vmem:[%s4 + $0x12c] sm:$0xf]
  %v2091 = vld [vmem:[%s4 + $0x130] sm:$0xf]
  %v2092 = vld [vmem:[%s4 + $0x134] sm:$0xf]
  %v2093 = vld [vmem:[%s4 + $0x138] sm:$0xf]
  %v2094 = vld [vmem:[%s4 + $0x13c] sm:$0xf]
  %v2095 = vld [vmem:[%s4 + $0x140] sm:$0xf]
  %v2096 = vld [vmem:[%s4 + $0x144] sm:$0xf]
  %v2097 = vld [vmem:[%s4 + $0x148] sm:$0xf]
  %v2098 = vld [vmem:[%s4 + $0x14c] sm:$0xf]
  %v2099 = vld [vmem:[%s4 + $0x150] sm:$0xf]
  %v2100 = vld [vmem:[%s4 + $0x154] sm:$0xf]
  %v2101 = vld [vmem:[%s4 + $0x158] sm:$0xf]
  %v2102 = vld [vmem:[%s4 + $0x15c] sm:$0xf]
  %v2103 = vld [vmem:[%s4 + $0x160] sm:$0xf]
  %v2104 = vld [vmem:[%s4 + $0x164] sm:$0xf]
  %v2105 = vld [vmem:[%s4 + $0x168] sm:$0xf]
  %v2106 = vld [vmem:[%s4 + $0x16c] sm:$0xf]
  %v2107 = vld [vmem:[%s4 + $0x170] sm:$0xf]
  %v2108 = vld [vmem:[%s4 + $0x174] sm:$0xf]
  %v2109 = vld [vmem:[%s4 + $0x178] sm:$0xf]
  %v2110 = vld [vmem:[%s4 + $0x17c] sm:$0xf]
  %v2111 = vld [vmem:[%s4 + $0x180] sm:$0xf]
  %v2112 = vld [vmem:[%s4 + $0x184] sm:$0xf]
  %v2113 = vld [vmem:[%s4 + $0x188] sm:$0xf]
  %v2114 = vld [vmem:[%s4 + $0x18c] sm:$0xf]
  %v2115 = vld [vmem:[%s4 + $0x190] sm:$0xf]
  %v2116 = vld [vmem:[%s4 + $0x194] sm:$0xf]
  %v2117 = vld [vmem:[%s4 + $0x198] sm:$0xf]
  %v2118 = vld [vmem:[%s4 + $0x19c] sm:$0xf]
  %v2119 = vld [vmem:[%s4 + $0x1a0] sm:$0xf]
  %v2120 = vld [vmem:[%s4 + $0x1a4] sm:$0xf]
  %v2121 = vld [vmem:[%s4 + $0x1a8] sm:$0xf]
  %v2122 = vld [vmem:[%s4 + $0x1ac] sm:$0xf]
  %v2123 = vld [vmem:[%s4 + $0x1b0] sm:$0xf]
  %v2124 = vld [vmem:[%s4 + $0x1b4] sm:$0xf]
  %v2125 = vld [vmem:[%s4 + $0x1b8] sm:$0xf]
  %v2126 = vld [vmem:[%s4 + $0x1bc] sm:$0xf]
  %v2127 = vld [vmem:[%s4 + $0x1c0] sm:$0x3]
  %v2241 = vunpack.c.l.b16 %v2015
  %v2242 = vunpack.c.l.b16 %v2016
  %v2243 = vunpack.c.l.b16 %v2017
  %v2244 = vunpack.c.l.b16 %v2018
  %v2245 = vunpack.c.l.b16 %v2019
  %v2246 = vunpack.c.l.b16 %v2020
  %v2247 = vunpack.c.l.b16 %v2021
  %v2248 = vunpack.c.l.b16 %v2022
  %v2249 = vunpack.c.l.b16 %v2023
  %v2250 = vunpack.c.l.b16 %v2024
  %v2251 = vunpack.c.l.b16 %v2025
  %v2252 = vunpack.c.l.b16 %v2026
  %v2253 = vunpack.c.l.b16 %v2027
  %v2254 = vunpack.c.l.b16 %v2028
  %v2255 = vunpack.c.l.b16 %v2029
  %v2256 = vunpack.c.l.b16 %v2030
  %v2257 = vunpack.c.l.b16 %v2031
  %v2258 = vunpack.c.l.b16 %v2032
  %v2259 = vunpack.c.l.b16 %v2033
  %v2260 = vunpack.c.l.b16 %v2034
  %v2261 = vunpack.c.l.b16 %v2035
  %v2262 = vunpack.c.l.b16 %v2036
  %v2263 = vunpack.c.l.b16 %v2037
  %v2264 = vunpack.c.l.b16 %v2038
  %v2265 = vunpack.c.l.b16 %v2039
  %v2266 = vunpack.c.l.b16 %v2040
  %v2267 = vunpack.c.l.b16 %v2041
  %v2268 = vunpack.c.l.b16 %v2042
  %v2269 = vunpack.c.l.b16 %v2043
  %v2270 = vunpack.c.l.b16 %v2044
  %v2271 = vunpack.c.l.b16 %v2045
  %v2272 = vunpack.c.l.b16 %v2046
  %v2273 = vunpack.c.l.b16 %v2047
  %v2274 = vunpack.c.l.b16 %v2048
  %v2275 = vunpack.c.l.b16 %v2049
  %v2276 = vunpack.c.l.b16 %v2050
  %v2277 = vunpack.c.l.b16 %v2051
  %v2278 = vunpack.c.l.b16 %v2052
  %v2279 = vunpack.c.l.b16 %v2053
  %v2280 = vunpack.c.l.b16 %v2054
  %v2281 = vunpack.c.l.b16 %v2055
  %v2282 = vunpack.c.l.b16 %v2056
  %v2283 = vunpack.c.l.b16 %v2057
  %v2284 = vunpack.c.l.b16 %v2058
  %v2285 = vunpack.c.l.b16 %v2059
  %v2286 = vunpack.c.l.b16 %v2060
  %v2287 = vunpack.c.l.b16 %v2061
  %v2288 = vunpack.c.l.b16 %v2062
  %v2289 = vunpack.c.l.b16 %v2063
  %v2290 = vunpack.c.l.b16 %v2064
  %v2291 = vunpack.c.l.b16 %v2065
  %v2292 = vunpack.c.l.b16 %v2066
  %v2293 = vunpack.c.l.b16 %v2067
  %v2294 = vunpack.c.l.b16 %v2068
  %v2295 = vunpack.c.l.b16 %v2069
  %v2296 = vunpack.c.l.b16 %v2070
  %v2297 = vunpack.c.l.b16 %v2071
  %v2298 = vunpack.c.l.b16 %v2072
  %v2299 = vunpack.c.l.b16 %v2073
  %v2300 = vunpack.c.l.b16 %v2074
  %v2301 = vunpack.c.l.b16 %v2075
  %v2302 = vunpack.c.l.b16 %v2076
  %v2303 = vunpack.c.l.b16 %v2077
  %v2304 = vunpack.c.l.b16 %v2078
  %v2305 = vunpack.c.l.b16 %v2079
  %v2306 = vunpack.c.l.b16 %v2080
  %v2307 = vunpack.c.l.b16 %v2081
  %v2308 = vunpack.c.l.b16 %v2082
  %v2309 = vunpack.c.l.b16 %v2083
  %v2310 = vunpack.c.l.b16 %v2084
  %v2311 = vunpack.c.l.b16 %v2085
  %v2312 = vunpack.c.l.b16 %v2086
  %v2313 = vunpack.c.l.b16 %v2087
  %v2314 = vunpack.c.l.b16 %v2088
  %v2315 = vunpack.c.l.b16 %v2089
  %v2316 = vunpack.c.l.b16 %v2090
  %v2317 = vunpack.c.l.b16 %v2091
  %v2318 = vunpack.c.l.b16 %v2092
  %v2319 = vunpack.c.l.b16 %v2093
  %v2320 = vunpack.c.l.b16 %v2094
  %v2321 = vunpack.c.l.b16 %v2095
  %v2322 = vunpack.c.l.b16 %v2096
  %v2323 = vunpack.c.l.b16 %v2097
  %v2324 = vunpack.c.l.b16 %v2098
  %v2325 = vunpack.c.l.b16 %v2099
  %v2326 = vunpack.c.l.b16 %v2100
  %v2327 = vunpack.c.l.b16 %v2101
  %v2328 = vunpack.c.l.b16 %v2102
  %v2329 = vunpack.c.l.b16 %v2103
  %v2330 = vunpack.c.l.b16 %v2104
  %v2331 = vunpack.c.l.b16 %v2105
  %v2332 = vunpack.c.l.b16 %v2106
  %v2333 = vunpack.c.l.b16 %v2107
  %v2334 = vunpack.c.l.b16 %v2108
  %v2335 = vunpack.c.l.b16 %v2109
  %v2336 = vunpack.c.l.b16 %v2110
  %v2337 = vunpack.c.l.b16 %v2111
  %v2338 = vunpack.c.l.b16 %v2112
  %v2339 = vunpack.c.l.b16 %v2113
  %v2340 = vunpack.c.l.b16 %v2114
  %v2341 = vunpack.c.l.b16 %v2115
  %v2342 = vunpack.c.l.b16 %v2116
  %v2343 = vunpack.c.l.b16 %v2117
  %v2344 = vunpack.c.l.b16 %v2118
  %v2345 = vunpack.c.l.b16 %v2119
  %v2346 = vunpack.c.l.b16 %v2120
  %v2347 = vunpack.c.l.b16 %v2121
  %v2348 = vunpack.c.l.b16 %v2122
  %v2349 = vunpack.c.l.b16 %v2123
  %v2350 = vunpack.c.l.b16 %v2124
  %v2351 = vunpack.c.l.b16 %v2125
  %v2352 = vunpack.c.l.b16 %v2126
  %v2353 = vunpack.c.l.b16 %v2127
  %v2354 = vpack.c.b16 %v2242, %v2241
  %v2355 = vpack.c.b16 %v2244, %v2243
  %v2356 = vpack.c.b16 %v2246, %v2245
  %v2357 = vpack.c.b16 %v2248, %v2247
  %v2358 = vpack.c.b16 %v2250, %v2249
  %v2359 = vpack.c.b16 %v2252, %v2251
  %v2360 = vpack.c.b16 %v2254, %v2253
  %v2361 = vpack.c.b16 %v2256, %v2255
  %v2362 = vpack.c.b16 %v2258, %v2257
  %v2363 = vpack.c.b16 %v2260, %v2259
  %v2364 = vpack.c.b16 %v2262, %v2261
  %v2365 = vpack.c.b16 %v2264, %v2263
  %v2366 = vpack.c.b16 %v2266, %v2265
  %v2367 = vpack.c.b16 %v2268, %v2267
  %v2368 = vpack.c.b16 %v2270, %v2269
  %v2369 = vpack.c.b16 %v2272, %v2271
  %v2370 = vpack.c.b16 %v2274, %v2273
  %v2371 = vpack.c.b16 %v2276, %v2275
  %v2372 = vpack.c.b16 %v2278, %v2277
  %v2373 = vpack.c.b16 %v2280, %v2279
  %v2374 = vpack.c.b16 %v2282, %v2281
  %v2375 = vpack.c.b16 %v2284, %v2283
  %v2376 = vpack.c.b16 %v2286, %v2285
  %v2377 = vpack.c.b16 %v2288, %v2287
  %v2378 = vpack.c.b16 %v2290, %v2289
  %v2379 = vpack.c.b16 %v2292, %v2291
  %v2380 = vpack.c.b16 %v2294, %v2293
  %v2381 = vpack.c.b16 %v2296, %v2295
  %v2382 = vpack.c.b16 %v2298, %v2297
  %v2383 = vpack.c.b16 %v2300, %v2299
  %v2384 = vpack.c.b16 %v2302, %v2301
  %v2385 = vpack.c.b16 %v2304, %v2303
  %v2386 = vpack.c.b16 %v2306, %v2305
  %v2387 = vpack.c.b16 %v2308, %v2307
  %v2388 = vpack.c.b16 %v2310, %v2309
  %v2389 = vpack.c.b16 %v2312, %v2311
  %v2390 = vpack.c.b16 %v2314, %v2313
  %v2391 = vpack.c.b16 %v2316, %v2315
  %v2392 = vpack.c.b16 %v2318, %v2317
  %v2393 = vpack.c.b16 %v2320, %v2319
  %v2394 = vpack.c.b16 %v2322, %v2321
  %v2395 = vpack.c.b16 %v2324, %v2323
  %v2396 = vpack.c.b16 %v2326, %v2325
  %v2397 = vpack.c.b16 %v2328, %v2327
  %v2398 = vpack.c.b16 %v2330, %v2329
  %v2399 = vpack.c.b16 %v2332, %v2331
  %v2400 = vpack.c.b16 %v2334, %v2333
  %v2401 = vpack.c.b16 %v2336, %v2335
  %v2402 = vpack.c.b16 %v2338, %v2337
  %v2403 = vpack.c.b16 %v2340, %v2339
  %v2404 = vpack.c.b16 %v2342, %v2341
  %v2405 = vpack.c.b16 %v2344, %v2343
  %v2406 = vpack.c.b16 %v2346, %v2345
  %v2407 = vpack.c.b16 %v2348, %v2347
  %v2408 = vpack.c.b16 %v2350, %v2349
  %v2409 = vpack.c.b16 %v2352, %v2351
  %v2410 = vpack.c.b16 %v2353, %v2353
  %vm2467 = vcmask 31744
  %v2469 = vsel %vm2467, %v1838, 0
  %v2472 = vsel %vm2467, %v1842, 0
  %v2475 = vsel %vm2467, %v1846, 0
  %v2478 = vsel %vm2467, %v1850, 0
  %v2481 = vsel %vm2467, %v1854, 0
  %v2484 = vsel %vm2467, %v1858, 0
  %v2487 = vsel %vm2467, %v1862, 0
  %v2490 = vsel %vm2467, %v1866, 0
  %vm2492 = vcmask 1041408
  %v2494 = vsel %vm2492, %v2410, 0
  %2496 = vmatprep.subr.bf16.mxu0 0
  %2497 = vmatpush1.bf16.msra.mxu0 %v2354
  %2498 = vmatprep.subr.bf16.mxu0 0
  %2499 = vmatpush1.bf16.msra.mxu0 %v2355
  %2500 = vmatprep.subr.bf16.mxu0 0
  %2501 = vmatpush1.bf16.msra.mxu0 %v2356
  %2502 = vmatprep.subr.bf16.mxu0 0
  %2503 = vmatpush1.bf16.msra.mxu0 %v2357
  %2504 = vmatprep.subr.bf16.mxu0 0
  %2505 = vmatpush1.bf16.msra.mxu0 %v2358
  %2506 = vmatprep.subr.bf16.mxu0 0
  %2507 = vmatpush1.bf16.msra.mxu0 %v2359
  %2508 = vmatprep.subr.bf16.mxu0 0
  %2509 = vmatpush1.bf16.msra.mxu0 %v2360
  %2510 = vmatprep.subr.bf16.mxu0 0
  %2511 = vmatpush1.bf16.msra.mxu0 %v2361
  %2512 = vmatprep.subr.bf16.mxu0 0
  %2513 = vmatpush1.bf16.msra.mxu0 %v2362
  %2514 = vmatprep.subr.bf16.mxu0 0
  %2515 = vmatpush1.bf16.msra.mxu0 %v2363
  %2516 = vmatprep.subr.bf16.mxu0 0
  %2517 = vmatpush1.bf16.msra.mxu0 %v2364
  %2518 = vmatprep.subr.bf16.mxu0 0
  %2519 = vmatpush1.bf16.msra.mxu0 %v2365
  %2520 = vmatprep.subr.bf16.mxu0 0
  %2521 = vmatpush1.bf16.msra.mxu0 %v2366
  %2522 = vmatprep.subr.bf16.mxu0 0
  %2523 = vmatpush1.bf16.msra.mxu0 %v2367
  %2524 = vmatprep.subr.bf16.mxu0 0
  %2525 = vmatpush1.bf16.msra.mxu0 %v2368
  %2526 = vmatprep.subr.bf16.mxu0 0
  %2527 = vmatpush1.bf16.msra.mxu0 %v2369
  %2528 = vmatprep.mubr.bf16.mxu0 %v1887
  %2529 = vmatmul.mubr.bf16.gmra.mrb[0].mxu0 %v1658
  %v2530 = vpop.f32.mrb[0].mxu0
  %v2531 = vadd.f32 0.0, %v2530
  %v2532 = vpop.f32.mrb[0].mxu0
  %v2533 = vpop.f32.mrb[0].mxu0
  %v2534 = vadd.f32 0.0, %v2533
  %v2535 = vpop.f32.mrb[0].mxu0
  %2536 = vmatprep.mubr.bf16.mxu0 %v1891
  %2537 = vmatmul.mubr.bf16.gmra.mrb[0].mxu0 %v1660
  %v2538 = vpop.f32.mrb[0].mxu0
  %v2539 = vadd.f32 0.0, %v2538
  %v2540 = vpop.f32.mrb[0].mxu0
  %v2541 = vpop.f32.mrb[0].mxu0
  %v2542 = vadd.f32 0.0, %v2541
  %v2543 = vpop.f32.mrb[0].mxu0
  %2544 = vmatprep.mubr.bf16.mxu0 %v1895
  %2545 = vmatmul.mubr.bf16.gmra.mrb[0].mxu0 %v1662
  %v2546 = vpop.f32.mrb[0].mxu0
  %v2547 = vadd.f32 0.0, %v2546
  %v2548 = vpop.f32.mrb[0].mxu0
  %v2549 = vpop.f32.mrb[0].mxu0
  %v2550 = vadd.f32 0.0, %v2549
  %v2551 = vpop.f32.mrb[0].mxu0
  %2552 = vmatprep.mubr.bf16.mxu0 %v1899
  %2553 = vmatmul.mubr.bf16.gmra.mrb[0].mxu0 %v1664
  %v2554 = vpop.f32.mrb[0].mxu0
  %v2555 = vadd.f32 0.0, %v2554
  %v2556 = vpop.f32.mrb[0].mxu0
  %v2557 = vpop.f32.mrb[0].mxu0
  %v2558 = vadd.f32 0.0, %v2557
  %v2559 = vpop.f32.mrb[0].mxu0
  %2560 = vmatprep.mubr.bf16.mxu0 %v1903
  %2561 = vmatmul.mubr.bf16.gmra.mrb[0].mxu0 %v1666
  %v2562 = vpop.f32.mrb[0].mxu0
  %v2563 = vadd.f32 0.0, %v2562
  %v2564 = vpop.f32.mrb[0].mxu0
  %v2565 = vpop.f32.mrb[0].mxu0
  %v2566 = vadd.f32 0.0, %v2565
  %v2567 = vpop.f32.mrb[0].mxu0
  %2568 = vmatprep.mubr.bf16.mxu0 %v1907
  %2569 = vmatmul.mubr.bf16.gmra.mrb[0].mxu0 %v1668
  %v2570 = vpop.f32.mrb[0].mxu0
  %v2571 = vadd.f32 0.0, %v2570
  %v2572 = vpop.f32.mrb[0].mxu0
  %v2573 = vpop.f32.mrb[0].mxu0
  %v2574 = vadd.f32 0.0, %v2573
  %v2575 = vpop.f32.mrb[0].mxu0
  %2576 = vmatprep.mubr.bf16.mxu0 %v1911
  %2577 = vmatmul.mubr.bf16.gmra.mrb[0].mxu0 %v1670
  %v2578 = vpop.f32.mrb[0].mxu0
  %v2579 = vadd.f32 0.0, %v2578
  %v2580 = vpop.f32.mrb[0].mxu0
  %v2581 = vpop.f32.mrb[0].mxu0
  %v2582 = vadd.f32 0.0, %v2581
  %v2583 = vpop.f32.mrb[0].mxu0
  %2584 = vmatprep.mubr.bf16.mxu0 %v1915
  %2585 = vmatmul.mubr.bf16.gmra.mrb[0].mxu0 %v1672
  %v2586 = vpop.f32.mrb[0].mxu0
  %v2587 = vadd.f32 0.0, %v2586
  %v2588 = vpop.f32.mrb[0].mxu0
  %v2589 = vpop.f32.mrb[0].mxu0
  %v2590 = vadd.f32 0.0, %v2589
  %v2591 = vpop.f32.mrb[0].mxu0
  %2592 = vdwg.mxu0
  %2593 = vmatprep.subr.bf16.mxu0 0
  %2594 = vmatpush1.bf16.msra.mxu0 %v2370
  %2595 = vmatprep.subr.bf16.mxu0 0
  %2596 = vmatpush1.bf16.msra.mxu0 %v2371
  %2597 = vmatprep.subr.bf16.mxu0 0
  %2598 = vmatpush1.bf16.msra.mxu0 %v2372
  %2599 = vmatprep.subr.bf16.mxu0 0
  %2600 = vmatpush1.bf16.msra.mxu0 %v2373
  %2601 = vmatprep.subr.bf16.mxu0 0
  %2602 = vmatpush1.bf16.msra.mxu0 %v2374
  %2603 = vmatprep.subr.bf16.mxu0 0
  %2604 = vmatpush1.bf16.msra.mxu0 %v2375
  %2605 = vmatprep.subr.bf16.mxu0 0
  %2606 = vmatpush1.bf16.msra.mxu0 %v2376
  %2607 = vmatprep.subr.bf16.mxu0 0
  %2608 = vmatpush1.bf16.msra.mxu0 %v2377
  %2609 = vmatprep.subr.bf16.mxu0 0
  %2610 = vmatpush1.bf16.msra.mxu0 %v2378
  %2611 = vmatprep.subr.bf16.mxu0 0
  %2612 = vmatpush1.bf16.msra.mxu0 %v2379
  %2613 = vmatprep.subr.bf16.mxu0 0
  %2614 = vmatpush1.bf16.msra.mxu0 %v2380
  %2615 = vmatprep.subr.bf16.mxu0 0
  %2616 = vmatpush1.bf16.msra.mxu0 %v2381
  %2617 = vmatprep.subr.bf16.mxu0 0
  %2618 = vmatpush1.bf16.msra.mxu0 %v2382
  %2619 = vmatprep.subr.bf16.mxu0 0
  %2620 = vmatpush1.bf16.msra.mxu0 %v2383
  %2621 = vmatprep.subr.bf16.mxu0 0
  %2622 = vmatpush1.bf16.msra.mxu0 %v2384
  %2623 = vmatprep.subr.bf16.mxu0 0
  %2624 = vmatpush1.bf16.msra.mxu0 %v2385
  %2625 = vmatprep.mubr.bf16.mxu0 %v1774
  %2626 = vmatmul.mubr.bf16.gmra.mrb[0].mxu0 %v1920
  %v2627 = vpop.f32.mrb[0].mxu0
  %v2628 = vadd.f32 %v2531, %v2627
  %v2629 = vpop.f32.mrb[0].mxu0
  %v2630 = vpop.f32.mrb[0].mxu0
  %v2631 = vadd.f32 %v2534, %v2630
  %v2632 = vpop.f32.mrb[0].mxu0
  %2633 = vmatprep.mubr.bf16.mxu0 %v1775
  %2634 = vmatmul.mubr.bf16.gmra.mrb[0].mxu0 %v1924
  %v2635 = vpop.f32.mrb[0].mxu0
  %v2636 = vadd.f32 %v2539, %v2635
  %v2637 = vpop.f32.mrb[0].mxu0
  %v2638 = vpop.f32.mrb[0].mxu0
  %v2639 = vadd.f32 %v2542, %v2638
  %v2640 = vpop.f32.mrb[0].mxu0
  %2641 = vmatprep.mubr.bf16.mxu0 %v1776
  %2642 = vmatmul.mubr.bf16.gmra.mrb[0].mxu0 %v1928
  %v2643 = vpop.f32.mrb[0].mxu0
  %v2644 = vadd.f32 %v2547, %v2643
  %v2645 = vpop.f32.mrb[0].mxu0
  %v2646 = vpop.f32.mrb[0].mxu0
  %v2647 = vadd.f32 %v2550, %v2646
  %v2648 = vpop.f32.mrb[0].mxu0
  %2649 = vmatprep.mubr.bf16.mxu0 %v1777
  %2650 = vmatmul.mubr.bf16.gmra.mrb[0].mxu0 %v1932
  %v2651 = vpop.f32.mrb[0].mxu0
  %v2652 = vadd.f32 %v2555, %v2651
  %v2653 = vpop.f32.mrb[0].mxu0
  %v2654 = vpop.f32.mrb[0].mxu0
  %v2655 = vadd.f32 %v2558, %v2654
  %v2656 = vpop.f32.mrb[0].mxu0
  %2657 = vmatprep.mubr.bf16.mxu0 %v1778
  %2658 = vmatmul.mubr.bf16.gmra.mrb[0].mxu0 %v1936
  %v2659 = vpop.f32.mrb[0].mxu0
  %v2660 = vadd.f32 %v2563, %v2659
  %v2661 = vpop.f32.mrb[0].mxu0
  %v2662 = vpop.f32.mrb[0].mxu0
  %v2663 = vadd.f32 %v2566, %v2662
  %v2664 = vpop.f32.mrb[0].mxu0
  %2665 = vmatprep.mubr.bf16.mxu0 %v1779
  %2666 = vmatmul.mubr.bf16.gmra.mrb[0].mxu0 %v1940
  %v2667 = vpop.f32.mrb[0].mxu0
  %v2668 = vadd.f32 %v2571, %v2667
  %v2669 = vpop.f32.mrb[0].mxu0
  %v2670 = vpop.f32.mrb[0].mxu0
  %v2671 = vadd.f32 %v2574, %v2670
  %v2672 = vpop.f32.mrb[0].mxu0
  %2673 = vmatprep.mubr.bf16.mxu0 %v1780
  %2674 = vmatmul.mubr.bf16.gmra.mrb[0].mxu0 %v1944
  %v2675 = vpop.f32.mrb[0].mxu0
  %v2676 = vadd.f32 %v2579, %v2675
  %v2677 = vpop.f32.mrb[0].mxu0
  %v2678 = vpop.f32.mrb[0].mxu0
  %v2679 = vadd.f32 %v2582, %v2678
  %v2680 = vpop.f32.mrb[0].mxu0
  %2681 = vmatprep.mubr.bf16.mxu0 %v1781
  %2682 = vmatmul.mubr.bf16.gmra.mrb[0].mxu0 %v1948
  %v2683 = vpop.f32.mrb[0].mxu0
  %v2684 = vadd.f32 %v2587, %v2683
  %v2685 = vpop.f32.mrb[0].mxu0
  %v2686 = vpop.f32.mrb[0].mxu0
  %v2687 = vadd.f32 %v2590, %v2686
  %v2688 = vpop.f32.mrb[0].mxu0
  %2689 = vdwg.mxu0
  %2690 = vmatprep.subr.bf16.mxu0 0
  %2691 = vmatpush1.bf16.msra.mxu0 %v2386
  %2692 = vmatprep.subr.bf16.mxu0 0
  %2693 = vmatpush1.bf16.msra.mxu0 %v2387
  %2694 = vmatprep.subr.bf16.mxu0 0
  %2695 = vmatpush1.bf16.msra.mxu0 %v2388
  %2696 = vmatprep.subr.bf16.mxu0 0
  %2697 = vmatpush1.bf16.msra.mxu0 %v2389
  %2698 = vmatprep.subr.bf16.mxu0 0
  %2699 = vmatpush1.bf16.msra.mxu0 %v2390
  %2700 = vmatprep.subr.bf16.mxu0 0
  %2701 = vmatpush1.bf16.msra.mxu0 %v2391
  %2702 = vmatprep.subr.bf16.mxu0 0
  %2703 = vmatpush1.bf16.msra.mxu0 %v2392
  %2704 = vmatprep.subr.bf16.mxu0 0
  %2705 = vmatpush1.bf16.msra.mxu0 %v2393
  %2706 = vmatprep.subr.bf16.mxu0 0
  %2707 = vmatpush1.bf16.msra.mxu0 %v2394
  %2708 = vmatprep.subr.bf16.mxu0 0
  %2709 = vmatpush1.bf16.msra.mxu0 %v2395
  %2710 = vmatprep.subr.bf16.mxu0 0
  %2711 = vmatpush1.bf16.msra.mxu0 %v2396
  %2712 = vmatprep.subr.bf16.mxu0 0
  %2713 = vmatpush1.bf16.msra.mxu0 %v2397
  %2714 = vmatprep.subr.bf16.mxu0 0
  %2715 = vmatpush1.bf16.msra.mxu0 %v2398
  %2716 = vmatprep.subr.bf16.mxu0 0
  %2717 = vmatpush1.bf16.msra.mxu0 %v2399
  %2718 = vmatprep.subr.bf16.mxu0 0
  %2719 = vmatpush1.bf16.msra.mxu0 %v2400
  %2720 = vmatprep.subr.bf16.mxu0 0
  %2721 = vmatpush1.bf16.msra.mxu0 %v2401
  %2722 = vmatprep.mubr.bf16.mxu0 %v1985
  %2723 = vmatmul.mubr.bf16.gmra.mrb[0].mxu0 %v1952
  %v2724 = vpop.f32.mrb[0].mxu0
  %v2725 = vadd.f32 %v2628, %v2724
  %v2726 = vpop.f32.mrb[0].mxu0
  %v2727 = vpop.f32.mrb[0].mxu0
  %v2728 = vadd.f32 %v2631, %v2727
  %v2729 = vpop.f32.mrb[0].mxu0
  %2730 = vmatprep.mubr.bf16.mxu0 %v1989
  %2731 = vmatmul.mubr.bf16.gmra.mrb[0].mxu0 %v1956
  %v2732 = vpop.f32.mrb[0].mxu0
  %v2733 = vadd.f32 %v2636, %v2732
  %v2734 = vpop.f32.mrb[0].mxu0
  %v2735 = vpop.f32.mrb[0].mxu0
  %v2736 = vadd.f32 %v2639, %v2735
  %v2737 = vpop.f32.mrb[0].mxu0
  %2738 = vmatprep.mubr.bf16.mxu0 %v1993
  %2739 = vmatmul.mubr.bf16.gmra.mrb[0].mxu0 %v1960
  %v2740 = vpop.f32.mrb[0].mxu0
  %v2741 = vadd.f32 %v2644, %v2740
  %v2742 = vpop.f32.mrb[0].mxu0
  %v2743 = vpop.f32.mrb[0].mxu0
  %v2744 = vadd.f32 %v2647, %v2743
  %v2745 = vpop.f32.mrb[0].mxu0
  %2746 = vmatprep.mubr.bf16.mxu0 %v1997
  %2747 = vmatmul.mubr.bf16.gmra.mrb[0].mxu0 %v1964
  %v2748 = vpop.f32.mrb[0].mxu0
  %v2749 = vadd.f32 %v2652, %v2748
  %v2750 = vpop.f32.mrb[0].mxu0
  %v2751 = vpop.f32.mrb[0].mxu0
  %v2752 = vadd.f32 %v2655, %v2751
  %v2753 = vpop.f32.mrb[0].mxu0
  %2754 = vmatprep.mubr.bf16.mxu0 %v2001
  %2755 = vmatmul.mubr.bf16.gmra.mrb[0].mxu0 %v1968
  %v2756 = vpop.f32.mrb[0].mxu0
  %v2757 = vadd.f32 %v2660, %v2756
  %v2758 = vpop.f32.mrb[0].mxu0
  %v2759 = vpop.f32.mrb[0].mxu0
  %v2760 = vadd.f32 %v2663, %v2759
  %v2761 = vpop.f32.mrb[0].mxu0
  %2762 = vmatprep.mubr.bf16.mxu0 %v2005
  %2763 = vmatmul.mubr.bf16.gmra.mrb[0].mxu0 %v1972
  %v2764 = vpop.f32.mrb[0].mxu0
  %v2765 = vadd.f32 %v2668, %v2764
  %v2766 = vpop.f32.mrb[0].mxu0
  %v2767 = vpop.f32.mrb[0].mxu0
  %v2768 = vadd.f32 %v2671, %v2767
  %v2769 = vpop.f32.mrb[0].mxu0
  %2770 = vmatprep.mubr.bf16.mxu0 %v2009
  %2771 = vmatmul.mubr.bf16.gmra.mrb[0].mxu0 %v1976
  %v2772 = vpop.f32.mrb[0].mxu0
  %v2773 = vadd.f32 %v2676, %v2772
  %v2774 = vpop.f32.mrb[0].mxu0
  %v2775 = vpop.f32.mrb[0].mxu0
  %v2776 = vadd.f32 %v2679, %v2775
  %v2777 = vpop.f32.mrb[0].mxu0
  %2778 = vmatprep.mubr.bf16.mxu0 %v2013
  %2779 = vmatmul.mubr.bf16.gmra.mrb[0].mxu0 %v1980
  %v2780 = vpop.f32.mrb[0].mxu0
  %v2781 = vadd.f32 %v2684, %v2780
  %v2782 = vpop.f32.mrb[0].mxu0
  %v2783 = vpop.f32.mrb[0].mxu0
  %v2784 = vadd.f32 %v2687, %v2783
  %v2785 = vpop.f32.mrb[0].mxu0
  %2786 = vdwg.mxu0
  %2787 = vmatprep.subr.bf16.mxu0 0
  %2788 = vmatpush1.bf16.msra.mxu0 %v2402
  %2789 = vmatprep.subr.bf16.mxu0 0
  %2790 = vmatpush1.bf16.msra.mxu0 %v2403
  %2791 = vmatprep.subr.bf16.mxu0 0
  %2792 = vmatpush1.bf16.msra.mxu0 %v2404
  %2793 = vmatprep.subr.bf16.mxu0 0
  %2794 = vmatpush1.bf16.msra.mxu0 %v2405
  %2795 = vmatprep.subr.bf16.mxu0 0
  %2796 = vmatpush1.bf16.msra.mxu0 %v2406
  %2797 = vmatprep.subr.bf16.mxu0 0
  %2798 = vmatpush1.bf16.msra.mxu0 %v2407
  %2799 = vmatprep.subr.bf16.mxu0 0
  %2800 = vmatpush1.bf16.msra.mxu0 %v2408
  %2801 = vmatprep.subr.bf16.mxu0 0
  %2802 = vmatpush1.bf16.msra.mxu0 %v2409
  %2803 = vmatprep.subr.bf16.mxu0 0
  %2804 = vmatpush1.bf16.msra.mxu0 %v2494
  %2805 = vmatprep.subr.bf16.mxu0 0
  %2806 = vmatpush1.bf16.msra.mxu0 0
  %2807 = vmatprep.subr.bf16.mxu0 0
  %2808 = vmatpush1.bf16.msra.mxu0 0
  %2809 = vmatprep.subr.bf16.mxu0 0
  %2810 = vmatpush1.bf16.msra.mxu0 0
  %2811 = vmatprep.subr.bf16.mxu0 0
  %2812 = vmatpush1.bf16.msra.mxu0 0
  %2813 = vmatprep.subr.bf16.mxu0 0
  %2814 = vmatpush1.bf16.msra.mxu0 0
  %2815 = vmatprep.subr.bf16.mxu0 0
  %2816 = vmatpush1.bf16.msra.mxu0 0
  %2817 = vmatprep.subr.bf16.mxu0 0
  %2818 = vmatpush1.bf16.msra.mxu0 0
  %2819 = vmatprep.mubr.bf16.mxu0 %v2469
  %2820 = vmatmul.mubr.bf16.gmra.mrb[0].mxu0 %v1868
  %v2821 = vpop.f32.mrb[0].mxu0
  %v2822 = vadd.f32 %v2725, %v2821
  %v2823 = vpop.f32.mrb[0].mxu0
  %v2824 = vpop.f32.mrb[0].mxu0
  %v2825 = vadd.f32 %v2728, %v2824
  %v2826 = vpop.f32.mrb[0].mxu0
  %2827 = vmatprep.mubr.bf16.mxu0 %v2472
  %2828 = vmatmul.mubr.bf16.gmra.mrb[0].mxu0 %v1869
  %v2829 = vpop.f32.mrb[0].mxu0
  %v2830 = vadd.f32 %v2733, %v2829
  %v2831 = vpop.f32.mrb[0].mxu0
  %v2832 = vpop.f32.mrb[0].mxu0
  %v2833 = vadd.f32 %v2736, %v2832
  %v2834 = vpop.f32.mrb[0].mxu0
  %2835 = vmatprep.mubr.bf16.mxu0 %v2475
  %2836 = vmatmul.mubr.bf16.gmra.mrb[0].mxu0 %v1870
  %v2837 = vpop.f32.mrb[0].mxu0
  %v2838 = vadd.f32 %v2741, %v2837
  %v2839 = vpop.f32.mrb[0].mxu0
  %v2840 = vpop.f32.mrb[0].mxu0
  %v2841 = vadd.f32 %v2744, %v2840
  %v2842 = vpop.f32.mrb[0].mxu0
  %2843 = vmatprep.mubr.bf16.mxu0 %v2478
  %2844 = vmatmul.mubr.bf16.gmra.mrb[0].mxu0 %v1871
  %v2845 = vpop.f32.mrb[0].mxu0
  %v2846 = vadd.f32 %v2749, %v2845
  %v2847 = vpop.f32.mrb[0].mxu0
  %v2848 = vpop.f32.mrb[0].mxu0
  %v2849 = vadd.f32 %v2752, %v2848
  %v2850 = vpop.f32.mrb[0].mxu0
  %2851 = vmatprep.mubr.bf16.mxu0 %v2481
  %2852 = vmatmul.mubr.bf16.gmra.mrb[0].mxu0 %v1872
  %v2853 = vpop.f32.mrb[0].mxu0
  %v2854 = vadd.f32 %v2757, %v2853
  %v2855 = vpop.f32.mrb[0].mxu0
  %v2856 = vpop.f32.mrb[0].mxu0
  %v2857 = vadd.f32 %v2760, %v2856
  %v2858 = vpop.f32.mrb[0].mxu0
  %2859 = vmatprep.mubr.bf16.mxu0 %v2484
  %2860 = vmatmul.mubr.bf16.gmra.mrb[0].mxu0 %v1873
  %v2861 = vpop.f32.mrb[0].mxu0
  %v2862 = vadd.f32 %v2765, %v2861
  %v2863 = vpop.f32.mrb[0].mxu0
  %v2864 = vpop.f32.mrb[0].mxu0
  %v2865 = vadd.f32 %v2768, %v2864
  %v2866 = vpop.f32.mrb[0].mxu0
  %2867 = vmatprep.mubr.bf16.mxu0 %v2487
  %2868 = vmatmul.mubr.bf16.gmra.mrb[0].mxu0 %v1874
  %v2869 = vpop.f32.mrb[0].mxu0
  %v2870 = vadd.f32 %v2773, %v2869
  %v2871 = vpop.f32.mrb[0].mxu0
  %v2872 = vpop.f32.mrb[0].mxu0
  %v2873 = vadd.f32 %v2776, %v2872
  %v2874 = vpop.f32.mrb[0].mxu0
  %2875 = vmatprep.mubr.bf16.mxu0 %v2490
  %2876 = vmatmul.mubr.bf16.gmra.mrb[0].mxu0 %v1875
  %v2877 = vpop.f32.mrb[0].mxu0
  %v2878 = vadd.f32 %v2781, %v2877
  %v2879 = vpop.f32.mrb[0].mxu0
  %v2880 = vpop.f32.mrb[0].mxu0
  %v2881 = vadd.f32 %v2784, %v2880
  %v2882 = vpop.f32.mrb[0].mxu0
  %2883 = vdwg.mxu0
  %v2884 = vld [vmem:[%s5] sm:$0xf]
  %v2885 = vld [vmem:[%s5 + $0x4] sm:$0xf]
  %v2886 = vld [vmem:[%s5 + $0x8] sm:$0xf]
  %v2887 = vld [vmem:[%s5 + $0xc] sm:$0xf]
  %v2888 = vld [vmem:[%s5 + $0x10] sm:$0xf]
  %v2889 = vld [vmem:[%s5 + $0x14] sm:$0xf]
  %v2890 = vld [vmem:[%s5 + $0x18] sm:$0xf]
  %v2891 = vld [vmem:[%s5 + $0x1c] sm:$0xf]
  %v2892 = vld [vmem:[%s5 + $0x20] sm:$0xf]
  %v2893 = vld [vmem:[%s5 + $0x24] sm:$0xf]
  %v2894 = vld [vmem:[%s5 + $0x28] sm:$0xf]
  %v2895 = vld [vmem:[%s5 + $0x2c] sm:$0xf]
  %v2896 = vld [vmem:[%s5 + $0x30] sm:$0xf]
  %v2897 = vld [vmem:[%s5 + $0x34] sm:$0xf]
  %v2898 = vld [vmem:[%s5 + $0x38] sm:$0xf]
  %v2899 = vld [vmem:[%s5 + $0x3c] sm:$0xf]
  %v2900 = vld [vmem:[%s5 + $0x40] sm:$0xf]
  %v2901 = vld [vmem:[%s5 + $0x44] sm:$0xf]
  %v2902 = vld [vmem:[%s5 + $0x48] sm:$0xf]
  %v2903 = vld [vmem:[%s5 + $0x4c] sm:$0xf]
  %v2904 = vld [vmem:[%s5 + $0x50] sm:$0xf]
  %v2905 = vld [vmem:[%s5 + $0x54] sm:$0xf]
  %v2906 = vld [vmem:[%s5 + $0x58] sm:$0xf]
  %v2907 = vld [vmem:[%s5 + $0x5c] sm:$0xf]
  %v2908 = vld [vmem:[%s5 + $0x60] sm:$0xf]
  %v2909 = vld [vmem:[%s5 + $0x64] sm:$0xf]
  %v2910 = vld [vmem:[%s5 + $0x68] sm:$0xf]
  %v2911 = vld [vmem:[%s5 + $0x6c] sm:$0xf]
  %v2912 = vld [vmem:[%s5 + $0x70] sm:$0xf]
  %v2913 = vld [vmem:[%s5 + $0x74] sm:$0xf]
  %v2914 = vld [vmem:[%s5 + $0x78] sm:$0xf]
  %v2915 = vld [vmem:[%s5 + $0x7c] sm:$0xf]
  %v2916 = vld [vmem:[%s5 + $0x80] sm:$0xf]
  %v2917 = vld [vmem:[%s5 + $0x84] sm:$0xf]
  %v2918 = vld [vmem:[%s5 + $0x88] sm:$0xf]
  %v2919 = vld [vmem:[%s5 + $0x8c] sm:$0xf]
  %v2920 = vld [vmem:[%s5 + $0x90] sm:$0xf]
  %v2921 = vld [vmem:[%s5 + $0x94] sm:$0xf]
  %v2922 = vld [vmem:[%s5 + $0x98] sm:$0xf]
  %v2923 = vld [vmem:[%s5 + $0x9c] sm:$0xf]
  %v2924 = vld [vmem:[%s5 + $0xa0] sm:$0xf]
  %v2925 = vld [vmem:[%s5 + $0xa4] sm:$0xf]
  %v2926 = vld [vmem:[%s5 + $0xa8] sm:$0xf]
  %v2927 = vld [vmem:[%s5 + $0xac] sm:$0xf]
  %v2928 = vld [vmem:[%s5 + $0xb0] sm:$0xf]
  %v2929 = vld [vmem:[%s5 + $0xb4] sm:$0xf]
  %v2930 = vld [vmem:[%s5 + $0xb8] sm:$0xf]
  %v2931 = vld [vmem:[%s5 + $0xbc] sm:$0xf]
  %v2932 = vld [vmem:[%s5 + $0xc0] sm:$0xf]
  %v2933 = vld [vmem:[%s5 + $0xc4] sm:$0xf]
  %v2934 = vld [vmem:[%s5 + $0xc8] sm:$0xf]
  %v2935 = vld [vmem:[%s5 + $0xcc] sm:$0xf]
  %v2936 = vld [vmem:[%s5 + $0xd0] sm:$0xf]
  %v2937 = vld [vmem:[%s5 + $0xd4] sm:$0xf]
  %v2938 = vld [vmem:[%s5 + $0xd8] sm:$0xf]
  %v2939 = vld [vmem:[%s5 + $0xdc] sm:$0xf]
  %v2940 = vld [vmem:[%s5 + $0xe0] sm:$0xf]
  %v2941 = vld [vmem:[%s5 + $0xe4] sm:$0xf]
  %v2942 = vld [vmem:[%s5 + $0xe8] sm:$0xf]
  %v2943 = vld [vmem:[%s5 + $0xec] sm:$0xf]
  %v2944 = vld [vmem:[%s5 + $0xf0] sm:$0xf]
  %v2945 = vld [vmem:[%s5 + $0xf4] sm:$0xf]
  %v2946 = vld [vmem:[%s5 + $0xf8] sm:$0xf]
  %v2947 = vld [vmem:[%s5 + $0xfc] sm:$0xf]
  %v2948 = vld [vmem:[%s5 + $0x100] sm:$0xf]
  %v2949 = vld [vmem:[%s5 + $0x104] sm:$0xf]
  %v2950 = vld [vmem:[%s5 + $0x108] sm:$0xf]
  %v2951 = vld [vmem:[%s5 + $0x10c] sm:$0xf]
  %v2952 = vld [vmem:[%s5 + $0x110] sm:$0xf]
  %v2953 = vld [vmem:[%s5 + $0x114] sm:$0xf]
  %v2954 = vld [vmem:[%s5 + $0x118] sm:$0xf]
  %v2955 = vld [vmem:[%s5 + $0x11c] sm:$0xf]
  %v2956 = vld [vmem:[%s5 + $0x120] sm:$0xf]
  %v2957 = vld [vmem:[%s5 + $0x124] sm:$0xf]
  %v2958 = vld [vmem:[%s5 + $0x128] sm:$0xf]
  %v2959 = vld [vmem:[%s5 + $0x12c] sm:$0xf]
  %v2960 = vld [vmem:[%s5 + $0x130] sm:$0xf]
  %v2961 = vld [vmem:[%s5 + $0x134] sm:$0xf]
  %v2962 = vld [vmem:[%s5 + $0x138] sm:$0xf]
  %v2963 = vld [vmem:[%s5 + $0x13c] sm:$0xf]
  %v2964 = vld [vmem:[%s5 + $0x140] sm:$0xf]
  %v2965 = vld [vmem:[%s5 + $0x144] sm:$0xf]
  %v2966 = vld [vmem:[%s5 + $0x148] sm:$0xf]
  %v2967 = vld [vmem:[%s5 + $0x14c] sm:$0xf]
  %v2968 = vld [vmem:[%s5 + $0x150] sm:$0xf]
  %v2969 = vld [vmem:[%s5 + $0x154] sm:$0xf]
  %v2970 = vld [vmem:[%s5 + $0x158] sm:$0xf]
  %v2971 = vld [vmem:[%s5 + $0x15c] sm:$0xf]
  %v2972 = vld [vmem:[%s5 + $0x160] sm:$0xf]
  %v2973 = vld [vmem:[%s5 + $0x164] sm:$0xf]
  %v2974 = vld [vmem:[%s5 + $0x168] sm:$0xf]
  %v2975 = vld [vmem:[%s5 + $0x16c] sm:$0xf]
  %v2976 = vld [vmem:[%s5 + $0x170] sm:$0xf]
  %v2977 = vld [vmem:[%s5 + $0x174] sm:$0xf]
  %v2978 = vld [vmem:[%s5 + $0x178] sm:$0xf]
  %v2979 = vld [vmem:[%s5 + $0x17c] sm:$0xf]
  %v2980 = vld [vmem:[%s5 + $0x180] sm:$0xf]
  %v2981 = vld [vmem:[%s5 + $0x184] sm:$0xf]
  %v2982 = vld [vmem:[%s5 + $0x188] sm:$0xf]
  %v2983 = vld [vmem:[%s5 + $0x18c] sm:$0xf]
  %v2984 = vld [vmem:[%s5 + $0x190] sm:$0xf]
  %v2985 = vld [vmem:[%s5 + $0x194] sm:$0xf]
  %v2986 = vld [vmem:[%s5 + $0x198] sm:$0xf]
  %v2987 = vld [vmem:[%s5 + $0x19c] sm:$0xf]
  %v2988 = vld [vmem:[%s5 + $0x1a0] sm:$0xf]
  %v2989 = vld [vmem:[%s5 + $0x1a4] sm:$0xf]
  %v2990 = vld [vmem:[%s5 + $0x1a8] sm:$0xf]
  %v2991 = vld [vmem:[%s5 + $0x1ac] sm:$0xf]
  %v2992 = vld [vmem:[%s5 + $0x1b0] sm:$0xf]
  %v2993 = vld [vmem:[%s5 + $0x1b4] sm:$0xf]
  %v2994 = vld [vmem:[%s5 + $0x1b8] sm:$0xf]
  %v2995 = vld [vmem:[%s5 + $0x1bc] sm:$0xf]
  %v2996 = vld [vmem:[%s5 + $0x1c0] sm:$0x3]
  %v3110 = vunpack.c.l.b16 %v2884
  %v3111 = vunpack.c.l.b16 %v2885
  %v3112 = vunpack.c.l.b16 %v2886
  %v3113 = vunpack.c.l.b16 %v2887
  %v3114 = vunpack.c.l.b16 %v2888
  %v3115 = vunpack.c.l.b16 %v2889
  %v3116 = vunpack.c.l.b16 %v2890
  %v3117 = vunpack.c.l.b16 %v2891
  %v3118 = vunpack.c.l.b16 %v2892
  %v3119 = vunpack.c.l.b16 %v2893
  %v3120 = vunpack.c.l.b16 %v2894
  %v3121 = vunpack.c.l.b16 %v2895
  %v3122 = vunpack.c.l.b16 %v2896
  %v3123 = vunpack.c.l.b16 %v2897
  %v3124 = vunpack.c.l.b16 %v2898
  %v3125 = vunpack.c.l.b16 %v2899
  %v3126 = vunpack.c.l.b16 %v2900
  %v3127 = vunpack.c.l.b16 %v2901
  %v3128 = vunpack.c.l.b16 %v2902
  %v3129 = vunpack.c.l.b16 %v2903
  %v3130 = vunpack.c.l.b16 %v2904
  %v3131 = vunpack.c.l.b16 %v2905
  %v3132 = vunpack.c.l.b16 %v2906
  %v3133 = vunpack.c.l.b16 %v2907
  %v3134 = vunpack.c.l.b16 %v2908
  %v3135 = vunpack.c.l.b16 %v2909
  %v3136 = vunpack.c.l.b16 %v2910
  %v3137 = vunpack.c.l.b16 %v2911
  %v3138 = vunpack.c.l.b16 %v2912
  %v3139 = vunpack.c.l.b16 %v2913
  %v3140 = vunpack.c.l.b16 %v2914
  %v3141 = vunpack.c.l.b16 %v2915
  %v3142 = vunpack.c.l.b16 %v2916
  %v3143 = vunpack.c.l.b16 %v2917
  %v3144 = vunpack.c.l.b16 %v2918
  %v3145 = vunpack.c.l.b16 %v2919
  %v3146 = vunpack.c.l.b16 %v2920
  %v3147 = vunpack.c.l.b16 %v2921
  %v3148 = vunpack.c.l.b16 %v2922
  %v3149 = vunpack.c.l.b16 %v2923
  %v3150 = vunpack.c.l.b16 %v2924
  %v3151 = vunpack.c.l.b16 %v2925
  %v3152 = vunpack.c.l.b16 %v2926
  %v3153 = vunpack.c.l.b16 %v2927
  %v3154 = vunpack.c.l.b16 %v2928
  %v3155 = vunpack.c.l.b16 %v2929
  %v3156 = vunpack.c.l.b16 %v2930
  %v3157 = vunpack.c.l.b16 %v2931
  %v3158 = vunpack.c.l.b16 %v2932
  %v3159 = vunpack.c.l.b16 %v2933
  %v3160 = vunpack.c.l.b16 %v2934
  %v3161 = vunpack.c.l.b16 %v2935
  %v3162 = vunpack.c.l.b16 %v2936
  %v3163 = vunpack.c.l.b16 %v2937
  %v3164 = vunpack.c.l.b16 %v2938
  %v3165 = vunpack.c.l.b16 %v2939
  %v3166 = vunpack.c.l.b16 %v2940
  %v3167 = vunpack.c.l.b16 %v2941
  %v3168 = vunpack.c.l.b16 %v2942
  %v3169 = vunpack.c.l.b16 %v2943
  %v3170 = vunpack.c.l.b16 %v2944
  %v3171 = vunpack.c.l.b16 %v2945
  %v3172 = vunpack.c.l.b16 %v2946
  %v3173 = vunpack.c.l.b16 %v2947
  %v3174 = vunpack.c.l.b16 %v2948
  %v3175 = vunpack.c.l.b16 %v2949
  %v3176 = vunpack.c.l.b16 %v2950
  %v3177 = vunpack.c.l.b16 %v2951
  %v3178 = vunpack.c.l.b16 %v2952
  %v3179 = vunpack.c.l.b16 %v2953
  %v3180 = vunpack.c.l.b16 %v2954
  %v3181 = vunpack.c.l.b16 %v2955
  %v3182 = vunpack.c.l.b16 %v2956
  %v3183 = vunpack.c.l.b16 %v2957
  %v3184 = vunpack.c.l.b16 %v2958
  %v3185 = vunpack.c.l.b16 %v2959
  %v3186 = vunpack.c.l.b16 %v2960
  %v3187 = vunpack.c.l.b16 %v2961
  %v3188 = vunpack.c.l.b16 %v2962
  %v3189 = vunpack.c.l.b16 %v2963
  %v3190 = vunpack.c.l.b16 %v2964
  %v3191 = vunpack.c.l.b16 %v2965
  %v3192 = vunpack.c.l.b16 %v2966
  %v3193 = vunpack.c.l.b16 %v2967
  %v3194 = vunpack.c.l.b16 %v2968
  %v3195 = vunpack.c.l.b16 %v2969
  %v3196 = vunpack.c.l.b16 %v2970
  %v3197 = vunpack.c.l.b16 %v2971
  %v3198 = vunpack.c.l.b16 %v2972
  %v3199 = vunpack.c.l.b16 %v2973
  %v3200 = vunpack.c.l.b16 %v2974
  %v3201 = vunpack.c.l.b16 %v2975
  %v3202 = vunpack.c.l.b16 %v2976
  %v3203 = vunpack.c.l.b16 %v2977
  %v3204 = vunpack.c.l.b16 %v2978
  %v3205 = vunpack.c.l.b16 %v2979
  %v3206 = vunpack.c.l.b16 %v2980
  %v3207 = vunpack.c.l.b16 %v2981
  %v3208 = vunpack.c.l.b16 %v2982
  %v3209 = vunpack.c.l.b16 %v2983
  %v3210 = vunpack.c.l.b16 %v2984
  %v3211 = vunpack.c.l.b16 %v2985
  %v3212 = vunpack.c.l.b16 %v2986
  %v3213 = vunpack.c.l.b16 %v2987
  %v3214 = vunpack.c.l.b16 %v2988
  %v3215 = vunpack.c.l.b16 %v2989
  %v3216 = vunpack.c.l.b16 %v2990
  %v3217 = vunpack.c.l.b16 %v2991
  %v3218 = vunpack.c.l.b16 %v2992
  %v3219 = vunpack.c.l.b16 %v2993
  %v3220 = vunpack.c.l.b16 %v2994
  %v3221 = vunpack.c.l.b16 %v2995
  %v3222 = vunpack.c.l.b16 %v2996
  %v3223 = vpack.c.b16 %v3111, %v3110
  %v3224 = vpack.c.b16 %v3113, %v3112
  %v3225 = vpack.c.b16 %v3115, %v3114
  %v3226 = vpack.c.b16 %v3117, %v3116
  %v3227 = vpack.c.b16 %v3119, %v3118
  %v3228 = vpack.c.b16 %v3121, %v3120
  %v3229 = vpack.c.b16 %v3123, %v3122
  %v3230 = vpack.c.b16 %v3125, %v3124
  %v3231 = vpack.c.b16 %v3127, %v3126
  %v3232 = vpack.c.b16 %v3129, %v3128
  %v3233 = vpack.c.b16 %v3131, %v3130
  %v3234 = vpack.c.b16 %v3133, %v3132
  %v3235 = vpack.c.b16 %v3135, %v3134
  %v3236 = vpack.c.b16 %v3137, %v3136
  %v3237 = vpack.c.b16 %v3139, %v3138
  %v3238 = vpack.c.b16 %v3141, %v3140
  %v3239 = vpack.c.b16 %v3143, %v3142
  %v3240 = vpack.c.b16 %v3145, %v3144
  %v3241 = vpack.c.b16 %v3147, %v3146
  %v3242 = vpack.c.b16 %v3149, %v3148
  %v3243 = vpack.c.b16 %v3151, %v3150
  %v3244 = vpack.c.b16 %v3153, %v3152
  %v3245 = vpack.c.b16 %v3155, %v3154
  %v3246 = vpack.c.b16 %v3157, %v3156
  %v3247 = vpack.c.b16 %v3159, %v3158
  %v3248 = vpack.c.b16 %v3161, %v3160
  %v3249 = vpack.c.b16 %v3163, %v3162
  %v3250 = vpack.c.b16 %v3165, %v3164
  %v3251 = vpack.c.b16 %v3167, %v3166
  %v3252 = vpack.c.b16 %v3169, %v3168
  %v3253 = vpack.c.b16 %v3171, %v3170
  %v3254 = vpack.c.b16 %v3173, %v3172
  %v3255 = vpack.c.b16 %v3175, %v3174
  %v3256 = vpack.c.b16 %v3177, %v3176
  %v3257 = vpack.c.b16 %v3179, %v3178
  %v3258 = vpack.c.b16 %v3181, %v3180
  %v3259 = vpack.c.b16 %v3183, %v3182
  %v3260 = vpack.c.b16 %v3185, %v3184
  %v3261 = vpack.c.b16 %v3187, %v3186
  %v3262 = vpack.c.b16 %v3189, %v3188
  %v3263 = vpack.c.b16 %v3191, %v3190
  %v3264 = vpack.c.b16 %v3193, %v3192
  %v3265 = vpack.c.b16 %v3195, %v3194
  %v3266 = vpack.c.b16 %v3197, %v3196
  %v3267 = vpack.c.b16 %v3199, %v3198
  %v3268 = vpack.c.b16 %v3201, %v3200
  %v3269 = vpack.c.b16 %v3203, %v3202
  %v3270 = vpack.c.b16 %v3205, %v3204
  %v3271 = vpack.c.b16 %v3207, %v3206
  %v3272 = vpack.c.b16 %v3209, %v3208
  %v3273 = vpack.c.b16 %v3211, %v3210
  %v3274 = vpack.c.b16 %v3213, %v3212
  %v3275 = vpack.c.b16 %v3215, %v3214
  %v3276 = vpack.c.b16 %v3217, %v3216
  %v3277 = vpack.c.b16 %v3219, %v3218
  %v3278 = vpack.c.b16 %v3221, %v3220
  %v3279 = vpack.c.b16 %v3222, %v3222
  %v3337 = vsel %vm2492, %v3279, 0
  %3339 = vmatprep.subr.bf16.mxu0 0
  %3340 = vmatpush1.bf16.msra.mxu0 %v3223
  %3341 = vmatprep.subr.bf16.mxu0 0
  %3342 = vmatpush1.bf16.msra.mxu0 %v3224
  %3343 = vmatprep.subr.bf16.mxu0 0
  %3344 = vmatpush1.bf16.msra.mxu0 %v3225
  %3345 = vmatprep.subr.bf16.mxu0 0
  %3346 = vmatpush1.bf16.msra.mxu0 %v3226
  %3347 = vmatprep.subr.bf16.mxu0 0
  %3348 = vmatpush1.bf16.msra.mxu0 %v3227
  %3349 = vmatprep.subr.bf16.mxu0 0
  %3350 = vmatpush1.bf16.msra.mxu0 %v3228
  %3351 = vmatprep.subr.bf16.mxu0 0
  %3352 = vmatpush1.bf16.msra.mxu0 %v3229
  %3353 = vmatprep.subr.bf16.mxu0 0
  %3354 = vmatpush1.bf16.msra.mxu0 %v3230
  %3355 = vmatprep.subr.bf16.mxu0 0
  %3356 = vmatpush1.bf16.msra.mxu0 %v3231
  %3357 = vmatprep.subr.bf16.mxu0 0
  %3358 = vmatpush1.bf16.msra.mxu0 %v3232
  %3359 = vmatprep.subr.bf16.mxu0 0
  %3360 = vmatpush1.bf16.msra.mxu0 %v3233
  %3361 = vmatprep.subr.bf16.mxu0 0
  %3362 = vmatpush1.bf16.msra.mxu0 %v3234
  %3363 = vmatprep.subr.bf16.mxu0 0
  %3364 = vmatpush1.bf16.msra.mxu0 %v3235
  %3365 = vmatprep.subr.bf16.mxu0 0
  %3366 = vmatpush1.bf16.msra.mxu0 %v3236
  %3367 = vmatprep.subr.bf16.mxu0 0
  %3368 = vmatpush1.bf16.msra.mxu0 %v3237
  %3369 = vmatprep.subr.bf16.mxu0 0
  %3370 = vmatpush1.bf16.msra.mxu0 %v3238
  %3371 = vmatprep.mubr.bf16.mxu0 %v1887
  %3372 = vmatmul.mubr.bf16.gmra.mrb[0].mxu0 %v1658
  %v3373 = vpop.f32.mrb[0].mxu0
  %v3374 = vadd.f32 0.0, %v3373
  %v3375 = vpop.f32.mrb[0].mxu0
  %v3376 = vpop.f32.mrb[0].mxu0
  %v3377 = vadd.f32 0.0, %v3376
  %v3378 = vpop.f32.mrb[0].mxu0
  %3379 = vmatprep.mubr.bf16.mxu0 %v1891
  %3380 = vmatmul.mubr.bf16.gmra.mrb[0].mxu0 %v1660
  %v3381 = vpop.f32.mrb[0].mxu0
  %v3382 = vadd.f32 0.0, %v3381
  %v3383 = vpop.f32.mrb[0].mxu0
  %v3384 = vpop.f32.mrb[0].mxu0
  %v3385 = vadd.f32 0.0, %v3384
  %v3386 = vpop.f32.mrb[0].mxu0
  %3387 = vmatprep.mubr.bf16.mxu0 %v1895
  %3388 = vmatmul.mubr.bf16.gmra.mrb[0].mxu0 %v1662
  %v3389 = vpop.f32.mrb[0].mxu0
  %v3390 = vadd.f32 0.0, %v3389
  %v3391 = vpop.f32.mrb[0].mxu0
  %v3392 = vpop.f32.mrb[0].mxu0
  %v3393 = vadd.f32 0.0, %v3392
  %v3394 = vpop.f32.mrb[0].mxu0
  %3395 = vmatprep.mubr.bf16.mxu0 %v1899
  %3396 = vmatmul.mubr.bf16.gmra.mrb[0].mxu0 %v1664
  %v3397 = vpop.f32.mrb[0].mxu0
  %v3398 = vadd.f32 0.0, %v3397
  %v3399 = vpop.f32.mrb[0].mxu0
  %v3400 = vpop.f32.mrb[0].mxu0
  %v3401 = vadd.f32 0.0, %v3400
  %v3402 = vpop.f32.mrb[0].mxu0
  %3403 = vmatprep.mubr.bf16.mxu0 %v1903
  %3404 = vmatmul.mubr.bf16.gmra.mrb[0].mxu0 %v1666
  %v3405 = vpop.f32.mrb[0].mxu0
  %v3406 = vadd.f32 0.0, %v3405
  %v3407 = vpop.f32.mrb[0].mxu0
  %v3408 = vpop.f32.mrb[0].mxu0
  %v3409 = vadd.f32 0.0, %v3408
  %v3410 = vpop.f32.mrb[0].mxu0
  %3411 = vmatprep.mubr.bf16.mxu0 %v1907
  %3412 = vmatmul.mubr.bf16.gmra.mrb[0].mxu0 %v1668
  %v3413 = vpop.f32.mrb[0].mxu0
  %v3414 = vadd.f32 0.0, %v3413
  %v3415 = vpop.f32.mrb[0].mxu0
  %v3416 = vpop.f32.mrb[0].mxu0
  %v3417 = vadd.f32 0.0, %v3416
  %v3418 = vpop.f32.mrb[0].mxu0
  %3419 = vmatprep.mubr.bf16.mxu0 %v1911
  %3420 = vmatmul.mubr.bf16.gmra.mrb[0].mxu0 %v1670
  %v3421 = vpop.f32.mrb[0].mxu0
  %v3422 = vadd.f32 0.0, %v3421
  %v3423 = vpop.f32.mrb[0].mxu0
  %v3424 = vpop.f32.mrb[0].mxu0
  %v3425 = vadd.f32 0.0, %v3424
  %v3426 = vpop.f32.mrb[0].mxu0
  %3427 = vmatprep.mubr.bf16.mxu0 %v1915
  %3428 = vmatmul.mubr.bf16.gmra.mrb[0].mxu0 %v1672
  %v3429 = vpop.f32.mrb[0].mxu0
  %v3430 = vadd.f32 0.0, %v3429
  %v3431 = vpop.f32.mrb[0].mxu0
  %v3432 = vpop.f32.mrb[0].mxu0
  %v3433 = vadd.f32 0.0, %v3432
  %v3434 = vpop.f32.mrb[0].mxu0
  %3435 = vdwg.mxu0
  %3436 = vmatprep.subr.bf16.mxu0 0
  %3437 = vmatpush1.bf16.msra.mxu0 %v3239
  %3438 = vmatprep.subr.bf16.mxu0 0
  %3439 = vmatpush1.bf16.msra.mxu0 %v3240
  %3440 = vmatprep.subr.bf16.mxu0 0
  %3441 = vmatpush1.bf16.msra.mxu0 %v3241
  %3442 = vmatprep.subr.bf16.mxu0 0
  %3443 = vmatpush1.bf16.msra.mxu0 %v3242
  %3444 = vmatprep.subr.bf16.mxu0 0
  %3445 = vmatpush1.bf16.msra.mxu0 %v3243
  %3446 = vmatprep.subr.bf16.mxu0 0
  %3447 = vmatpush1.bf16.msra.mxu0 %v3244
  %3448 = vmatprep.subr.bf16.mxu0 0
  %3449 = vmatpush1.bf16.msra.mxu0 %v3245
  %3450 = vmatprep.subr.bf16.mxu0 0
  %3451 = vmatpush1.bf16.msra.mxu0 %v3246
  %3452 = vmatprep.subr.bf16.mxu0 0
  %3453 = vmatpush1.bf16.msra.mxu0 %v3247
  %3454 = vmatprep.subr.bf16.mxu0 0
  %3455 = vmatpush1.bf16.msra.mxu0 %v3248
  %3456 = vmatprep.subr.bf16.mxu0 0
  %3457 = vmatpush1.bf16.msra.mxu0 %v3249
  %3458 = vmatprep.subr.bf16.mxu0 0
  %3459 = vmatpush1.bf16.msra.mxu0 %v3250
  %3460 = vmatprep.subr.bf16.mxu0 0
  %3461 = vmatpush1.bf16.msra.mxu0 %v3251
  %3462 = vmatprep.subr.bf16.mxu0 0
  %3463 = vmatpush1.bf16.msra.mxu0 %v3252
  %3464 = vmatprep.subr.bf16.mxu0 0
  %3465 = vmatpush1.bf16.msra.mxu0 %v3253
  %3466 = vmatprep.subr.bf16.mxu0 0
  %3467 = vmatpush1.bf16.msra.mxu0 %v3254
  %3468 = vmatprep.mubr.bf16.mxu0 %v1774
  %3469 = vmatmul.mubr.bf16.gmra.mrb[0].mxu0 %v1920
  %v3470 = vpop.f32.mrb[0].mxu0
  %v3471 = vadd.f32 %v3374, %v3470
  %v3472 = vpop.f32.mrb[0].mxu0
  %v3473 = vpop.f32.mrb[0].mxu0
  %v3474 = vadd.f32 %v3377, %v3473
  %v3475 = vpop.f32.mrb[0].mxu0
  %3476 = vmatprep.mubr.bf16.mxu0 %v1775
  %3477 = vmatmul.mubr.bf16.gmra.mrb[0].mxu0 %v1924
  %v3478 = vpop.f32.mrb[0].mxu0
  %v3479 = vadd.f32 %v3382, %v3478
  %v3480 = vpop.f32.mrb[0].mxu0
  %v3481 = vpop.f32.mrb[0].mxu0
  %v3482 = vadd.f32 %v3385, %v3481
  %v3483 = vpop.f32.mrb[0].mxu0
  %3484 = vmatprep.mubr.bf16.mxu0 %v1776
  %3485 = vmatmul.mubr.bf16.gmra.mrb[0].mxu0 %v1928
  %v3486 = vpop.f32.mrb[0].mxu0
  %v3487 = vadd.f32 %v3390, %v3486
  %v3488 = vpop.f32.mrb[0].mxu0
  %v3489 = vpop.f32.mrb[0].mxu0
  %v3490 = vadd.f32 %v3393, %v3489
  %v3491 = vpop.f32.mrb[0].mxu0
  %3492 = vmatprep.mubr.bf16.mxu0 %v1777
  %3493 = vmatmul.mubr.bf16.gmra.mrb[0].mxu0 %v1932
  %v3494 = vpop.f32.mrb[0].mxu0
  %v3495 = vadd.f32 %v3398, %v3494
  %v3496 = vpop.f32.mrb[0].mxu0
  %v3497 = vpop.f32.mrb[0].mxu0
  %v3498 = vadd.f32 %v3401, %v3497
  %v3499 = vpop.f32.mrb[0].mxu0
  %3500 = vmatprep.mubr.bf16.mxu0 %v1778
  %3501 = vmatmul.mubr.bf16.gmra.mrb[0].mxu0 %v1936
  %v3502 = vpop.f32.mrb[0].mxu0
  %v3503 = vadd.f32 %v3406, %v3502
  %v3504 = vpop.f32.mrb[0].mxu0
  %v3505 = vpop.f32.mrb[0].mxu0
  %v3506 = vadd.f32 %v3409, %v3505
  %v3507 = vpop.f32.mrb[0].mxu0
  %3508 = vmatprep.mubr.bf16.mxu0 %v1779
  %3509 = vmatmul.mubr.bf16.gmra.mrb[0].mxu0 %v1940
  %v3510 = vpop.f32.mrb[0].mxu0
  %v3511 = vadd.f32 %v3414, %v3510
  %v3512 = vpop.f32.mrb[0].mxu0
  %v3513 = vpop.f32.mrb[0].mxu0
  %v3514 = vadd.f32 %v3417, %v3513
  %v3515 = vpop.f32.mrb[0].mxu0
  %3516 = vmatprep.mubr.bf16.mxu0 %v1780
  %3517 = vmatmul.mubr.bf16.gmra.mrb[0].mxu0 %v1944
  %v3518 = vpop.f32.mrb[0].mxu0
  %v3519 = vadd.f32 %v3422, %v3518
  %v3520 = vpop.f32.mrb[0].mxu0
  %v3521 = vpop.f32.mrb[0].mxu0
  %v3522 = vadd.f32 %v3425, %v3521
  %v3523 = vpop.f32.mrb[0].mxu0
  %3524 = vmatprep.mubr.bf16.mxu0 %v1781
  %3525 = vmatmul.mubr.bf16.gmra.mrb[0].mxu0 %v1948
  %v3526 = vpop.f32.mrb[0].mxu0
  %v3527 = vadd.f32 %v3430, %v3526
  %v3528 = vpop.f32.mrb[0].mxu0
  %v3529 = vpop.f32.mrb[0].mxu0
  %v3530 = vadd.f32 %v3433, %v3529
  %v3531 = vpop.f32.mrb[0].mxu0
  %3532 = vdwg.mxu0
  %3533 = vmatprep.subr.bf16.mxu0 0
  %3534 = vmatpush1.bf16.msra.mxu0 %v3255
  %3535 = vmatprep.subr.bf16.mxu0 0
  %3536 = vmatpush1.bf16.msra.mxu0 %v3256
  %3537 = vmatprep.subr.bf16.mxu0 0
  %3538 = vmatpush1.bf16.msra.mxu0 %v3257
  %3539 = vmatprep.subr.bf16.mxu0 0
  %3540 = vmatpush1.bf16.msra.mxu0 %v3258
  %3541 = vmatprep.subr.bf16.mxu0 0
  %3542 = vmatpush1.bf16.msra.mxu0 %v3259
  %3543 = vmatprep.subr.bf16.mxu0 0
  %3544 = vmatpush1.bf16.msra.mxu0 %v3260
  %3545 = vmatprep.subr.bf16.mxu0 0
  %3546 = vmatpush1.bf16.msra.mxu0 %v3261
  %3547 = vmatprep.subr.bf16.mxu0 0
  %3548 = vmatpush1.bf16.msra.mxu0 %v3262
  %3549 = vmatprep.subr.bf16.mxu0 0
  %3550 = vmatpush1.bf16.msra.mxu0 %v3263
  %3551 = vmatprep.subr.bf16.mxu0 0
  %3552 = vmatpush1.bf16.msra.mxu0 %v3264
  %3553 = vmatprep.subr.bf16.mxu0 0
  %3554 = vmatpush1.bf16.msra.mxu0 %v3265
  %3555 = vmatprep.subr.bf16.mxu0 0
  %3556 = vmatpush1.bf16.msra.mxu0 %v3266
  %3557 = vmatprep.subr.bf16.mxu0 0
  %3558 = vmatpush1.bf16.msra.mxu0 %v3267
  %3559 = vmatprep.subr.bf16.mxu0 0
  %3560 = vmatpush1.bf16.msra.mxu0 %v3268
  %3561 = vmatprep.subr.bf16.mxu0 0
  %3562 = vmatpush1.bf16.msra.mxu0 %v3269
  %3563 = vmatprep.subr.bf16.mxu0 0
  %3564 = vmatpush1.bf16.msra.mxu0 %v3270
  %3565 = vmatprep.mubr.bf16.mxu0 %v1985
  %3566 = vmatmul.mubr.bf16.gmra.mrb[0].mxu0 %v1952
  %v3567 = vpop.f32.mrb[0].mxu0
  %v3568 = vadd.f32 %v3471, %v3567
  %v3569 = vpop.f32.mrb[0].mxu0
  %v3570 = vpop.f32.mrb[0].mxu0
  %v3571 = vadd.f32 %v3474, %v3570
  %v3572 = vpop.f32.mrb[0].mxu0
  %3573 = vmatprep.mubr.bf16.mxu0 %v1989
  %3574 = vmatmul.mubr.bf16.gmra.mrb[0].mxu0 %v1956
  %v3575 = vpop.f32.mrb[0].mxu0
  %v3576 = vadd.f32 %v3479, %v3575
  %v3577 = vpop.f32.mrb[0].mxu0
  %v3578 = vpop.f32.mrb[0].mxu0
  %v3579 = vadd.f32 %v3482, %v3578
  %v3580 = vpop.f32.mrb[0].mxu0
  %3581 = vmatprep.mubr.bf16.mxu0 %v1993
  %3582 = vmatmul.mubr.bf16.gmra.mrb[0].mxu0 %v1960
  %v3583 = vpop.f32.mrb[0].mxu0
  %v3584 = vadd.f32 %v3487, %v3583
  %v3585 = vpop.f32.mrb[0].mxu0
  %v3586 = vpop.f32.mrb[0].mxu0
  %v3587 = vadd.f32 %v3490, %v3586
  %v3588 = vpop.f32.mrb[0].mxu0
  %3589 = vmatprep.mubr.bf16.mxu0 %v1997
  %3590 = vmatmul.mubr.bf16.gmra.mrb[0].mxu0 %v1964
  %v3591 = vpop.f32.mrb[0].mxu0
  %v3592 = vadd.f32 %v3495, %v3591
  %v3593 = vpop.f32.mrb[0].mxu0
  %v3594 = vpop.f32.mrb[0].mxu0
  %v3595 = vadd.f32 %v3498, %v3594
  %v3596 = vpop.f32.mrb[0].mxu0
  %3597 = vmatprep.mubr.bf16.mxu0 %v2001
  %3598 = vmatmul.mubr.bf16.gmra.mrb[0].mxu0 %v1968
  %v3599 = vpop.f32.mrb[0].mxu0
  %v3600 = vadd.f32 %v3503, %v3599
  %v3601 = vpop.f32.mrb[0].mxu0
  %v3602 = vpop.f32.mrb[0].mxu0
  %v3603 = vadd.f32 %v3506, %v3602
  %v3604 = vpop.f32.mrb[0].mxu0
  %3605 = vmatprep.mubr.bf16.mxu0 %v2005
  %3606 = vmatmul.mubr.bf16.gmra.mrb[0].mxu0 %v1972
  %v3607 = vpop.f32.mrb[0].mxu0
  %v3608 = vadd.f32 %v3511, %v3607
  %v3609 = vpop.f32.mrb[0].mxu0
  %v3610 = vpop.f32.mrb[0].mxu0
  %v3611 = vadd.f32 %v3514, %v3610
  %v3612 = vpop.f32.mrb[0].mxu0
  %3613 = vmatprep.mubr.bf16.mxu0 %v2009
  %3614 = vmatmul.mubr.bf16.gmra.mrb[0].mxu0 %v1976
  %v3615 = vpop.f32.mrb[0].mxu0
  %v3616 = vadd.f32 %v3519, %v3615
  %v3617 = vpop.f32.mrb[0].mxu0
  %v3618 = vpop.f32.mrb[0].mxu0
  %v3619 = vadd.f32 %v3522, %v3618
  %v3620 = vpop.f32.mrb[0].mxu0
  %3621 = vmatprep.mubr.bf16.mxu0 %v2013
  %3622 = vmatmul.mubr.bf16.gmra.mrb[0].mxu0 %v1980
  %v3623 = vpop.f32.mrb[0].mxu0
  %v3624 = vadd.f32 %v3527, %v3623
  %v3625 = vpop.f32.mrb[0].mxu0
  %v3626 = vpop.f32.mrb[0].mxu0
  %v3627 = vadd.f32 %v3530, %v3626
  %v3628 = vpop.f32.mrb[0].mxu0
  %3629 = vdwg.mxu0
  %3630 = vmatprep.subr.bf16.mxu0 0
  %3631 = vmatpush1.bf16.msra.mxu0 %v3271
  %3632 = vmatprep.subr.bf16.mxu0 0
  %3633 = vmatpush1.bf16.msra.mxu0 %v3272
  %3634 = vmatprep.subr.bf16.mxu0 0
  %3635 = vmatpush1.bf16.msra.mxu0 %v3273
  %3636 = vmatprep.subr.bf16.mxu0 0
  %3637 = vmatpush1.bf16.msra.mxu0 %v3274
  %3638 = vmatprep.subr.bf16.mxu0 0
  %3639 = vmatpush1.bf16.msra.mxu0 %v3275
  %3640 = vmatprep.subr.bf16.mxu0 0
  %3641 = vmatpush1.bf16.msra.mxu0 %v3276
  %3642 = vmatprep.subr.bf16.mxu0 0
  %3643 = vmatpush1.bf16.msra.mxu0 %v3277
  %3644 = vmatprep.subr.bf16.mxu0 0
  %3645 = vmatpush1.bf16.msra.mxu0 %v3278
  %3646 = vmatprep.subr.bf16.mxu0 0
  %3647 = vmatpush1.bf16.msra.mxu0 %v3337
  %3648 = vmatprep.subr.bf16.mxu0 0
  %3649 = vmatpush1.bf16.msra.mxu0 0
  %3650 = vmatprep.subr.bf16.mxu0 0
  %3651 = vmatpush1.bf16.msra.mxu0 0
  %3652 = vmatprep.subr.bf16.mxu0 0
  %3653 = vmatpush1.bf16.msra.mxu0 0
  %3654 = vmatprep.subr.bf16.mxu0 0
  %3655 = vmatpush1.bf16.msra.mxu0 0
  %3656 = vmatprep.subr.bf16.mxu0 0
  %3657 = vmatpush1.bf16.msra.mxu0 0
  %3658 = vmatprep.subr.bf16.mxu0 0
  %3659 = vmatpush1.bf16.msra.mxu0 0
  %3660 = vmatprep.subr.bf16.mxu0 0
  %3661 = vmatpush1.bf16.msra.mxu0 0
  %3662 = vmatprep.mubr.bf16.mxu0 %v2469
  %3663 = vmatmul.mubr.bf16.gmra.mrb[0].mxu0 %v1868
  %v3664 = vpop.f32.mrb[0].mxu0
  %v3665 = vadd.f32 %v3568, %v3664
  %v3666 = vpop.f32.mrb[0].mxu0
  %v3667 = vpop.f32.mrb[0].mxu0
  %v3668 = vadd.f32 %v3571, %v3667
  %v3669 = vpop.f32.mrb[0].mxu0
  %3670 = vmatprep.mubr.bf16.mxu0 %v2472
  %3671 = vmatmul.mubr.bf16.gmra.mrb[0].mxu0 %v1869
  %v3672 = vpop.f32.mrb[0].mxu0
  %v3673 = vadd.f32 %v3576, %v3672
  %v3674 = vpop.f32.mrb[0].mxu0
  %v3675 = vpop.f32.mrb[0].mxu0
  %v3676 = vadd.f32 %v3579, %v3675
  %v3677 = vpop.f32.mrb[0].mxu0
  %3678 = vmatprep.mubr.bf16.mxu0 %v2475
  %3679 = vmatmul.mubr.bf16.gmra.mrb[0].mxu0 %v1870
  %v3680 = vpop.f32.mrb[0].mxu0
  %v3681 = vadd.f32 %v3584, %v3680
  %v3682 = vpop.f32.mrb[0].mxu0
  %v3683 = vpop.f32.mrb[0].mxu0
  %v3684 = vadd.f32 %v3587, %v3683
  %v3685 = vpop.f32.mrb[0].mxu0
  %3686 = vmatprep.mubr.bf16.mxu0 %v2478
  %3687 = vmatmul.mubr.bf16.gmra.mrb[0].mxu0 %v1871
  %v3688 = vpop.f32.mrb[0].mxu0
  %v3689 = vadd.f32 %v3592, %v3688
  %v3690 = vpop.f32.mrb[0].mxu0
  %v3691 = vpop.f32.mrb[0].mxu0
  %v3692 = vadd.f32 %v3595, %v3691
  %v3693 = vpop.f32.mrb[0].mxu0
  %3694 = vmatprep.mubr.bf16.mxu0 %v2481
  %3695 = vmatmul.mubr.bf16.gmra.mrb[0].mxu0 %v1872
  %v3696 = vpop.f32.mrb[0].mxu0
  %v3697 = vadd.f32 %v3600, %v3696
  %v3698 = vpop.f32.mrb[0].mxu0
  %v3699 = vpop.f32.mrb[0].mxu0
  %v3700 = vadd.f32 %v3603, %v3699
  %v3701 = vpop.f32.mrb[0].mxu0
  %3702 = vmatprep.mubr.bf16.mxu0 %v2484
  %3703 = vmatmul.mubr.bf16.gmra.mrb[0].mxu0 %v1873
  %v3704 = vpop.f32.mrb[0].mxu0
  %v3705 = vadd.f32 %v3608, %v3704
  %v3706 = vpop.f32.mrb[0].mxu0
  %v3707 = vpop.f32.mrb[0].mxu0
  %v3708 = vadd.f32 %v3611, %v3707
  %v3709 = vpop.f32.mrb[0].mxu0
  %3710 = vmatprep.mubr.bf16.mxu0 %v2487
  %3711 = vmatmul.mubr.bf16.gmra.mrb[0].mxu0 %v1874
  %v3712 = vpop.f32.mrb[0].mxu0
  %v3713 = vadd.f32 %v3616, %v3712
  %v3714 = vpop.f32.mrb[0].mxu0
  %v3715 = vpop.f32.mrb[0].mxu0
  %v3716 = vadd.f32 %v3619, %v3715
  %v3717 = vpop.f32.mrb[0].mxu0
  %3718 = vmatprep.mubr.bf16.mxu0 %v2490
  %3719 = vmatmul.mubr.bf16.gmra.mrb[0].mxu0 %v1875
  %v3720 = vpop.f32.mrb[0].mxu0
  %v3721 = vadd.f32 %v3624, %v3720
  %v3722 = vpop.f32.mrb[0].mxu0
  %v3723 = vpop.f32.mrb[0].mxu0
  %v3724 = vadd.f32 %v3627, %v3723
  %v3725 = vpop.f32.mrb[0].mxu0
  %3726 = vdwg.mxu0
  %v3727 = vmax.f32 %v2822, %v3665
  %v3728 = vmax.f32 %v2825, %v3668
  %v3729 = vmax.f32 %v2830, %v3673
  %v3730 = vmax.f32 %v2833, %v3676
  %v3731 = vmax.f32 %v2838, %v3681
  %v3732 = vmax.f32 %v2841, %v3684
  %v3733 = vmax.f32 %v2846, %v3689
  %v3734 = vmax.f32 %v2849, %v3692
  %v3735 = vmax.f32 %v2854, %v3697
  %v3736 = vmax.f32 %v2857, %v3700
  %v3737 = vmax.f32 %v2862, %v3705
  %v3738 = vmax.f32 %v2865, %v3708
  %v3739 = vmax.f32 %v2870, %v3713
  %v3740 = vmax.f32 %v2873, %v3716
  %v3741 = vmax.f32 %v2878, %v3721
  %v3742 = vmax.f32 %v2881, %v3724
  %v3743 = vmax.f32 %v3727, %v3729
  %v3744 = vmax.f32 %v3728, %v3730
  %v3745 = vmax.f32 %v3731, %v3733
  %v3746 = vmax.f32 %v3732, %v3734
  %v3747 = vmax.f32 %v3735, %v3737
  %v3748 = vmax.f32 %v3736, %v3738
  %v3749 = vmax.f32 %v3739, %v3741
  %v3750 = vmax.f32 %v3740, %v3742
  %v3751 = vld [vmem:[%s6] sm:$0x1]
  %v3753 = vlaneseq
  %v3754 = vshrl.u32 %v3753, 7
  %v3755 = vsub.s32 0, %v3754
  %v3756 = vrot.slane %v3751, %v3755
  %v3758 = vadd.f32 %v3743, %v3756
  %v3759 = vadd.f32 %v3744, %v3756
  %v3760 = vadd.f32 %v3745, %v3756
  %v3761 = vadd.f32 %v3746, %v3756
  %v3762 = vadd.f32 %v3747, %v3756
  %v3763 = vadd.f32 %v3748, %v3756
  %v3764 = vadd.f32 %v3749, %v3756
  %v3765 = vadd.f32 %v3750, %v3756
  %v3766 = vmax.f32 %v3758, 0.0
  %v3767 = vmax.f32 %v3759, 0.0
  %v3768 = vmax.f32 %v3760, 0.0
  %v3769 = vmax.f32 %v3761, 0.0
  %v3770 = vmax.f32 %v3762, 0.0
  %v3771 = vmax.f32 %v3763, 0.0
  %v3772 = vmax.f32 %v3764, 0.0
  %v3773 = vmax.f32 %v3765, 0.0
  %3776 = vrot.lane.b32.xlu0 %v3768, 80
  %v3777 = vpop.permute.xlu0 %3776
  %3778 = vrot.lane.b32.xlu0 %v3769, 80
  %v3779 = vpop.permute.xlu0 %3778
  %3784 = vrot.lane.b32.xlu0 %v3770, 32
  %v3785 = vpop.permute.xlu0 %3784
  %3786 = vrot.lane.b32.xlu0 %v3771, 32
  %v3787 = vpop.permute.xlu0 %3786
  %3792 = vrot.lane.b32.xlu0 %v3772, 112
  %v3793 = vpop.permute.xlu0 %3792
  %3794 = vrot.lane.b32.xlu0 %v3773, 112
  %v3795 = vpop.permute.xlu0 %3794
  %v3798 = vsel %vm1982, %v3766, %v3777
  %v3799 = vsel %vm1982, %v3767, %v3779
  %vm3800 = vcmask 261120
  %v3801 = vsel %vm3800, %v3777, %v3785
  %v3802 = vsel %vm3800, %v3779, %v3787
  %v3803 = vsel %vm513, %v3801, %v3793
  %v3804 = vsel %vm513, %v3802, %v3795
  %v3805 = vpack.c.bf16 %v3799, %v3798
  %v3806 = vpack.c.bf16 %v3804, %v3803
  %v3807 = vpack.c.bf16 %v3795, %v3793
  %v3808 = vld [vmem:[%s7] sm:$0xf]
  %v3809 = vld [vmem:[%s7 + $0x4] sm:$0xf]
  %v3810 = vld [vmem:[%s7 + $0x8] sm:$0xf]
  %v3811 = vld [vmem:[%s7 + $0xc] sm:$0xf]
  %v3812 = vld [vmem:[%s7 + $0x10] sm:$0xf]
  %v3813 = vld [vmem:[%s7 + $0x14] sm:$0xf]
  %v3814 = vld [vmem:[%s7 + $0x18] sm:$0xf]
  %v3815 = vld [vmem:[%s7 + $0x1c] sm:$0xf]
  %v3816 = vld [vmem:[%s7 + $0x20] sm:$0xf]
  %v3817 = vld [vmem:[%s7 + $0x24] sm:$0xf]
  %v3818 = vld [vmem:[%s7 + $0x28] sm:$0xf]
  %v3819 = vld [vmem:[%s7 + $0x2c] sm:$0xf]
  %v3820 = vld [vmem:[%s7 + $0x30] sm:$0xf]
  %v3821 = vld [vmem:[%s7 + $0x34] sm:$0xf]
  %v3822 = vld [vmem:[%s7 + $0x38] sm:$0xf]
  %v3823 = vld [vmem:[%s7 + $0x3c] sm:$0xf]
  %v3824 = vld [vmem:[%s7 + $0x40] sm:$0xf]
  %v3825 = vld [vmem:[%s7 + $0x44] sm:$0xf]
  %v3826 = vld [vmem:[%s7 + $0x48] sm:$0xf]
  %v3827 = vld [vmem:[%s7 + $0x4c] sm:$0xf]
  %v3828 = vld [vmem:[%s7 + $0x50] sm:$0xf]
  %v3829 = vld [vmem:[%s7 + $0x54] sm:$0xf]
  %v3830 = vld [vmem:[%s7 + $0x58] sm:$0xf]
  %v3831 = vld [vmem:[%s7 + $0x5c] sm:$0xf]
  %v3832 = vld [vmem:[%s7 + $0x60] sm:$0xf]
  %v3833 = vld [vmem:[%s7 + $0x64] sm:$0xf]
  %v3834 = vld [vmem:[%s7 + $0x68] sm:$0xf]
  %v3835 = vld [vmem:[%s7 + $0x6c] sm:$0xf]
  %v3836 = vld [vmem:[%s7 + $0x70] sm:$0xf]
  %v3837 = vld [vmem:[%s7 + $0x74] sm:$0xf]
  %v3838 = vld [vmem:[%s7 + $0x78] sm:$0xf]
  %v3839 = vld [vmem:[%s7 + $0x7c] sm:$0xf]
  %v3840 = vld [vmem:[%s7 + $0x80] sm:$0xf]
  %v3841 = vld [vmem:[%s7 + $0x84] sm:$0xf]
  %v3842 = vld [vmem:[%s7 + $0x88] sm:$0xf]
  %v3843 = vld [vmem:[%s7 + $0x8c] sm:$0xf]
  %v3844 = vld [vmem:[%s7 + $0x90] sm:$0xf]
  %v3845 = vld [vmem:[%s7 + $0x94] sm:$0xf]
  %v3846 = vld [vmem:[%s7 + $0x98] sm:$0xf]
  %v3847 = vld [vmem:[%s7 + $0x9c] sm:$0xf]
  %v3848 = vld [vmem:[%s8] sm:$0x1]
  %v3850 = vlaneseq
  %v3851 = vshrl.u32 %v3850, 7
  %v3852 = vsub.s32 0, %v3851
  %v3853 = vrot.slane %v3848, %v3852
  %v3895 = vunpack.c.l.b16 %v3808
  %v3896 = vunpack.c.l.b16 %v3809
  %v3897 = vunpack.c.l.b16 %v3810
  %v3898 = vunpack.c.l.b16 %v3811
  %v3899 = vunpack.c.l.b16 %v3812
  %v3900 = vunpack.c.l.b16 %v3813
  %v3901 = vunpack.c.l.b16 %v3814
  %v3902 = vunpack.c.l.b16 %v3815
  %v3903 = vunpack.c.l.b16 %v3816
  %v3904 = vunpack.c.l.b16 %v3817
  %v3905 = vunpack.c.l.b16 %v3818
  %v3906 = vunpack.c.l.b16 %v3819
  %v3907 = vunpack.c.l.b16 %v3820
  %v3908 = vunpack.c.l.b16 %v3821
  %v3909 = vunpack.c.l.b16 %v3822
  %v3910 = vunpack.c.l.b16 %v3823
  %v3911 = vunpack.c.l.b16 %v3824
  %v3912 = vunpack.c.l.b16 %v3825
  %v3913 = vunpack.c.l.b16 %v3826
  %v3914 = vunpack.c.l.b16 %v3827
  %v3915 = vunpack.c.l.b16 %v3828
  %v3916 = vunpack.c.l.b16 %v3829
  %v3917 = vunpack.c.l.b16 %v3830
  %v3918 = vunpack.c.l.b16 %v3831
  %v3919 = vunpack.c.l.b16 %v3832
  %v3920 = vunpack.c.l.b16 %v3833
  %v3921 = vunpack.c.l.b16 %v3834
  %v3922 = vunpack.c.l.b16 %v3835
  %v3923 = vunpack.c.l.b16 %v3836
  %v3924 = vunpack.c.l.b16 %v3837
  %v3925 = vunpack.c.l.b16 %v3838
  %v3926 = vunpack.c.l.b16 %v3839
  %v3927 = vunpack.c.l.b16 %v3840
  %v3928 = vunpack.c.l.b16 %v3841
  %v3929 = vunpack.c.l.b16 %v3842
  %v3930 = vunpack.c.l.b16 %v3843
  %v3931 = vunpack.c.l.b16 %v3844
  %v3932 = vunpack.c.l.b16 %v3845
  %v3933 = vunpack.c.l.b16 %v3846
  %v3934 = vunpack.c.l.b16 %v3847
  %v3935 = vpack.c.b16 %v3896, %v3895
  %v3936 = vpack.c.b16 %v3898, %v3897
  %v3937 = vpack.c.b16 %v3900, %v3899
  %v3938 = vpack.c.b16 %v3902, %v3901
  %v3939 = vpack.c.b16 %v3904, %v3903
  %v3940 = vpack.c.b16 %v3906, %v3905
  %v3941 = vpack.c.b16 %v3908, %v3907
  %v3942 = vpack.c.b16 %v3910, %v3909
  %v3943 = vpack.c.b16 %v3912, %v3911
  %v3944 = vpack.c.b16 %v3914, %v3913
  %v3945 = vpack.c.b16 %v3916, %v3915
  %v3946 = vpack.c.b16 %v3918, %v3917
  %v3947 = vpack.c.b16 %v3920, %v3919
  %v3948 = vpack.c.b16 %v3922, %v3921
  %v3949 = vpack.c.b16 %v3924, %v3923
  %v3950 = vpack.c.b16 %v3926, %v3925
  %v3951 = vpack.c.b16 %v3928, %v3927
  %v3952 = vpack.c.b16 %v3930, %v3929
  %v3953 = vpack.c.b16 %v3932, %v3931
  %v3954 = vpack.c.b16 %v3934, %v3933
  %vm3975 = vcmask 523264
  %v3977 = vsel %vm3975, %v3807, 0
  %3979 = vmatprep.subr.bf16.mxu0 0
  %3980 = vmatpush1.bf16.msra.mxu0 %v3935
  %3981 = vmatprep.subr.bf16.mxu0 0
  %3982 = vmatpush1.bf16.msra.mxu0 %v3936
  %3983 = vmatprep.subr.bf16.mxu0 0
  %3984 = vmatpush1.bf16.msra.mxu0 %v3937
  %3985 = vmatprep.subr.bf16.mxu0 0
  %3986 = vmatpush1.bf16.msra.mxu0 %v3938
  %3987 = vmatprep.subr.bf16.mxu0 0
  %3988 = vmatpush1.bf16.msra.mxu0 %v3939
  %3989 = vmatprep.subr.bf16.mxu0 0
  %3990 = vmatpush1.bf16.msra.mxu0 %v3940
  %3991 = vmatprep.subr.bf16.mxu0 0
  %3992 = vmatpush1.bf16.msra.mxu0 %v3941
  %3993 = vmatprep.subr.bf16.mxu0 0
  %3994 = vmatpush1.bf16.msra.mxu0 %v3942
  %3995 = vmatprep.subr.bf16.mxu0 0
  %3996 = vmatpush1.bf16.msra.mxu0 %v3943
  %3997 = vmatprep.subr.bf16.mxu0 0
  %3998 = vmatpush1.bf16.msra.mxu0 %v3944
  %3999 = vmatprep.subr.bf16.mxu0 0
  %4000 = vmatpush1.bf16.msra.mxu0 %v3945
  %4001 = vmatprep.subr.bf16.mxu0 0
  %4002 = vmatpush1.bf16.msra.mxu0 %v3946
  %4003 = vmatprep.subr.bf16.mxu0 0
  %4004 = vmatpush1.bf16.msra.mxu0 %v3947
  %4005 = vmatprep.subr.bf16.mxu0 0
  %4006 = vmatpush1.bf16.msra.mxu0 %v3948
  %4007 = vmatprep.subr.bf16.mxu0 0
  %4008 = vmatpush1.bf16.msra.mxu0 %v3949
  %4009 = vmatprep.subr.bf16.mxu0 0
  %4010 = vmatpush1.bf16.msra.mxu0 %v3950
  %4011 = vmatprep.mubr.bf16.mxu0 %v3806
  %4012 = vmatmul.mubr.bf16.gmra.mrb[0].mxu0 %v3805
  %v4013 = vpop.f32.mrb[0].mxu0
  %v4014 = vadd.f32 %v3853, %v4013
  %v4015 = vpop.f32.mrb[0].mxu0
  %v4016 = vpop.f32.mrb[0].mxu0
  %v4017 = vadd.f32 %v3853, %v4016
  %v4018 = vpop.f32.mrb[0].mxu0
  %4019 = vdwg.mxu0
  %4020 = vmatprep.subr.bf16.mxu0 0
  %4021 = vmatpush1.bf16.msra.mxu0 %v3951
  %4022 = vmatprep.subr.bf16.mxu0 0
  %4023 = vmatpush1.bf16.msra.mxu0 %v3952
  %4024 = vmatprep.subr.bf16.mxu0 0
  %4025 = vmatpush1.bf16.msra.mxu0 %v3953
  %4026 = vmatprep.subr.bf16.mxu0 0
  %4027 = vmatpush1.bf16.msra.mxu0 %v3954
  %4028 = vmatprep.subr.bf16.mxu0 0
  %4029 = vmatpush1.bf16.msra.mxu0 0
  %4030 = vmatprep.subr.bf16.mxu0 0
  %4031 = vmatpush1.bf16.msra.mxu0 0
  %4032 = vmatprep.subr.bf16.mxu0 0
  %4033 = vmatpush1.bf16.msra.mxu0 0
  %4034 = vmatprep.subr.bf16.mxu0 0
  %4035 = vmatpush1.bf16.msra.mxu0 0
  %4036 = vmatprep.subr.bf16.mxu0 0
  %4037 = vmatpush1.bf16.msra.mxu0 0
  %4038 = vmatprep.subr.bf16.mxu0 0
  %4039 = vmatpush1.bf16.msra.mxu0 0
  %4040 = vmatprep.subr.bf16.mxu0 0
  %4041 = vmatpush1.bf16.msra.mxu0 0
  %4042 = vmatprep.subr.bf16.mxu0 0
  %4043 = vmatpush1.bf16.msra.mxu0 0
  %4044 = vmatprep.subr.bf16.mxu0 0
  %4045 = vmatpush1.bf16.msra.mxu0 0
  %4046 = vmatprep.subr.bf16.mxu0 0
  %4047 = vmatpush1.bf16.msra.mxu0 0
  %4048 = vmatprep.subr.bf16.mxu0 0
  %4049 = vmatpush1.bf16.msra.mxu0 0
  %4050 = vmatprep.subr.bf16.mxu0 0
  %4051 = vmatpush1.bf16.msra.mxu0 0
  %4052 = vmatprep.mubr.bf16.mxu0 0
  %4053 = vmatmul.mubr.bf16.gmra.mrb[0].mxu0 %v3977
  %v4054 = vpop.f32.mrb[0].mxu0
  %v4055 = vadd.f32 %v4014, %v4054
  %v4056 = vpop.f32.mrb[0].mxu0
  %v4057 = vpop.f32.mrb[0].mxu0
  %v4058 = vadd.f32 %v4017, %v4057
  %v4059 = vpop.f32.mrb[0].mxu0
  %4060 = vdwg.mxu0
  %v4061 = vmax.f32 %v4055, 0.0
  %v4062 = vmax.f32 %v4058, 0.0
  %v4063 = vpack.c.bf16 %v4062, %v4061
  %v4064 = vld [vmem:[%s9] sm:$0xf]
  %v4065 = vld [vmem:[%s9 + $0x4] sm:$0xf]
  %v4066 = vld [vmem:[%s9 + $0x8] sm:$0xf]
  %v4067 = vld [vmem:[%s9 + $0xc] sm:$0xf]
  %v4068 = vld [vmem:[%s9 + $0x10] sm:$0xf]
  %v4069 = vld [vmem:[%s9 + $0x14] sm:$0xf]
  %v4070 = vld [vmem:[%s9 + $0x18] sm:$0xf]
  %v4071 = vld [vmem:[%s9 + $0x1c] sm:$0xf]
  %v4072 = vld [vmem:[%s9 + $0x20] sm:$0xf]
  %v4073 = vld [vmem:[%s9 + $0x24] sm:$0xf]
  %v4074 = vld [vmem:[%s9 + $0x28] sm:$0xf]
  %v4075 = vld [vmem:[%s9 + $0x2c] sm:$0xf]
  %v4076 = vld [vmem:[%s9 + $0x30] sm:$0xf]
  %v4077 = vld [vmem:[%s9 + $0x34] sm:$0xf]
  %v4078 = vld [vmem:[%s9 + $0x38] sm:$0xf]
  %v4079 = vld [vmem:[%s9 + $0x3c] sm:$0xf]
  %v4080 = vld [vmem:[%s10] sm:$0x1]
  %v4082 = vlaneseq
  %v4083 = vshrl.u32 %v4082, 7
  %v4084 = vsub.s32 0, %v4083
  %v4085 = vrot.slane %v4080, %v4084
  %v4103 = vunpack.c.l.b16 %v4064
  %v4104 = vunpack.c.l.b16 %v4065
  %v4105 = vunpack.c.l.b16 %v4066
  %v4106 = vunpack.c.l.b16 %v4067
  %v4107 = vunpack.c.l.b16 %v4068
  %v4108 = vunpack.c.l.b16 %v4069
  %v4109 = vunpack.c.l.b16 %v4070
  %v4110 = vunpack.c.l.b16 %v4071
  %v4111 = vunpack.c.l.b16 %v4072
  %v4112 = vunpack.c.l.b16 %v4073
  %v4113 = vunpack.c.l.b16 %v4074
  %v4114 = vunpack.c.l.b16 %v4075
  %v4115 = vunpack.c.l.b16 %v4076
  %v4116 = vunpack.c.l.b16 %v4077
  %v4117 = vunpack.c.l.b16 %v4078
  %v4118 = vunpack.c.l.b16 %v4079
  %v4119 = vpack.c.b16 %v4104, %v4103
  %v4120 = vpack.c.b16 %v4106, %v4105
  %v4121 = vpack.c.b16 %v4108, %v4107
  %v4122 = vpack.c.b16 %v4110, %v4109
  %v4123 = vpack.c.b16 %v4112, %v4111
  %v4124 = vpack.c.b16 %v4114, %v4113
  %v4125 = vpack.c.b16 %v4116, %v4115
  %v4126 = vpack.c.b16 %v4118, %v4117
  %4135 = vmatprep.subr.bf16.mxu0 0
  %4136 = vmatpush1.bf16.msra.mxu0 %v4119
  %4137 = vmatprep.subr.bf16.mxu0 0
  %4138 = vmatpush1.bf16.msra.mxu0 %v4120
  %4139 = vmatprep.subr.bf16.mxu0 0
  %4140 = vmatpush1.bf16.msra.mxu0 %v4121
  %4141 = vmatprep.subr.bf16.mxu0 0
  %4142 = vmatpush1.bf16.msra.mxu0 %v4122
  %4143 = vmatprep.subr.bf16.mxu0 0
  %4144 = vmatpush1.bf16.msra.mxu0 %v4123
  %4145 = vmatprep.subr.bf16.mxu0 0
  %4146 = vmatpush1.bf16.msra.mxu0 %v4124
  %4147 = vmatprep.subr.bf16.mxu0 0
  %4148 = vmatpush1.bf16.msra.mxu0 %v4125
  %4149 = vmatprep.subr.bf16.mxu0 0
  %4150 = vmatpush1.bf16.msra.mxu0 %v4126
  %4151 = vmatprep.subr.bf16.mxu0 0
  %4152 = vmatpush1.bf16.msra.mxu0 0
  %4153 = vmatprep.subr.bf16.mxu0 0
  %4154 = vmatpush1.bf16.msra.mxu0 0
  %4155 = vmatprep.subr.bf16.mxu0 0
  %4156 = vmatpush1.bf16.msra.mxu0 0
  %4157 = vmatprep.subr.bf16.mxu0 0
  %4158 = vmatpush1.bf16.msra.mxu0 0
  %4159 = vmatprep.subr.bf16.mxu0 0
  %4160 = vmatpush1.bf16.msra.mxu0 0
  %4161 = vmatprep.subr.bf16.mxu0 0
  %4162 = vmatpush1.bf16.msra.mxu0 0
  %4163 = vmatprep.subr.bf16.mxu0 0
  %4164 = vmatpush1.bf16.msra.mxu0 0
  %4165 = vmatprep.subr.bf16.mxu0 0
  %4166 = vmatpush1.bf16.msra.mxu0 0
  %4167 = vmatprep.mubr.bf16.mxu0 0
  %4168 = vmatmul.mubr.bf16.gmra.mrb[0].mxu0 %v4063
  %v4169 = vpop.f32.mrb[0].mxu0
  %v4170 = vadd.f32 %v4085, %v4169
  %v4171 = vpop.f32.mrb[0].mxu0
  %v4172 = vpop.f32.mrb[0].mxu0
  %v4173 = vadd.f32 %v4085, %v4172
  %v4174 = vpop.f32.mrb[0].mxu0
  %4175 = vdwg.mxu0
  %4176 = vmax.xlane.f32.xlu0 %v4170
  %v4177 = vpop.xlane.xlu0 %4176
  %4178 = vmax.xlane.f32.xlu0 %v4173
  %v4179 = vpop.xlane.xlu0 %4178
  %v4180 = vsub.f32 %v4170, %v4177
  %v4181 = vsub.f32 %v4173, %v4179
  %v4182 = vmul.f32 %v4180, 1.442695
  %v4183 = vpow.pop %v4182
  %v4184 = vmul.f32 %v4181, 1.442695
  %v4185 = vpow.pop %v4184
  %4186 = vadd.xlane.f32.xlu0 %v4183
  %v4187 = vpop.xlane.xlu0 %4186
  %4188 = vadd.xlane.f32.xlu0 %v4185
  %v4189 = vpop.xlane.xlu0 %4188
  %v4190 = vlog2.pop %v4187
  %v4191 = vmul.f32 %v4190, 0.6931472
  %v4192 = vlog2.pop %v4189
  %v4193 = vmul.f32 %v4192, 0.6931472
  %v4194 = vsub.f32 %v4180, %v4191
  %v4195 = vsub.f32 %v4181, %v4193
  %4196 = vst [vmem:[%s11] sm:$0xff] %v4194
  %4197 = vst [vmem:[%s11 + $0x8] sm:$0xff] %v4195
  // Predicated region
  $region46: #{net2_forward.1} parent=0 // pred_check
    _
  $region47: #{net2_forward.1} parent=0 // pred_check_branch
    %4199 = sbr.rel (0) target = $region49
  $region48: #{net2_forward.1} parent=0 // pred_region
    _
  $region49: #{net2_forward.1} parent=0 // pred_fallthru
    _
  // Predicated region
  $region50: #{net2_forward.1} parent=0 // pred_check
    _
  $region51: #{net2_forward.1} parent=0 // pred_check_branch
    %4201 = sbr.rel (0) target = $region53
  $region52: #{net2_forward.1} parent=0 // pred_region
    _
  $region53: #{net2_forward.1} parent=0 // pred_fallthru
    _

</llo_original>
